<compile_context>
chip_gen: v5e
topology: v5e:2x2
jax: 0.10.0
libtpu: 0.0.40
codegen_flags: <defaults>
</compile_context>

<pallas_src>
import numpy as np
import jax
import jax.numpy as jnp
from jax import lax
from jax.experimental import pallas as pl
from jax.experimental.pallas import tpu as pltpu

# ----------------------------- static sizes ---------------------------------
N = 2
C_IN, C1, C2, K = 3, 6, 16, 5
H_IN, W_IN = 20, 12
H1, W1 = H_IN - K + 1, W_IN - K + 1          # 16, 8   conv1 output
NPOS1 = N * H1 * W1                          # 256
HP, WP = H1 // 2, W1 // 2                    # 8, 4    maxpool output
HWP = HP * WP                                # 32
NPOOL = N * HWP                              # 64
PAD = 1
H2 = HP + 2 * PAD - K + 1                    # 6
W2 = WP + 2 * PAD - K + 1                    # 2
HW2 = H2 * W2                                # 12
KK1 = C_IN * K * K                           # 75
FLAT = C2 * HW2                              # 192
FLAT_PAD = 256                               # lane-padded output width
assert FLAT == C1 * HWP                      # required by the final torch.add

_HI = lax.Precision.HIGHEST


# ----------------------- compile-time constants (numpy) ----------------------
def _im2col_src():
    """(25, 128) flat source index for conv1 im2col: src[t, pos] into H*W."""
    kh = np.arange(K)[:, None, None, None]
    kw = np.arange(K)[None, :, None, None]
    oi = np.arange(H1)[None, None, :, None]
    oj = np.arange(W1)[None, None, None, :]
    return ((oi + kh) * W_IN + (oj + kw)).reshape(K * K, H1 * W1).astype(np.int32)


def _pool_selectors():
    """(4, 256, 64) one-hot selectors: pick the 4 members of each 2x2 window."""
    sel = np.zeros((4, NPOS1, NPOOL), np.float32)
    offs = (0, 1, W1, W1 + 1)
    for n in range(N):
        for pi in range(HP):
            for pj in range(WP):
                s = n * HWP + pi * WP + pj
                base = n * (H1 * W1) + (2 * pi) * W1 + 2 * pj
                for k, off in enumerate(offs):
                    sel[k, base + off, s] = 1.0
    return sel


def _conv2_tap_gather():
    """(25, 32, 12) one-hot: A[t, sp, hw]=1 iff tap t at conv2 output hw reads
    pooled position sp (zero rows implement the pad=1 zero padding)."""
    a = np.zeros((K * K, HWP, HW2), np.float32)
    for kh in range(K):
        for kw in range(K):
            t = kh * K + kw
            for i2 in range(H2):
                for j2 in range(W2):
                    ri, rj = i2 + kh - PAD, j2 + kw - PAD
                    if 0 <= ri < HP and 0 <= rj < WP:
                        a[t, ri * WP + rj, i2 * W2 + j2] = 1.0
    return a


SRC_NP = _im2col_src()
SEL_NP = _pool_selectors()
A_NP = _conv2_tap_gather()


# ------------------------------ main kernel ----------------------------------
def _model_kernel(p1t_ref, w1_ref, b1_ref, sel_ref, wfin_ref, bfin_ref,
                  out_ref, pool_s, pimg_s):
    f32 = jnp.float32

    # ---- conv1 (3->6, 5x5, valid) + bias + ReLU : one MXU matmul ------------
    # p1t: (75, 256) im2col patches, column = n*128 + i*8 + j ; w1: (6, 75)
    v3t = jnp.maximum(
        jnp.dot(w1_ref[...], p1t_ref[...],
                preferred_element_type=f32, precision=_HI) + b1_ref[...],
        0.0)                                                     # (6, 256)

    # ---- 2x2 / stride-2 max-pool: 4 matmuls vs CONSTANT one-hot selectors ---
    picks = [jnp.dot(v3t, sel_ref[k], preferred_element_type=f32, precision=_HI)
             for k in range(4)]                                  # each (6, 64)
    pool_s[...] = jnp.maximum(jnp.maximum(picks[0], picks[1]),
                              jnp.maximum(picks[2], picks[3]))   # (6, 64)

    # ---- relayout (c, n*32+sp) -> (n, c*32+sp): 12 tiny static copies -------
    for n in range(N):
        for c in range(C1):
            pimg_s[n:n + 1, c * HWP:(c + 1) * HWP] = \
                pool_s[c:c + 1, n * HWP:(n + 1) * HWP]           # (2, 192)

    # ---- conv2(pad=1) + bias + flatten(v6) + flatten(v5) add: ONE matmul ----
    # wfin (192, 256) = (w2 contracted with the constant tap gather) + identity
    # (flatten(v5) term), lane-padded to 256.  Single lane-dense store.
    out_ref[...] = (jnp.dot(pimg_s[...], wfin_ref[...],
                            preferred_element_type=f32, precision=_HI)
                    + bfin_ref[...])                             # (2, 256)


# ------------------------------- wrapper --------------------------------------
@jax.jit
def model_forward(x, w1, b1, w2, b2):
    f32 = jnp.float32
    x = x.astype(f32)

    # conv1 im2col: one gather (+transpose/reshape) instead of 75 Python slices
    xr = x.reshape(N, C_IN, H_IN * W_IN)                         # (2, 3, 240)
    g = xr[:, :, SRC_NP]                                         # (2, 3, 25, 128)
    p1t = jnp.transpose(g, (1, 2, 0, 3)).reshape(KK1, NPOS1)     # (75, 256)

    w1r = w1.reshape(C1, KK1).astype(f32)                        # (6, 75)
    b1c = b1.reshape(C1, 1).astype(f32)                          # (6, 1)
    sel = jnp.asarray(SEL_NP)                                    # (4, 256, 64)

    # fused conv2 weight: wfin[c*32+sp, o*12+hw] = sum_t w2[o,c,t]*A[t,sp,hw]
    # plus an identity block for the flatten(v5) term; lane-padded to 256.
    w2r = w2.reshape(C2, C1, K * K).astype(f32)                  # (16, 6, 25)
    w4 = jnp.einsum('oct,tsh->csoh', w2r, jnp.asarray(A_NP),
                    precision=_HI).reshape(FLAT, FLAT)           # (192, 192)
    wfin = jnp.pad(w4 + jnp.eye(FLAT, dtype=f32),
                   ((0, 0), (0, FLAT_PAD - FLAT)))               # (192, 256)
    bfin = jnp.pad(jnp.repeat(b2.astype(f32), HW2),
                   (0, FLAT_PAD - FLAT)).reshape(1, FLAT_PAD)    # (1, 256)

    vmem = lambda: pl.BlockSpec(memory_space=pltpu.MemorySpace.VMEM)
    out = pl.pallas_call(
        _model_kernel,
        out_shape=jax.ShapeDtypeStruct((N, FLAT_PAD), f32),
        in_specs=[vmem() for _ in range(6)],
        out_specs=vmem(),
        scratch_shapes=[pltpu.VMEM((C1, NPOOL), f32),            # pooled map
                        pltpu.VMEM((N, FLAT), f32)],             # per-image flat
        cost_estimate=pl.CostEstimate(flops=1_213_440,
                                      transcendentals=0,
                                      bytes_accessed=540_448),
    )(p1t, w1r, b1c, sel, wfin, bfin)
    return out[:, :FLAT]                                         # (2, 192)


# ------------------------------ reference -------------------------------------
def reference(x, w1, b1, w2, b2):
    dn = ('NCHW', 'OIHW', 'NCHW')
    v1 = lax.conv_general_dilated(x, w1, (1, 1), 'VALID',
                                  dimension_numbers=dn, precision=_HI)
    v1 = v1 + b1[None, :, None, None]
    v3 = jnp.maximum(v1, 0.0)
    v5 = lax.reduce_window(v3, -jnp.inf, lax.max,
                           (1, 1, 2, 2), (1, 1, 2, 2), 'VALID')
    v6 = lax.conv_general_dilated(v5, w2, (1, 1), [(PAD, PAD), (PAD, PAD)],
                                  dimension_numbers=dn, precision=_HI)
    v6 = v6 + b2[None, :, None, None]
    return v6.reshape(N, -1) + v5.reshape(N, -1)


# --------------------------------- main ----------------------------------------
if __name__ == "__main__":
    key = jax.random.PRNGKey(0)
    kx, k1, k2, k3, k4 = jax.random.split(key, 5)
    x = jax.random.normal(kx, (N, C_IN, H_IN, W_IN), jnp.float32)
    w1 = jax.random.normal(k1, (C1, C_IN, K, K), jnp.float32) * 0.1
    b1 = jax.random.normal(k2, (C1,), jnp.float32) * 0.1
    w2 = jax.random.normal(k3, (C2, C1, K, K), jnp.float32) * 0.1
    b2 = jax.random.normal(k4, (C2,), jnp.float32) * 0.1

    out = model_forward(x, w1, b1, w2, b2)
    out = jax.block_until_ready(out)

    ref = reference(x, w1, b1, w2, b2)
    np.testing.assert_allclose(np.asarray(out), np.asarray(ref),
                               atol=1e-3, rtol=1e-3)
    print("KERNEL_OK")
</pallas_src>

<mosaic_0001>
module attributes {stable_mosaic.version = 11 : i64} {
  func.func @_model_kernel(%arg0: memref<75x256xf32, #tpu.memory_space<vmem>>, %arg1: memref<6x75xf32, #tpu.memory_space<vmem>>, %arg2: memref<6x1xf32, #tpu.memory_space<vmem>>, %arg3: memref<4x256x64xf32, #tpu.memory_space<vmem>>, %arg4: memref<192x256xf32, #tpu.memory_space<vmem>>, %arg5: memref<1x256xf32, #tpu.memory_space<vmem>>, %arg6: memref<2x256xf32, #tpu.memory_space<vmem>>, %arg7: memref<6x64xf32, #tpu.memory_space<vmem>>, %arg8: memref<2x192xf32, #tpu.memory_space<vmem>>) attributes {dimension_semantics = [], scalar_prefetch = 0 : i64, scratch_operands = 2 : i64, tpu.core_type = #tpu.core_type<tc>} {
    %c0 = arith.constant 0 : index
    %c0_0 = arith.constant 0 : index
    %0 = vector.load %arg1[%c0, %c0_0] : memref<6x75xf32, #tpu.memory_space<vmem>>, vector<6x75xf32>
    %c0_1 = arith.constant 0 : index
    %c0_2 = arith.constant 0 : index
    %1 = vector.load %arg0[%c0_1, %c0_2] : memref<75x256xf32, #tpu.memory_space<vmem>>, vector<75x256xf32>
    %cst = arith.constant dense<0.000000e+00> : vector<6x256xf32>
    %2 = tpu.matmul %0, %1, %cst {dimension_numbers = #tpu.dot_dimension_numbers<[1], [0], [0], [1], [0, 0, 1, 1], [], []>, precision = #tpu.contract_precision<fp32>} : vector<6x75xf32>, vector<75x256xf32>, vector<6x256xf32> -> vector<6x256xf32>
    %c0_3 = arith.constant 0 : index
    %c0_4 = arith.constant 0 : index
    %3 = vector.load %arg2[%c0_3, %c0_4] : memref<6x1xf32, #tpu.memory_space<vmem>>, vector<6x1xf32>
    %4 = vector.broadcast %3 : vector<6x1xf32> to vector<6x256xf32>
    %5 = arith.addf %2, %4 : vector<6x256xf32>
    %cst_5 = arith.constant 0.000000e+00 : f32
    %6 = vector.broadcast %cst_5 : f32 to vector<6x256xf32>
    %7 = arith.maximumf %5, %6 : vector<6x256xf32>
    %c0_6 = arith.constant 0 : index
    %c0_7 = arith.constant 0 : index
    %c0_8 = arith.constant 0 : index
    %8 = vector.load %arg3[%c0_6, %c0_7, %c0_8] : memref<4x256x64xf32, #tpu.memory_space<vmem>>, vector<1x256x64xf32>
    %9 = vector.shape_cast %8 : vector<1x256x64xf32> to vector<256x64xf32>
    %cst_9 = arith.constant dense<0.000000e+00> : vector<6x64xf32>
    %10 = tpu.matmul %7, %9, %cst_9 {dimension_numbers = #tpu.dot_dimension_numbers<[1], [0], [0], [1], [0, 0, 1, 1], [], []>, precision = #tpu.contract_precision<fp32>} : vector<6x256xf32>, vector<256x64xf32>, vector<6x64xf32> -> vector<6x64xf32>
    %c1 = arith.constant 1 : index
    %c0_10 = arith.constant 0 : index
    %c0_11 = arith.constant 0 : index
    %11 = vector.load %arg3[%c1, %c0_10, %c0_11] : memref<4x256x64xf32, #tpu.memory_space<vmem>>, vector<1x256x64xf32>
    %12 = vector.shape_cast %11 : vector<1x256x64xf32> to vector<256x64xf32>
    %cst_12 = arith.constant dense<0.000000e+00> : vector<6x64xf32>
    %13 = tpu.matmul %7, %12, %cst_12 {dimension_numbers = #tpu.dot_dimension_numbers<[1], [0], [0], [1], [0, 0, 1, 1], [], []>, precision = #tpu.contract_precision<fp32>} : vector<6x256xf32>, vector<256x64xf32>, vector<6x64xf32> -> vector<6x64xf32>
    %c2 = arith.constant 2 : index
    %c0_13 = arith.constant 0 : index
    %c0_14 = arith.constant 0 : index
    %14 = vector.load %arg3[%c2, %c0_13, %c0_14] : memref<4x256x64xf32, #tpu.memory_space<vmem>>, vector<1x256x64xf32>
    %15 = vector.shape_cast %14 : vector<1x256x64xf32> to vector<256x64xf32>
    %cst_15 = arith.constant dense<0.000000e+00> : vector<6x64xf32>
    %16 = tpu.matmul %7, %15, %cst_15 {dimension_numbers = #tpu.dot_dimension_numbers<[1], [0], [0], [1], [0, 0, 1, 1], [], []>, precision = #tpu.contract_precision<fp32>} : vector<6x256xf32>, vector<256x64xf32>, vector<6x64xf32> -> vector<6x64xf32>
    %c3 = arith.constant 3 : index
    %c0_16 = arith.constant 0 : index
    %c0_17 = arith.constant 0 : index
    %17 = vector.load %arg3[%c3, %c0_16, %c0_17] : memref<4x256x64xf32, #tpu.memory_space<vmem>>, vector<1x256x64xf32>
    %18 = vector.shape_cast %17 : vector<1x256x64xf32> to vector<256x64xf32>
    %cst_18 = arith.constant dense<0.000000e+00> : vector<6x64xf32>
    %19 = tpu.matmul %7, %18, %cst_18 {dimension_numbers = #tpu.dot_dimension_numbers<[1], [0], [0], [1], [0, 0, 1, 1], [], []>, precision = #tpu.contract_precision<fp32>} : vector<6x256xf32>, vector<256x64xf32>, vector<6x64xf32> -> vector<6x64xf32>
    %20 = arith.maximumf %10, %13 : vector<6x64xf32>
    %21 = arith.maximumf %16, %19 : vector<6x64xf32>
    %22 = arith.maximumf %20, %21 : vector<6x64xf32>
    %c0_19 = arith.constant 0 : index
    %c0_20 = arith.constant 0 : index
    %23 = vector.load %arg7[%c0_19, %c0_20] : memref<6x64xf32, #tpu.memory_space<vmem>>, vector<6x64xf32>
    tpu.vector_store %arg7[%c0_19, %c0_20], %22 {strides = array<i32>} : memref<6x64xf32, #tpu.memory_space<vmem>>, vector<6x64xf32>,
    %c0_21 = arith.constant 0 : index
    %c0_22 = arith.constant 0 : index
    %24 = vector.load %arg7[%c0_21, %c0_22] : memref<6x64xf32, #tpu.memory_space<vmem>>, vector<1x32xf32>
    %c0_23 = arith.constant 0 : index
    %c0_24 = arith.constant 0 : index
    %25 = vector.load %arg8[%c0_23, %c0_24] : memref<2x192xf32, #tpu.memory_space<vmem>>, vector<1x32xf32>
    tpu.vector_store %arg8[%c0_23, %c0_24], %24 {strides = array<i32>} : memref<2x192xf32, #tpu.memory_space<vmem>>, vector<1x32xf32>,
    %c1_25 = arith.constant 1 : index
    %c0_26 = arith.constant 0 : index
    %26 = vector.load %arg7[%c1_25, %c0_26] : memref<6x64xf32, #tpu.memory_space<vmem>>, vector<1x32xf32>
    %c0_27 = arith.constant 0 : index
    %c32 = arith.constant 32 : index
    %27 = vector.load %arg8[%c0_27, %c32] : memref<2x192xf32, #tpu.memory_space<vmem>>, vector<1x32xf32>
    tpu.vector_store %arg8[%c0_27, %c32], %26 {strides = array<i32>} : memref<2x192xf32, #tpu.memory_space<vmem>>, vector<1x32xf32>,
    %c2_28 = arith.constant 2 : index
    %c0_29 = arith.constant 0 : index
    %28 = vector.load %arg7[%c2_28, %c0_29] : memref<6x64xf32, #tpu.memory_space<vmem>>, vector<1x32xf32>
    %c0_30 = arith.constant 0 : index
    %c64 = arith.constant 64 : index
    %29 = vector.load %arg8[%c0_30, %c64] : memref<2x192xf32, #tpu.memory_space<vmem>>, vector<1x32xf32>
    tpu.vector_store %arg8[%c0_30, %c64], %28 {strides = array<i32>} : memref<2x192xf32, #tpu.memory_space<vmem>>, vector<1x32xf32>,
    %c3_31 = arith.constant 3 : index
    %c0_32 = arith.constant 0 : index
    %30 = vector.load %arg7[%c3_31, %c0_32] : memref<6x64xf32, #tpu.memory_space<vmem>>, vector<1x32xf32>
    %c0_33 = arith.constant 0 : index
    %c96 = arith.constant 96 : index
    %31 = vector.load %arg8[%c0_33, %c96] : memref<2x192xf32, #tpu.memory_space<vmem>>, vector<1x32xf32>
    tpu.vector_store %arg8[%c0_33, %c96], %30 {strides = array<i32>} : memref<2x192xf32, #tpu.memory_space<vmem>>, vector<1x32xf32>,
    %c4 = arith.constant 4 : index
    %c0_34 = arith.constant 0 : index
    %32 = vector.load %arg7[%c4, %c0_34] : memref<6x64xf32, #tpu.memory_space<vmem>>, vector<1x32xf32>
    %c0_35 = arith.constant 0 : index
    %c128 = arith.constant 128 : index
    %33 = vector.load %arg8[%c0_35, %c128] : memref<2x192xf32, #tpu.memory_space<vmem>>, vector<1x32xf32>
    tpu.vector_store %arg8[%c0_35, %c128], %32 {strides = array<i32>} : memref<2x192xf32, #tpu.memory_space<vmem>>, vector<1x32xf32>,
    %c5 = arith.constant 5 : index
    %c0_36 = arith.constant 0 : index
    %34 = vector.load %arg7[%c5, %c0_36] : memref<6x64xf32, #tpu.memory_space<vmem>>, vector<1x32xf32>
    %c0_37 = arith.constant 0 : index
    %c160 = arith.constant 160 : index
    %35 = vector.load %arg8[%c0_37, %c160] : memref<2x192xf32, #tpu.memory_space<vmem>>, vector<1x32xf32>
    tpu.vector_store %arg8[%c0_37, %c160], %34 {strides = array<i32>} : memref<2x192xf32, #tpu.memory_space<vmem>>, vector<1x32xf32>,
    %c0_38 = arith.constant 0 : index
    %c32_39 = arith.constant 32 : index
    %36 = vector.load %arg7[%c0_38, %c32_39] : memref<6x64xf32, #tpu.memory_space<vmem>>, vector<1x32xf32>
    %c1_40 = arith.constant 1 : index
    %c0_41 = arith.constant 0 : index
    %37 = vector.load %arg8[%c1_40, %c0_41] : memref<2x192xf32, #tpu.memory_space<vmem>>, vector<1x32xf32>
    tpu.vector_store %arg8[%c1_40, %c0_41], %36 {strides = array<i32>} : memref<2x192xf32, #tpu.memory_space<vmem>>, vector<1x32xf32>,
    %c1_42 = arith.constant 1 : index
    %c32_43 = arith.constant 32 : index
    %38 = vector.load %arg7[%c1_42, %c32_43] : memref<6x64xf32, #tpu.memory_space<vmem>>, vector<1x32xf32>
    %c1_44 = arith.constant 1 : index
    %c32_45 = arith.constant 32 : index
    %39 = vector.load %arg8[%c1_44, %c32_45] : memref<2x192xf32, #tpu.memory_space<vmem>>, vector<1x32xf32>
    tpu.vector_store %arg8[%c1_44, %c32_45], %38 {strides = array<i32>} : memref<2x192xf32, #tpu.memory_space<vmem>>, vector<1x32xf32>,
    %c2_46 = arith.constant 2 : index
    %c32_47 = arith.constant 32 : index
    %40 = vector.load %arg7[%c2_46, %c32_47] : memref<6x64xf32, #tpu.memory_space<vmem>>, vector<1x32xf32>
    %c1_48 = arith.constant 1 : index
    %c64_49 = arith.constant 64 : index
    %41 = vector.load %arg8[%c1_48, %c64_49] : memref<2x192xf32, #tpu.memory_space<vmem>>, vector<1x32xf32>
    tpu.vector_store %arg8[%c1_48, %c64_49], %40 {strides = array<i32>} : memref<2x192xf32, #tpu.memory_space<vmem>>, vector<1x32xf32>,
    %c3_50 = arith.constant 3 : index
    %c32_51 = arith.constant 32 : index
    %42 = vector.load %arg7[%c3_50, %c32_51] : memref<6x64xf32, #tpu.memory_space<vmem>>, vector<1x32xf32>
    %c1_52 = arith.constant 1 : index
    %c96_53 = arith.constant 96 : index
    %43 = vector.load %arg8[%c1_52, %c96_53] : memref<2x192xf32, #tpu.memory_space<vmem>>, vector<1x32xf32>
    tpu.vector_store %arg8[%c1_52, %c96_53], %42 {strides = array<i32>} : memref<2x192xf32, #tpu.memory_space<vmem>>, vector<1x32xf32>,
    %c4_54 = arith.constant 4 : index
    %c32_55 = arith.constant 32 : index
    %44 = vector.load %arg7[%c4_54, %c32_55] : memref<6x64xf32, #tpu.memory_space<vmem>>, vector<1x32xf32>
    %c1_56 = arith.constant 1 : index
    %c128_57 = arith.constant 128 : index
    %45 = vector.load %arg8[%c1_56, %c128_57] : memref<2x192xf32, #tpu.memory_space<vmem>>, vector<1x32xf32>
    tpu.vector_store %arg8[%c1_56, %c128_57], %44 {strides = array<i32>} : memref<2x192xf32, #tpu.memory_space<vmem>>, vector<1x32xf32>,
    %c5_58 = arith.constant 5 : index
    %c32_59 = arith.constant 32 : index
    %46 = vector.load %arg7[%c5_58, %c32_59] : memref<6x64xf32, #tpu.memory_space<vmem>>, vector<1x32xf32>
    %c1_60 = arith.constant 1 : index
    %c160_61 = arith.constant 160 : index
    %47 = vector.load %arg8[%c1_60, %c160_61] : memref<2x192xf32, #tpu.memory_space<vmem>>, vector<1x32xf32>
    tpu.vector_store %arg8[%c1_60, %c160_61], %46 {strides = array<i32>} : memref<2x192xf32, #tpu.memory_space<vmem>>, vector<1x32xf32>,
    %c0_62 = arith.constant 0 : index
    %c0_63 = arith.constant 0 : index
    %48 = vector.load %arg8[%c0_62, %c0_63] : memref<2x192xf32, #tpu.memory_space<vmem>>, vector<2x192xf32>
    %c0_64 = arith.constant 0 : index
    %c0_65 = arith.constant 0 : index
    %49 = vector.load %arg4[%c0_64, %c0_65] : memref<192x256xf32, #tpu.memory_space<vmem>>, vector<192x256xf32>
    %cst_66 = arith.constant dense<0.000000e+00> : vector<2x256xf32>
    %50 = tpu.matmul %48, %49, %cst_66 {dimension_numbers = #tpu.dot_dimension_numbers<[1], [0], [0], [1], [0, 0, 1, 1], [], []>, precision = #tpu.contract_precision<fp32>} : vector<2x192xf32>, vector<192x256xf32>, vector<2x256xf32> -> vector<2x256xf32>
    %c0_67 = arith.constant 0 : index
    %c0_68 = arith.constant 0 : index
    %51 = vector.load %arg5[%c0_67, %c0_68] : memref<1x256xf32, #tpu.memory_space<vmem>>, vector<1x256xf32>
    %52 = vector.broadcast %51 : vector<1x256xf32> to vector<2x256xf32>
    %53 = arith.addf %50, %52 : vector<2x256xf32>
    %c0_69 = arith.constant 0 : index
    %c0_70 = arith.constant 0 : index
    %54 = vector.load %arg6[%c0_69, %c0_70] : memref<2x256xf32, #tpu.memory_space<vmem>>, vector<2x256xf32>
    tpu.vector_store %arg6[%c0_69, %c0_70], %53 {strides = array<i32>} : memref<2x256xf32, #tpu.memory_space<vmem>>, vector<2x256xf32>,
    return
  }
}

</mosaic_0001>

<llo_original>
// kernel: model_forward.1
$region0: #{model_forward.1}
  #allocation0 [shape = 'u32[]', space=smem, size = 0x4, offset = 0x4, fixed_abs, tag = 'smem constant byte address 0x4 - core index']
  #allocation1 [shape = 'u32[72,128]{1,0:T(1,128)}', space=vmem, size = 0x9000, scoped, tag = 'internal scratch']
  #allocation2 [shape = 'f32[6,64]{1,0:T(8,128)}', space=vmem, size = 0x1000, scoped, tag = 'scratch operand']
  #allocation3 [shape = 'f32[2,192]{1,0:T(2,128)}', space=vmem, size = 0x800, scoped, tag = 'scratch operand']
  %s0 = inlined_call_operand.vmem [shape: f32[75,256], index: 0, kind: input, shape index: {}]
  %s1 = inlined_call_operand.vmem [shape: f32[6,75], index: 1, kind: input, shape index: {}]
  %s2 = inlined_call_operand.vmem [shape: f32[6,1], index: 2, kind: input, shape index: {}]
  %s3 = inlined_call_operand.vmem [shape: f32[4,256,64], index: 3, kind: input, shape index: {}]
  %s4 = inlined_call_operand.vmem [shape: f32[192,256], index: 4, kind: input, shape index: {}]
  %s5 = inlined_call_operand.vmem [shape: f32[1,256], index: 5, kind: input, shape index: {}]
  %s6 = inlined_call_operand.hbm [shape: f32[2,256], index: 6, kind: output, shape index: {}]
  %s7 = sld [smem:[#allocation0]]
  $region34: #{model_forward.1} parent=0
    _
  %s9 = ssub.s32 1, %s7
  %s10 = scalar_select 0, %s9, %s7
  $region1: #{model_forward.1} parent=0
    #allocation4 [shape = 'u8[2048]{0}', space=vmem, size = 0x800, scoped, tag = 'output window, operand 0, single buffered']
    #allocation5 [shape = 's32[1]{0}', space=sflag, size = 0x4, scoped, tag = 'scoped memory for model_forward.1']
    %11 = vsyncpa [#allocation5], 0
    // Predicated region
    $region2: #{model_forward.1} parent=1 // pred_check
      _
    $region3: #{model_forward.1} parent=1 // pred_check_branch
      %13 = sbr.rel (0) target = $region5
    $region4: #{model_forward.1} parent=1 // pred_region
      _
    $region5: #{model_forward.1} parent=1 // pred_fallthru
      _
    // Predicated region
    $region6: #{model_forward.1} parent=1 // pred_check
      _
    $region7: #{model_forward.1} parent=1 // pred_check_branch
      %15 = sbr.rel (0) target = $region9
    $region8: #{model_forward.1} parent=1 // pred_region
      _
    $region9: #{model_forward.1} parent=1 // pred_fallthru
      _
    // Predicated region
    $region10: #{model_forward.1} parent=1 // pred_check
      _
    $region11: #{model_forward.1} parent=1 // pred_check_branch
      %17 = sbr.rel (0) target = $region13
    $region12: #{model_forward.1} parent=1 // pred_region
      _
    $region13: #{model_forward.1} parent=1 // pred_fallthru
      _
    // Predicated region
    $region14: #{model_forward.1} parent=1 // pred_check
      _
    $region15: #{model_forward.1} parent=1 // pred_check_branch
      %19 = sbr.rel (0) target = $region17
    $region16: #{model_forward.1} parent=1 // pred_region
      _
    $region17: #{model_forward.1} parent=1 // pred_fallthru
      _
    // Predicated region
    $region18: #{model_forward.1} parent=1 // pred_check
      _
    $region19: #{model_forward.1} parent=1 // pred_check_branch
      %21 = sbr.rel (0) target = $region21
    $region20: #{model_forward.1} parent=1 // pred_region
      _
    $region21: #{model_forward.1} parent=1 // pred_fallthru
      _
    // Predicated region
    $region22: #{model_forward.1} parent=1 // pred_check
      _
    $region23: #{model_forward.1} parent=1 // pred_check_branch
      %23 = sbr.rel (0) target = $region25
    $region24: #{model_forward.1} parent=1 // pred_region
      _
    $region25: #{model_forward.1} parent=1 // pred_fallthru
      _
    %v24 = vld [vmem:[%s1] sm:$0x3f]
    %v25 = vld [vmem:[%s0] sm:$0xff]
    %v26 = vld [vmem:[%s0 + $0x8] sm:$0xff]
    %v27 = vld [vmem:[%s0 + $0x10] sm:$0xff]
    %v28 = vld [vmem:[%s0 + $0x18] sm:$0xff]
    %v29 = vld [vmem:[%s0 + $0x20] sm:$0xff]
    %v30 = vld [vmem:[%s0 + $0x28] sm:$0xff]
    %v31 = vld [vmem:[%s0 + $0x30] sm:$0xff]
    %v32 = vld [vmem:[%s0 + $0x38] sm:$0xff]
    %v33 = vld [vmem:[%s0 + $0x40] sm:$0xff]
    %v34 = vld [vmem:[%s0 + $0x48] sm:$0xff]
    %v35 = vld [vmem:[%s0 + $0x50] sm:$0xff]
    %v36 = vld [vmem:[%s0 + $0x58] sm:$0xff]
    %v37 = vld [vmem:[%s0 + $0x60] sm:$0xff]
    %v38 = vld [vmem:[%s0 + $0x68] sm:$0xff]
    %v39 = vld [vmem:[%s0 + $0x70] sm:$0xff]
    %v40 = vld [vmem:[%s0 + $0x78] sm:$0xff]
    %v41 = vld [vmem:[%s0 + $0x80] sm:$0xff]
    %v42 = vld [vmem:[%s0 + $0x88] sm:$0xff]
    %v43 = vld [vmem:[%s0 + $0x90] sm:$0x7]
    %v44 = vld [vmem:[%s0 + $0x98] sm:$0x7]
    %v45 = vld [vmem:[%s2] sm:$0x3f]
    %47 = vset.pattern.permute.xlu0 0
    %48 = vperm.xlu0 %47, %v45
    %v49 = vpop.permute.xlu0 %48
    %vm51 = vcmask 613376
    %v53 = vsel %vm51, %v24, 0
    %vm55 = vcmask 1042432
    %v57 = vsel %vm55, %v43, 0
    %v60 = vsel %vm55, %v44, 0
    %62 = vmatpush.msra.mxu0 0.0
    %63 = vmatpush.msra.mxu0 0.0
    %64 = vmatpush.msra.mxu0 0.0
    %65 = vmatpush.msra.mxu0 0.0
    %66 = vmatpush.msra.mxu0 0.0
    %67 = vmatpush.msra.mxu0 0.0
    %v68 = vand.u32 %v57, 4294901760
    %69 = vmatpush.msra.mxu0 %v68
    %v70 = vand.u32 %v41, 4294901760
    %71 = vmatpush.msra.mxu0 %v70
    %v72 = vand.u32 %v39, 4294901760
    %73 = vmatpush.msra.mxu0 %v72
    %v74 = vand.u32 %v37, 4294901760
    %75 = vmatpush.msra.mxu0 %v74
    %v76 = vand.u32 %v35, 4294901760
    %77 = vmatpush.msra.mxu0 %v76
    %v78 = vand.u32 %v33, 4294901760
    %79 = vmatpush.msra.mxu0 %v78
    %v80 = vand.u32 %v31, 4294901760
    %81 = vmatpush.msra.mxu0 %v80
    %v82 = vand.u32 %v29, 4294901760
    %83 = vmatpush.msra.mxu0 %v82
    %v84 = vand.u32 %v27, 4294901760
    %85 = vmatpush.msra.mxu0 %v84
    %v86 = vand.u32 %v25, 4294901760
    %87 = vmatpush.msra.mxu0 %v86
    %v88 = vand.u32 %v53, 4294901760
    %v89 = vsub.f32 %v53, %v88
    %v90 = vand.u32 %v89, 4294901760
    %v91 = vsub.f32 %v89, %v90
    %v92 = vand.u32 %v91, 4294901760
    %93 = vmatmul.f32.gmra.mxu0 %v92
    %v94 = vpop.f32.mrf.mxu0
    %v95 = vadd.f32 %v49, %v94
    %96 = vdwg.mxu0
    %97 = vmatpush.msra.mxu0 0.0
    %98 = vmatpush.msra.mxu0 0.0
    %99 = vmatpush.msra.mxu0 0.0
    %100 = vmatpush.msra.mxu0 0.0
    %101 = vmatpush.msra.mxu0 0.0
    %102 = vmatpush.msra.mxu0 0.0
    %v103 = vand.u32 %v57, 4294901760
    %v104 = vsub.f32 %v57, %v103
    %v105 = vand.u32 %v104, 4294901760
    %v106 = vsub.f32 %v104, %v105
    %v107 = vand.u32 %v106, 4294901760
    %108 = vmatpush.msra.mxu0 %v107
    %v109 = vand.u32 %v41, 4294901760
    %v110 = vsub.f32 %v41, %v109
    %v111 = vand.u32 %v110, 4294901760
    %v112 = vsub.f32 %v110, %v111
    %v113 = vand.u32 %v112, 4294901760
    %114 = vmatpush.msra.mxu0 %v113
    %v115 = vand.u32 %v39, 4294901760
    %v116 = vsub.f32 %v39, %v115
    %v117 = vand.u32 %v116, 4294901760
    %v118 = vsub.f32 %v116, %v117
    %v119 = vand.u32 %v118, 4294901760
    %120 = vmatpush.msra.mxu0 %v119
    %v121 = vand.u32 %v37, 4294901760
    %v122 = vsub.f32 %v37, %v121
    %v123 = vand.u32 %v122, 4294901760
    %v124 = vsub.f32 %v122, %v123
    %v125 = vand.u32 %v124, 4294901760
    %126 = vmatpush.msra.mxu0 %v125
    %v127 = vand.u32 %v35, 4294901760
    %v128 = vsub.f32 %v35, %v127
    %v129 = vand.u32 %v128, 4294901760
    %v130 = vsub.f32 %v128, %v129
    %v131 = vand.u32 %v130, 4294901760
    %132 = vmatpush.msra.mxu0 %v131
    %v133 = vand.u32 %v33, 4294901760
    %v134 = vsub.f32 %v33, %v133
    %v135 = vand.u32 %v134, 4294901760
    %v136 = vsub.f32 %v134, %v135
    %v137 = vand.u32 %v136, 4294901760
    %138 = vmatpush.msra.mxu0 %v137
    %v139 = vand.u32 %v31, 4294901760
    %v140 = vsub.f32 %v31, %v139
    %v141 = vand.u32 %v140, 4294901760
    %v142 = vsub.f32 %v140, %v141
    %v143 = vand.u32 %v142, 4294901760
    %144 = vmatpush.msra.mxu0 %v143
    %v145 = vand.u32 %v29, 4294901760
    %v146 = vsub.f32 %v29, %v145
    %v147 = vand.u32 %v146, 4294901760
    %v148 = vsub.f32 %v146, %v147
    %v149 = vand.u32 %v148, 4294901760
    %150 = vmatpush.msra.mxu0 %v149
    %v151 = vand.u32 %v27, 4294901760
    %v152 = vsub.f32 %v27, %v151
    %v153 = vand.u32 %v152, 4294901760
    %v154 = vsub.f32 %v152, %v153
    %v155 = vand.u32 %v154, 4294901760
    %156 = vmatpush.msra.mxu0 %v155
    %v157 = vand.u32 %v25, 4294901760
    %v158 = vsub.f32 %v25, %v157
    %v159 = vand.u32 %v158, 4294901760
    %v160 = vsub.f32 %v158, %v159
    %v161 = vand.u32 %v160, 4294901760
    %162 = vmatpush.msra.mxu0 %v161
    %v163 = vand.u32 %v53, 4294901760
    %164 = vmatmul.f32.gmra.mxu0 %v163
    %v165 = vpop.f32.mrf.mxu0
    %v166 = vadd.f32 %v95, %v165
    %167 = vdwg.mxu0
    %168 = vmatpush.msra.mxu0 0.0
    %169 = vmatpush.msra.mxu0 0.0
    %170 = vmatpush.msra.mxu0 0.0
    %171 = vmatpush.msra.mxu0 0.0
    %172 = vmatpush.msra.mxu0 0.0
    %173 = vmatpush.msra.mxu0 0.0
    %v174 = vand.u32 %v57, 4294901760
    %v175 = vsub.f32 %v57, %v174
    %176 = vmatpush.msra.mxu0 %v175
    %v177 = vand.u32 %v41, 4294901760
    %v178 = vsub.f32 %v41, %v177
    %179 = vmatpush.msra.mxu0 %v178
    %v180 = vand.u32 %v39, 4294901760
    %v181 = vsub.f32 %v39, %v180
    %182 = vmatpush.msra.mxu0 %v181
    %v183 = vand.u32 %v37, 4294901760
    %v184 = vsub.f32 %v37, %v183
    %185 = vmatpush.msra.mxu0 %v184
    %v186 = vand.u32 %v35, 4294901760
    %v187 = vsub.f32 %v35, %v186
    %188 = vmatpush.msra.mxu0 %v187
    %v189 = vand.u32 %v33, 4294901760
    %v190 = vsub.f32 %v33, %v189
    %191 = vmatpush.msra.mxu0 %v190
    %v192 = vand.u32 %v31, 4294901760
    %v193 = vsub.f32 %v31, %v192
    %194 = vmatpush.msra.mxu0 %v193
    %v195 = vand.u32 %v29, 4294901760
    %v196 = vsub.f32 %v29, %v195
    %197 = vmatpush.msra.mxu0 %v196
    %v198 = vand.u32 %v27, 4294901760
    %v199 = vsub.f32 %v27, %v198
    %200 = vmatpush.msra.mxu0 %v199
    %v201 = vand.u32 %v25, 4294901760
    %v202 = vsub.f32 %v25, %v201
    %203 = vmatpush.msra.mxu0 %v202
    %v204 = vand.u32 %v53, 4294901760
    %v205 = vsub.f32 %v53, %v204
    %206 = vmatmul.f32.gmra.mxu0 %v205
    %v207 = vpop.f32.mrf.mxu0
    %v208 = vadd.f32 %v166, %v207
    %209 = vdwg.mxu0
    %210 = vmatpush.msra.mxu0 0.0
    %211 = vmatpush.msra.mxu0 0.0
    %212 = vmatpush.msra.mxu0 0.0
    %213 = vmatpush.msra.mxu0 0.0
    %214 = vmatpush.msra.mxu0 0.0
    %215 = vmatpush.msra.mxu0 0.0
    %v216 = vand.u32 %v57, 4294901760
    %217 = vmatpush.msra.mxu0 %v216
    %v218 = vand.u32 %v41, 4294901760
    %219 = vmatpush.msra.mxu0 %v218
    %v220 = vand.u32 %v39, 4294901760
    %221 = vmatpush.msra.mxu0 %v220
    %v222 = vand.u32 %v37, 4294901760
    %223 = vmatpush.msra.mxu0 %v222
    %v224 = vand.u32 %v35, 4294901760
    %225 = vmatpush.msra.mxu0 %v224
    %v226 = vand.u32 %v33, 4294901760
    %227 = vmatpush.msra.mxu0 %v226
    %v228 = vand.u32 %v31, 4294901760
    %229 = vmatpush.msra.mxu0 %v228
    %v230 = vand.u32 %v29, 4294901760
    %231 = vmatpush.msra.mxu0 %v230
    %v232 = vand.u32 %v27, 4294901760
    %233 = vmatpush.msra.mxu0 %v232
    %v234 = vand.u32 %v25, 4294901760
    %235 = vmatpush.msra.mxu0 %v234
    %v236 = vand.u32 %v53, 4294901760
    %v237 = vsub.f32 %v53, %v236
    %v238 = vand.u32 %v237, 4294901760
    %239 = vmatmul.f32.gmra.mxu0 %v238
    %v240 = vpop.f32.mrf.mxu0
    %v241 = vadd.f32 %v208, %v240
    %242 = vdwg.mxu0
    %243 = vmatpush.msra.mxu0 0.0
    %244 = vmatpush.msra.mxu0 0.0
    %245 = vmatpush.msra.mxu0 0.0
    %246 = vmatpush.msra.mxu0 0.0
    %247 = vmatpush.msra.mxu0 0.0
    %248 = vmatpush.msra.mxu0 0.0
    %v249 = vand.u32 %v57, 4294901760
    %v250 = vsub.f32 %v57, %v249
    %v251 = vand.u32 %v250, 4294901760
    %252 = vmatpush.msra.mxu0 %v251
    %v253 = vand.u32 %v41, 4294901760
    %v254 = vsub.f32 %v41, %v253
    %v255 = vand.u32 %v254, 4294901760
    %256 = vmatpush.msra.mxu0 %v255
    %v257 = vand.u32 %v39, 4294901760
    %v258 = vsub.f32 %v39, %v257
    %v259 = vand.u32 %v258, 4294901760
    %260 = vmatpush.msra.mxu0 %v259
    %v261 = vand.u32 %v37, 4294901760
    %v262 = vsub.f32 %v37, %v261
    %v263 = vand.u32 %v262, 4294901760
    %264 = vmatpush.msra.mxu0 %v263
    %v265 = vand.u32 %v35, 4294901760
    %v266 = vsub.f32 %v35, %v265
    %v267 = vand.u32 %v266, 4294901760
    %268 = vmatpush.msra.mxu0 %v267
    %v269 = vand.u32 %v33, 4294901760
    %v270 = vsub.f32 %v33, %v269
    %v271 = vand.u32 %v270, 4294901760
    %272 = vmatpush.msra.mxu0 %v271
    %v273 = vand.u32 %v31, 4294901760
    %v274 = vsub.f32 %v31, %v273
    %v275 = vand.u32 %v274, 4294901760
    %276 = vmatpush.msra.mxu0 %v275
    %v277 = vand.u32 %v29, 4294901760
    %v278 = vsub.f32 %v29, %v277
    %v279 = vand.u32 %v278, 4294901760
    %280 = vmatpush.msra.mxu0 %v279
    %v281 = vand.u32 %v27, 4294901760
    %v282 = vsub.f32 %v27, %v281
    %v283 = vand.u32 %v282, 4294901760
    %284 = vmatpush.msra.mxu0 %v283
    %v285 = vand.u32 %v25, 4294901760
    %v286 = vsub.f32 %v25, %v285
    %v287 = vand.u32 %v286, 4294901760
    %288 = vmatpush.msra.mxu0 %v287
    %v289 = vand.u32 %v53, 4294901760
    %290 = vmatmul.f32.gmra.mxu0 %v289
    %v291 = vpop.f32.mrf.mxu0
    %v292 = vadd.f32 %v241, %v291
    %293 = vdwg.mxu0
    %294 = vmatpush.msra.mxu0 0.0
    %295 = vmatpush.msra.mxu0 0.0
    %296 = vmatpush.msra.mxu0 0.0
    %297 = vmatpush.msra.mxu0 0.0
    %298 = vmatpush.msra.mxu0 0.0
    %299 = vmatpush.msra.mxu0 0.0
    %v300 = vand.u32 %v57, 4294901760
    %301 = vmatpush.msra.mxu0 %v300
    %v302 = vand.u32 %v41, 4294901760
    %303 = vmatpush.msra.mxu0 %v302
    %v304 = vand.u32 %v39, 4294901760
    %305 = vmatpush.msra.mxu0 %v304
    %v306 = vand.u32 %v37, 4294901760
    %307 = vmatpush.msra.mxu0 %v306
    %v308 = vand.u32 %v35, 4294901760
    %309 = vmatpush.msra.mxu0 %v308
    %v310 = vand.u32 %v33, 4294901760
    %311 = vmatpush.msra.mxu0 %v310
    %v312 = vand.u32 %v31, 4294901760
    %313 = vmatpush.msra.mxu0 %v312
    %v314 = vand.u32 %v29, 4294901760
    %315 = vmatpush.msra.mxu0 %v314
    %v316 = vand.u32 %v27, 4294901760
    %317 = vmatpush.msra.mxu0 %v316
    %v318 = vand.u32 %v25, 4294901760
    %319 = vmatpush.msra.mxu0 %v318
    %v320 = vand.u32 %v53, 4294901760
    %321 = vmatmul.f32.gmra.mxu0 %v320
    %v322 = vpop.f32.mrf.mxu0
    %v323 = vadd.f32 %v292, %v322
    %324 = vdwg.mxu0
    %325 = vmatpush.msra.mxu0 0.0
    %326 = vmatpush.msra.mxu0 0.0
    %327 = vmatpush.msra.mxu0 0.0
    %328 = vmatpush.msra.mxu0 0.0
    %329 = vmatpush.msra.mxu0 0.0
    %330 = vmatpush.msra.mxu0 0.0
    %v331 = vand.u32 %v60, 4294901760
    %332 = vmatpush.msra.mxu0 %v331
    %v333 = vand.u32 %v42, 4294901760
    %334 = vmatpush.msra.mxu0 %v333
    %v335 = vand.u32 %v40, 4294901760
    %336 = vmatpush.msra.mxu0 %v335
    %v337 = vand.u32 %v38, 4294901760
    %338 = vmatpush.msra.mxu0 %v337
    %v339 = vand.u32 %v36, 4294901760
    %340 = vmatpush.msra.mxu0 %v339
    %v341 = vand.u32 %v34, 4294901760
    %342 = vmatpush.msra.mxu0 %v341
    %v343 = vand.u32 %v32, 4294901760
    %344 = vmatpush.msra.mxu0 %v343
    %v345 = vand.u32 %v30, 4294901760
    %346 = vmatpush.msra.mxu0 %v345
    %v347 = vand.u32 %v28, 4294901760
    %348 = vmatpush.msra.mxu0 %v347
    %v349 = vand.u32 %v26, 4294901760
    %350 = vmatpush.msra.mxu0 %v349
    %v351 = vand.u32 %v53, 4294901760
    %v352 = vsub.f32 %v53, %v351
    %v353 = vand.u32 %v352, 4294901760
    %v354 = vsub.f32 %v352, %v353
    %v355 = vand.u32 %v354, 4294901760
    %356 = vmatmul.f32.gmra.mxu0 %v355
    %v357 = vpop.f32.mrf.mxu0
    %v358 = vadd.f32 %v49, %v357
    %359 = vdwg.mxu0
    %360 = vmatpush.msra.mxu0 0.0
    %361 = vmatpush.msra.mxu0 0.0
    %362 = vmatpush.msra.mxu0 0.0
    %363 = vmatpush.msra.mxu0 0.0
    %364 = vmatpush.msra.mxu0 0.0
    %365 = vmatpush.msra.mxu0 0.0
    %v366 = vand.u32 %v60, 4294901760
    %v367 = vsub.f32 %v60, %v366
    %v368 = vand.u32 %v367, 4294901760
    %v369 = vsub.f32 %v367, %v368
    %v370 = vand.u32 %v369, 4294901760
    %371 = vmatpush.msra.mxu0 %v370
    %v372 = vand.u32 %v42, 4294901760
    %v373 = vsub.f32 %v42, %v372
    %v374 = vand.u32 %v373, 4294901760
    %v375 = vsub.f32 %v373, %v374
    %v376 = vand.u32 %v375, 4294901760
    %377 = vmatpush.msra.mxu0 %v376
    %v378 = vand.u32 %v40, 4294901760
    %v379 = vsub.f32 %v40, %v378
    %v380 = vand.u32 %v379, 4294901760
    %v381 = vsub.f32 %v379, %v380
    %v382 = vand.u32 %v381, 4294901760
    %383 = vmatpush.msra.mxu0 %v382
    %v384 = vand.u32 %v38, 4294901760
    %v385 = vsub.f32 %v38, %v384
    %v386 = vand.u32 %v385, 4294901760
    %v387 = vsub.f32 %v385, %v386
    %v388 = vand.u32 %v387, 4294901760
    %389 = vmatpush.msra.mxu0 %v388
    %v390 = vand.u32 %v36, 4294901760
    %v391 = vsub.f32 %v36, %v390
    %v392 = vand.u32 %v391, 4294901760
    %v393 = vsub.f32 %v391, %v392
    %v394 = vand.u32 %v393, 4294901760
    %395 = vmatpush.msra.mxu0 %v394
    %v396 = vand.u32 %v34, 4294901760
    %v397 = vsub.f32 %v34, %v396
    %v398 = vand.u32 %v397, 4294901760
    %v399 = vsub.f32 %v397, %v398
    %v400 = vand.u32 %v399, 4294901760
    %401 = vmatpush.msra.mxu0 %v400
    %v402 = vand.u32 %v32, 4294901760
    %v403 = vsub.f32 %v32, %v402
    %v404 = vand.u32 %v403, 4294901760
    %v405 = vsub.f32 %v403, %v404
    %v406 = vand.u32 %v405, 4294901760
    %407 = vmatpush.msra.mxu0 %v406
    %v408 = vand.u32 %v30, 4294901760
    %v409 = vsub.f32 %v30, %v408
    %v410 = vand.u32 %v409, 4294901760
    %v411 = vsub.f32 %v409, %v410
    %v412 = vand.u32 %v411, 4294901760
    %413 = vmatpush.msra.mxu0 %v412
    %v414 = vand.u32 %v28, 4294901760
    %v415 = vsub.f32 %v28, %v414
    %v416 = vand.u32 %v415, 4294901760
    %v417 = vsub.f32 %v415, %v416
    %v418 = vand.u32 %v417, 4294901760
    %419 = vmatpush.msra.mxu0 %v418
    %v420 = vand.u32 %v26, 4294901760
    %v421 = vsub.f32 %v26, %v420
    %v422 = vand.u32 %v421, 4294901760
    %v423 = vsub.f32 %v421, %v422
    %v424 = vand.u32 %v423, 4294901760
    %425 = vmatpush.msra.mxu0 %v424
    %v426 = vand.u32 %v53, 4294901760
    %427 = vmatmul.f32.gmra.mxu0 %v426
    %v428 = vpop.f32.mrf.mxu0
    %v429 = vadd.f32 %v358, %v428
    %430 = vdwg.mxu0
    %431 = vmatpush.msra.mxu0 0.0
    %432 = vmatpush.msra.mxu0 0.0
    %433 = vmatpush.msra.mxu0 0.0
    %434 = vmatpush.msra.mxu0 0.0
    %435 = vmatpush.msra.mxu0 0.0
    %436 = vmatpush.msra.mxu0 0.0
    %v437 = vand.u32 %v60, 4294901760
    %v438 = vsub.f32 %v60, %v437
    %439 = vmatpush.msra.mxu0 %v438
    %v440 = vand.u32 %v42, 4294901760
    %v441 = vsub.f32 %v42, %v440
    %442 = vmatpush.msra.mxu0 %v441
    %v443 = vand.u32 %v40, 4294901760
    %v444 = vsub.f32 %v40, %v443
    %445 = vmatpush.msra.mxu0 %v444
    %v446 = vand.u32 %v38, 4294901760
    %v447 = vsub.f32 %v38, %v446
    %448 = vmatpush.msra.mxu0 %v447
    %v449 = vand.u32 %v36, 4294901760
    %v450 = vsub.f32 %v36, %v449
    %451 = vmatpush.msra.mxu0 %v450
    %v452 = vand.u32 %v34, 4294901760
    %v453 = vsub.f32 %v34, %v452
    %454 = vmatpush.msra.mxu0 %v453
    %v455 = vand.u32 %v32, 4294901760
    %v456 = vsub.f32 %v32, %v455
    %457 = vmatpush.msra.mxu0 %v456
    %v458 = vand.u32 %v30, 4294901760
    %v459 = vsub.f32 %v30, %v458
    %460 = vmatpush.msra.mxu0 %v459
    %v461 = vand.u32 %v28, 4294901760
    %v462 = vsub.f32 %v28, %v461
    %463 = vmatpush.msra.mxu0 %v462
    %v464 = vand.u32 %v26, 4294901760
    %v465 = vsub.f32 %v26, %v464
    %466 = vmatpush.msra.mxu0 %v465
    %v467 = vand.u32 %v53, 4294901760
    %v468 = vsub.f32 %v53, %v467
    %469 = vmatmul.f32.gmra.mxu0 %v468
    %v470 = vpop.f32.mrf.mxu0
    %v471 = vadd.f32 %v429, %v470
    %472 = vdwg.mxu0
    %473 = vmatpush.msra.mxu0 0.0
    %474 = vmatpush.msra.mxu0 0.0
    %475 = vmatpush.msra.mxu0 0.0
    %476 = vmatpush.msra.mxu0 0.0
    %477 = vmatpush.msra.mxu0 0.0
    %478 = vmatpush.msra.mxu0 0.0
    %v479 = vand.u32 %v60, 4294901760
    %480 = vmatpush.msra.mxu0 %v479
    %v481 = vand.u32 %v42, 4294901760
    %482 = vmatpush.msra.mxu0 %v481
    %v483 = vand.u32 %v40, 4294901760
    %484 = vmatpush.msra.mxu0 %v483
    %v485 = vand.u32 %v38, 4294901760
    %486 = vmatpush.msra.mxu0 %v485
    %v487 = vand.u32 %v36, 4294901760
    %488 = vmatpush.msra.mxu0 %v487
    %v489 = vand.u32 %v34, 4294901760
    %490 = vmatpush.msra.mxu0 %v489
    %v491 = vand.u32 %v32, 4294901760
    %492 = vmatpush.msra.mxu0 %v491
    %v493 = vand.u32 %v30, 4294901760
    %494 = vmatpush.msra.mxu0 %v493
    %v495 = vand.u32 %v28, 4294901760
    %496 = vmatpush.msra.mxu0 %v495
    %v497 = vand.u32 %v26, 4294901760
    %498 = vmatpush.msra.mxu0 %v497
    %v499 = vand.u32 %v53, 4294901760
    %v500 = vsub.f32 %v53, %v499
    %v501 = vand.u32 %v500, 4294901760
    %502 = vmatmul.f32.gmra.mxu0 %v501
    %v503 = vpop.f32.mrf.mxu0
    %v504 = vadd.f32 %v471, %v503
    %505 = vdwg.mxu0
    %506 = vmatpush.msra.mxu0 0.0
    %507 = vmatpush.msra.mxu0 0.0
    %508 = vmatpush.msra.mxu0 0.0
    %509 = vmatpush.msra.mxu0 0.0
    %510 = vmatpush.msra.mxu0 0.0
    %511 = vmatpush.msra.mxu0 0.0
    %v512 = vand.u32 %v60, 4294901760
    %v513 = vsub.f32 %v60, %v512
    %v514 = vand.u32 %v513, 4294901760
    %515 = vmatpush.msra.mxu0 %v514
    %v516 = vand.u32 %v42, 4294901760
    %v517 = vsub.f32 %v42, %v516
    %v518 = vand.u32 %v517, 4294901760
    %519 = vmatpush.msra.mxu0 %v518
    %v520 = vand.u32 %v40, 4294901760
    %v521 = vsub.f32 %v40, %v520
    %v522 = vand.u32 %v521, 4294901760
    %523 = vmatpush.msra.mxu0 %v522
    %v524 = vand.u32 %v38, 4294901760
    %v525 = vsub.f32 %v38, %v524
    %v526 = vand.u32 %v525, 4294901760
    %527 = vmatpush.msra.mxu0 %v526
    %v528 = vand.u32 %v36, 4294901760
    %v529 = vsub.f32 %v36, %v528
    %v530 = vand.u32 %v529, 4294901760
    %531 = vmatpush.msra.mxu0 %v530
    %v532 = vand.u32 %v34, 4294901760
    %v533 = vsub.f32 %v34, %v532
    %v534 = vand.u32 %v533, 4294901760
    %535 = vmatpush.msra.mxu0 %v534
    %v536 = vand.u32 %v32, 4294901760
    %v537 = vsub.f32 %v32, %v536
    %v538 = vand.u32 %v537, 4294901760
    %539 = vmatpush.msra.mxu0 %v538
    %v540 = vand.u32 %v30, 4294901760
    %v541 = vsub.f32 %v30, %v540
    %v542 = vand.u32 %v541, 4294901760
    %543 = vmatpush.msra.mxu0 %v542
    %v544 = vand.u32 %v28, 4294901760
    %v545 = vsub.f32 %v28, %v544
    %v546 = vand.u32 %v545, 4294901760
    %547 = vmatpush.msra.mxu0 %v546
    %v548 = vand.u32 %v26, 4294901760
    %v549 = vsub.f32 %v26, %v548
    %v550 = vand.u32 %v549, 4294901760
    %551 = vmatpush.msra.mxu0 %v550
    %v552 = vand.u32 %v53, 4294901760
    %553 = vmatmul.f32.gmra.mxu0 %v552
    %v554 = vpop.f32.mrf.mxu0
    %v555 = vadd.f32 %v504, %v554
    %556 = vdwg.mxu0
    %557 = vmatpush.msra.mxu0 0.0
    %558 = vmatpush.msra.mxu0 0.0
    %559 = vmatpush.msra.mxu0 0.0
    %560 = vmatpush.msra.mxu0 0.0
    %561 = vmatpush.msra.mxu0 0.0
    %562 = vmatpush.msra.mxu0 0.0
    %v563 = vand.u32 %v60, 4294901760
    %564 = vmatpush.msra.mxu0 %v563
    %v565 = vand.u32 %v42, 4294901760
    %566 = vmatpush.msra.mxu0 %v565
    %v567 = vand.u32 %v40, 4294901760
    %568 = vmatpush.msra.mxu0 %v567
    %v569 = vand.u32 %v38, 4294901760
    %570 = vmatpush.msra.mxu0 %v569
    %v571 = vand.u32 %v36, 4294901760
    %572 = vmatpush.msra.mxu0 %v571
    %v573 = vand.u32 %v34, 4294901760
    %574 = vmatpush.msra.mxu0 %v573
    %v575 = vand.u32 %v32, 4294901760
    %576 = vmatpush.msra.mxu0 %v575
    %v577 = vand.u32 %v30, 4294901760
    %578 = vmatpush.msra.mxu0 %v577
    %v579 = vand.u32 %v28, 4294901760
    %580 = vmatpush.msra.mxu0 %v579
    %v581 = vand.u32 %v26, 4294901760
    %582 = vmatpush.msra.mxu0 %v581
    %v583 = vand.u32 %v53, 4294901760
    %584 = vmatmul.f32.gmra.mxu0 %v583
    %v585 = vpop.f32.mrf.mxu0
    %v586 = vadd.f32 %v555, %v585
    %587 = vdwg.mxu0
    %v588 = vmax.f32 %v323, 0.0
    %v589 = vmax.f32 %v586, 0.0
    %v590 = vld [vmem:[%s3] sm:$0xff]
    %v591 = vld [vmem:[%s3 + $0x8] sm:$0xff]
    %v592 = vld [vmem:[%s3 + $0x10] sm:$0xff]
    %v593 = vld [vmem:[%s3 + $0x18] sm:$0xff]
    %v594 = vld [vmem:[%s3 + $0x20] sm:$0xff]
    %v595 = vld [vmem:[%s3 + $0x28] sm:$0xff]
    %v596 = vld [vmem:[%s3 + $0x30] sm:$0xff]
    %v597 = vld [vmem:[%s3 + $0x38] sm:$0xff]
    %v598 = vld [vmem:[%s3 + $0x40] sm:$0xff]
    %v599 = vld [vmem:[%s3 + $0x48] sm:$0xff]
    %v600 = vld [vmem:[%s3 + $0x50] sm:$0xff]
    %v601 = vld [vmem:[%s3 + $0x58] sm:$0xff]
    %v602 = vld [vmem:[%s3 + $0x60] sm:$0xff]
    %v603 = vld [vmem:[%s3 + $0x68] sm:$0xff]
    %v604 = vld [vmem:[%s3 + $0x70] sm:$0xff]
    %v605 = vld [vmem:[%s3 + $0x78] sm:$0xff]
    %v606 = vld [vmem:[%s3 + $0x80] sm:$0xff]
    %v607 = vld [vmem:[%s3 + $0x88] sm:$0xff]
    %v608 = vld [vmem:[%s3 + $0x90] sm:$0xff]
    %v609 = vld [vmem:[%s3 + $0x98] sm:$0xff]
    %v610 = vld [vmem:[%s3 + $0xa0] sm:$0xff]
    %v611 = vld [vmem:[%s3 + $0xa8] sm:$0xff]
    %v612 = vld [vmem:[%s3 + $0xb0] sm:$0xff]
    %v613 = vld [vmem:[%s3 + $0xb8] sm:$0xff]
    %v614 = vld [vmem:[%s3 + $0xc0] sm:$0xff]
    %v615 = vld [vmem:[%s3 + $0xc8] sm:$0xff]
    %v616 = vld [vmem:[%s3 + $0xd0] sm:$0xff]
    %v617 = vld [vmem:[%s3 + $0xd8] sm:$0xff]
    %v618 = vld [vmem:[%s3 + $0xe0] sm:$0xff]
    %v619 = vld [vmem:[%s3 + $0xe8] sm:$0xff]
    %v620 = vld [vmem:[%s3 + $0xf0] sm:$0xff]
    %v621 = vld [vmem:[%s3 + $0xf8] sm:$0xff]
    %v622 = vand.u32 %v605, 4294901760
    %623 = vmatpush.msra.mxu0 %v622
    %v624 = vand.u32 %v604, 4294901760
    %625 = vmatpush.msra.mxu0 %v624
    %v626 = vand.u32 %v603, 4294901760
    %627 = vmatpush.msra.mxu0 %v626
    %v628 = vand.u32 %v602, 4294901760
    %629 = vmatpush.msra.mxu0 %v628
    %v630 = vand.u32 %v601, 4294901760
    %631 = vmatpush.msra.mxu0 %v630
    %v632 = vand.u32 %v600, 4294901760
    %633 = vmatpush.msra.mxu0 %v632
    %v634 = vand.u32 %v599, 4294901760
    %635 = vmatpush.msra.mxu0 %v634
    %v636 = vand.u32 %v598, 4294901760
    %637 = vmatpush.msra.mxu0 %v636
    %v638 = vand.u32 %v597, 4294901760
    %639 = vmatpush.msra.mxu0 %v638
    %v640 = vand.u32 %v596, 4294901760
    %641 = vmatpush.msra.mxu0 %v640
    %v642 = vand.u32 %v595, 4294901760
    %643 = vmatpush.msra.mxu0 %v642
    %v644 = vand.u32 %v594, 4294901760
    %645 = vmatpush.msra.mxu0 %v644
    %v646 = vand.u32 %v593, 4294901760
    %647 = vmatpush.msra.mxu0 %v646
    %v648 = vand.u32 %v592, 4294901760
    %649 = vmatpush.msra.mxu0 %v648
    %v650 = vand.u32 %v591, 4294901760
    %651 = vmatpush.msra.mxu0 %v650
    %v652 = vand.u32 %v590, 4294901760
    %653 = vmatpush.msra.mxu0 %v652
    %v654 = vand.u32 %v588, 4294901760
    %v655 = vsub.f32 %v588, %v654
    %v656 = vand.u32 %v655, 4294901760
    %v657 = vsub.f32 %v655, %v656
    %v658 = vand.u32 %v657, 4294901760
    %659 = vmatmul.f32.gmra.mxu0 %v658
    %v660 = vpop.f32.mrf.mxu0
    %v661 = vadd.f32 0.0, %v660
    %662 = vdwg.mxu0
    %v663 = vand.u32 %v605, 4294901760
    %v664 = vsub.f32 %v605, %v663
    %v665 = vand.u32 %v664, 4294901760
    %v666 = vsub.f32 %v664, %v665
    %v667 = vand.u32 %v666, 4294901760
    %668 = vmatpush.msra.mxu0 %v667
    %v669 = vand.u32 %v604, 4294901760
    %v670 = vsub.f32 %v604, %v669
    %v671 = vand.u32 %v670, 4294901760
    %v672 = vsub.f32 %v670, %v671
    %v673 = vand.u32 %v672, 4294901760
    %674 = vmatpush.msra.mxu0 %v673
    %v675 = vand.u32 %v603, 4294901760
    %v676 = vsub.f32 %v603, %v675
    %v677 = vand.u32 %v676, 4294901760
    %v678 = vsub.f32 %v676, %v677
    %v679 = vand.u32 %v678, 4294901760
    %680 = vmatpush.msra.mxu0 %v679
    %v681 = vand.u32 %v602, 4294901760
    %v682 = vsub.f32 %v602, %v681
    %v683 = vand.u32 %v682, 4294901760
    %v684 = vsub.f32 %v682, %v683
    %v685 = vand.u32 %v684, 4294901760
    %686 = vmatpush.msra.mxu0 %v685
    %v687 = vand.u32 %v601, 4294901760
    %v688 = vsub.f32 %v601, %v687
    %v689 = vand.u32 %v688, 4294901760
    %v690 = vsub.f32 %v688, %v689
    %v691 = vand.u32 %v690, 4294901760
    %692 = vmatpush.msra.mxu0 %v691
    %v693 = vand.u32 %v600, 4294901760
    %v694 = vsub.f32 %v600, %v693
    %v695 = vand.u32 %v694, 4294901760
    %v696 = vsub.f32 %v694, %v695
    %v697 = vand.u32 %v696, 4294901760
    %698 = vmatpush.msra.mxu0 %v697
    %v699 = vand.u32 %v599, 4294901760
    %v700 = vsub.f32 %v599, %v699
    %v701 = vand.u32 %v700, 4294901760
    %v702 = vsub.f32 %v700, %v701
    %v703 = vand.u32 %v702, 4294901760
    %704 = vmatpush.msra.mxu0 %v703
    %v705 = vand.u32 %v598, 4294901760
    %v706 = vsub.f32 %v598, %v705
    %v707 = vand.u32 %v706, 4294901760
    %v708 = vsub.f32 %v706, %v707
    %v709 = vand.u32 %v708, 4294901760
    %710 = vmatpush.msra.mxu0 %v709
    %v711 = vand.u32 %v597, 4294901760
    %v712 = vsub.f32 %v597, %v711
    %v713 = vand.u32 %v712, 4294901760
    %v714 = vsub.f32 %v712, %v713
    %v715 = vand.u32 %v714, 4294901760
    %716 = vmatpush.msra.mxu0 %v715
    %v717 = vand.u32 %v596, 4294901760
    %v718 = vsub.f32 %v596, %v717
    %v719 = vand.u32 %v718, 4294901760
    %v720 = vsub.f32 %v718, %v719
    %v721 = vand.u32 %v720, 4294901760
    %722 = vmatpush.msra.mxu0 %v721
    %v723 = vand.u32 %v595, 4294901760
    %v724 = vsub.f32 %v595, %v723
    %v725 = vand.u32 %v724, 4294901760
    %v726 = vsub.f32 %v724, %v725
    %v727 = vand.u32 %v726, 4294901760
    %728 = vmatpush.msra.mxu0 %v727
    %v729 = vand.u32 %v594, 4294901760
    %v730 = vsub.f32 %v594, %v729
    %v731 = vand.u32 %v730, 4294901760
    %v732 = vsub.f32 %v730, %v731
    %v733 = vand.u32 %v732, 4294901760
    %734 = vmatpush.msra.mxu0 %v733
    %v735 = vand.u32 %v593, 4294901760
    %v736 = vsub.f32 %v593, %v735
    %v737 = vand.u32 %v736, 4294901760
    %v738 = vsub.f32 %v736, %v737
    %v739 = vand.u32 %v738, 4294901760
    %740 = vmatpush.msra.mxu0 %v739
    %v741 = vand.u32 %v592, 4294901760
    %v742 = vsub.f32 %v592, %v741
    %v743 = vand.u32 %v742, 4294901760
    %v744 = vsub.f32 %v742, %v743
    %v745 = vand.u32 %v744, 4294901760
    %746 = vmatpush.msra.mxu0 %v745
    %v747 = vand.u32 %v591, 4294901760
    %v748 = vsub.f32 %v591, %v747
    %v749 = vand.u32 %v748, 4294901760
    %v750 = vsub.f32 %v748, %v749
    %v751 = vand.u32 %v750, 4294901760
    %752 = vmatpush.msra.mxu0 %v751
    %v753 = vand.u32 %v590, 4294901760
    %v754 = vsub.f32 %v590, %v753
    %v755 = vand.u32 %v754, 4294901760
    %v756 = vsub.f32 %v754, %v755
    %v757 = vand.u32 %v756, 4294901760
    %758 = vmatpush.msra.mxu0 %v757
    %v759 = vand.u32 %v588, 4294901760
    %760 = vmatmul.f32.gmra.mxu0 %v759
    %v761 = vpop.f32.mrf.mxu0
    %v762 = vadd.f32 %v661, %v761
    %763 = vdwg.mxu0
    %v764 = vand.u32 %v605, 4294901760
    %v765 = vsub.f32 %v605, %v764
    %766 = vmatpush.msra.mxu0 %v765
    %v767 = vand.u32 %v604, 4294901760
    %v768 = vsub.f32 %v604, %v767
    %769 = vmatpush.msra.mxu0 %v768
    %v770 = vand.u32 %v603, 4294901760
    %v771 = vsub.f32 %v603, %v770
    %772 = vmatpush.msra.mxu0 %v771
    %v773 = vand.u32 %v602, 4294901760
    %v774 = vsub.f32 %v602, %v773
    %775 = vmatpush.msra.mxu0 %v774
    %v776 = vand.u32 %v601, 4294901760
    %v777 = vsub.f32 %v601, %v776
    %778 = vmatpush.msra.mxu0 %v777
    %v779 = vand.u32 %v600, 4294901760
    %v780 = vsub.f32 %v600, %v779
    %781 = vmatpush.msra.mxu0 %v780
    %v782 = vand.u32 %v599, 4294901760
    %v783 = vsub.f32 %v599, %v782
    %784 = vmatpush.msra.mxu0 %v783
    %v785 = vand.u32 %v598, 4294901760
    %v786 = vsub.f32 %v598, %v785
    %787 = vmatpush.msra.mxu0 %v786
    %v788 = vand.u32 %v597, 4294901760
    %v789 = vsub.f32 %v597, %v788
    %790 = vmatpush.msra.mxu0 %v789
    %v791 = vand.u32 %v596, 4294901760
    %v792 = vsub.f32 %v596, %v791
    %793 = vmatpush.msra.mxu0 %v792
    %v794 = vand.u32 %v595, 4294901760
    %v795 = vsub.f32 %v595, %v794
    %796 = vmatpush.msra.mxu0 %v795
    %v797 = vand.u32 %v594, 4294901760
    %v798 = vsub.f32 %v594, %v797
    %799 = vmatpush.msra.mxu0 %v798
    %v800 = vand.u32 %v593, 4294901760
    %v801 = vsub.f32 %v593, %v800
    %802 = vmatpush.msra.mxu0 %v801
    %v803 = vand.u32 %v592, 4294901760
    %v804 = vsub.f32 %v592, %v803
    %805 = vmatpush.msra.mxu0 %v804
    %v806 = vand.u32 %v591, 4294901760
    %v807 = vsub.f32 %v591, %v806
    %808 = vmatpush.msra.mxu0 %v807
    %v809 = vand.u32 %v590, 4294901760
    %v810 = vsub.f32 %v590, %v809
    %811 = vmatpush.msra.mxu0 %v810
    %v812 = vand.u32 %v588, 4294901760
    %v813 = vsub.f32 %v588, %v812
    %814 = vmatmul.f32.gmra.mxu0 %v813
    %v815 = vpop.f32.mrf.mxu0
    %v816 = vadd.f32 %v762, %v815
    %817 = vdwg.mxu0
    %v818 = vand.u32 %v605, 4294901760
    %819 = vmatpush.msra.mxu0 %v818
    %v820 = vand.u32 %v604, 4294901760
    %821 = vmatpush.msra.mxu0 %v820
    %v822 = vand.u32 %v603, 4294901760
    %823 = vmatpush.msra.mxu0 %v822
    %v824 = vand.u32 %v602, 4294901760
    %825 = vmatpush.msra.mxu0 %v824
    %v826 = vand.u32 %v601, 4294901760
    %827 = vmatpush.msra.mxu0 %v826
    %v828 = vand.u32 %v600, 4294901760
    %829 = vmatpush.msra.mxu0 %v828
    %v830 = vand.u32 %v599, 4294901760
    %831 = vmatpush.msra.mxu0 %v830
    %v832 = vand.u32 %v598, 4294901760
    %833 = vmatpush.msra.mxu0 %v832
    %v834 = vand.u32 %v597, 4294901760
    %835 = vmatpush.msra.mxu0 %v834
    %v836 = vand.u32 %v596, 4294901760
    %837 = vmatpush.msra.mxu0 %v836
    %v838 = vand.u32 %v595, 4294901760
    %839 = vmatpush.msra.mxu0 %v838
    %v840 = vand.u32 %v594, 4294901760
    %841 = vmatpush.msra.mxu0 %v840
    %v842 = vand.u32 %v593, 4294901760
    %843 = vmatpush.msra.mxu0 %v842
    %v844 = vand.u32 %v592, 4294901760
    %845 = vmatpush.msra.mxu0 %v844
    %v846 = vand.u32 %v591, 4294901760
    %847 = vmatpush.msra.mxu0 %v846
    %v848 = vand.u32 %v590, 4294901760
    %849 = vmatpush.msra.mxu0 %v848
    %v850 = vand.u32 %v588, 4294901760
    %v851 = vsub.f32 %v588, %v850
    %v852 = vand.u32 %v851, 4294901760
    %853 = vmatmul.f32.gmra.mxu0 %v852
    %v854 = vpop.f32.mrf.mxu0
    %v855 = vadd.f32 %v816, %v854
    %856 = vdwg.mxu0
    %v857 = vand.u32 %v605, 4294901760
    %v858 = vsub.f32 %v605, %v857
    %v859 = vand.u32 %v858, 4294901760
    %860 = vmatpush.msra.mxu0 %v859
    %v861 = vand.u32 %v604, 4294901760
    %v862 = vsub.f32 %v604, %v861
    %v863 = vand.u32 %v862, 4294901760
    %864 = vmatpush.msra.mxu0 %v863
    %v865 = vand.u32 %v603, 4294901760
    %v866 = vsub.f32 %v603, %v865
    %v867 = vand.u32 %v866, 4294901760
    %868 = vmatpush.msra.mxu0 %v867
    %v869 = vand.u32 %v602, 4294901760
    %v870 = vsub.f32 %v602, %v869
    %v871 = vand.u32 %v870, 4294901760
    %872 = vmatpush.msra.mxu0 %v871
    %v873 = vand.u32 %v601, 4294901760
    %v874 = vsub.f32 %v601, %v873
    %v875 = vand.u32 %v874, 4294901760
    %876 = vmatpush.msra.mxu0 %v875
    %v877 = vand.u32 %v600, 4294901760
    %v878 = vsub.f32 %v600, %v877
    %v879 = vand.u32 %v878, 4294901760
    %880 = vmatpush.msra.mxu0 %v879
    %v881 = vand.u32 %v599, 4294901760
    %v882 = vsub.f32 %v599, %v881
    %v883 = vand.u32 %v882, 4294901760
    %884 = vmatpush.msra.mxu0 %v883
    %v885 = vand.u32 %v598, 4294901760
    %v886 = vsub.f32 %v598, %v885
    %v887 = vand.u32 %v886, 4294901760
    %888 = vmatpush.msra.mxu0 %v887
    %v889 = vand.u32 %v597, 4294901760
    %v890 = vsub.f32 %v597, %v889
    %v891 = vand.u32 %v890, 4294901760
    %892 = vmatpush.msra.mxu0 %v891
    %v893 = vand.u32 %v596, 4294901760
    %v894 = vsub.f32 %v596, %v893
    %v895 = vand.u32 %v894, 4294901760
    %896 = vmatpush.msra.mxu0 %v895
    %v897 = vand.u32 %v595, 4294901760
    %v898 = vsub.f32 %v595, %v897
    %v899 = vand.u32 %v898, 4294901760
    %900 = vmatpush.msra.mxu0 %v899
    %v901 = vand.u32 %v594, 4294901760
    %v902 = vsub.f32 %v594, %v901
    %v903 = vand.u32 %v902, 4294901760
    %904 = vmatpush.msra.mxu0 %v903
    %v905 = vand.u32 %v593, 4294901760
    %v906 = vsub.f32 %v593, %v905
    %v907 = vand.u32 %v906, 4294901760
    %908 = vmatpush.msra.mxu0 %v907
    %v909 = vand.u32 %v592, 4294901760
    %v910 = vsub.f32 %v592, %v909
    %v911 = vand.u32 %v910, 4294901760
    %912 = vmatpush.msra.mxu0 %v911
    %v913 = vand.u32 %v591, 4294901760
    %v914 = vsub.f32 %v591, %v913
    %v915 = vand.u32 %v914, 4294901760
    %916 = vmatpush.msra.mxu0 %v915
    %v917 = vand.u32 %v590, 4294901760
    %v918 = vsub.f32 %v590, %v917
    %v919 = vand.u32 %v918, 4294901760
    %920 = vmatpush.msra.mxu0 %v919
    %v921 = vand.u32 %v588, 4294901760
    %922 = vmatmul.f32.gmra.mxu0 %v921
    %v923 = vpop.f32.mrf.mxu0
    %v924 = vadd.f32 %v855, %v923
    %925 = vdwg.mxu0
    %v926 = vand.u32 %v605, 4294901760
    %927 = vmatpush.msra.mxu0 %v926
    %v928 = vand.u32 %v604, 4294901760
    %929 = vmatpush.msra.mxu0 %v928
    %v930 = vand.u32 %v603, 4294901760
    %931 = vmatpush.msra.mxu0 %v930
    %v932 = vand.u32 %v602, 4294901760
    %933 = vmatpush.msra.mxu0 %v932
    %v934 = vand.u32 %v601, 4294901760
    %935 = vmatpush.msra.mxu0 %v934
    %v936 = vand.u32 %v600, 4294901760
    %937 = vmatpush.msra.mxu0 %v936
    %v938 = vand.u32 %v599, 4294901760
    %939 = vmatpush.msra.mxu0 %v938
    %v940 = vand.u32 %v598, 4294901760
    %941 = vmatpush.msra.mxu0 %v940
    %v942 = vand.u32 %v597, 4294901760
    %943 = vmatpush.msra.mxu0 %v942
    %v944 = vand.u32 %v596, 4294901760
    %945 = vmatpush.msra.mxu0 %v944
    %v946 = vand.u32 %v595, 4294901760
    %947 = vmatpush.msra.mxu0 %v946
    %v948 = vand.u32 %v594, 4294901760
    %949 = vmatpush.msra.mxu0 %v948
    %v950 = vand.u32 %v593, 4294901760
    %951 = vmatpush.msra.mxu0 %v950
    %v952 = vand.u32 %v592, 4294901760
    %953 = vmatpush.msra.mxu0 %v952
    %v954 = vand.u32 %v591, 4294901760
    %955 = vmatpush.msra.mxu0 %v954
    %v956 = vand.u32 %v590, 4294901760
    %957 = vmatpush.msra.mxu0 %v956
    %v958 = vand.u32 %v588, 4294901760
    %959 = vmatmul.f32.gmra.mxu0 %v958
    %v960 = vpop.f32.mrf.mxu0
    %v961 = vadd.f32 %v924, %v960
    %962 = vdwg.mxu0
    %v963 = vand.u32 %v621, 4294901760
    %964 = vmatpush.msra.mxu0 %v963
    %v965 = vand.u32 %v620, 4294901760
    %966 = vmatpush.msra.mxu0 %v965
    %v967 = vand.u32 %v619, 4294901760
    %968 = vmatpush.msra.mxu0 %v967
    %v969 = vand.u32 %v618, 4294901760
    %970 = vmatpush.msra.mxu0 %v969
    %v971 = vand.u32 %v617, 4294901760
    %972 = vmatpush.msra.mxu0 %v971
    %v973 = vand.u32 %v616, 4294901760
    %974 = vmatpush.msra.mxu0 %v973
    %v975 = vand.u32 %v615, 4294901760
    %976 = vmatpush.msra.mxu0 %v975
    %v977 = vand.u32 %v614, 4294901760
    %978 = vmatpush.msra.mxu0 %v977
    %v979 = vand.u32 %v613, 4294901760
    %980 = vmatpush.msra.mxu0 %v979
    %v981 = vand.u32 %v612, 4294901760
    %982 = vmatpush.msra.mxu0 %v981
    %v983 = vand.u32 %v611, 4294901760
    %984 = vmatpush.msra.mxu0 %v983
    %v985 = vand.u32 %v610, 4294901760
    %986 = vmatpush.msra.mxu0 %v985
    %v987 = vand.u32 %v609, 4294901760
    %988 = vmatpush.msra.mxu0 %v987
    %v989 = vand.u32 %v608, 4294901760
    %990 = vmatpush.msra.mxu0 %v989
    %v991 = vand.u32 %v607, 4294901760
    %992 = vmatpush.msra.mxu0 %v991
    %v993 = vand.u32 %v606, 4294901760
    %994 = vmatpush.msra.mxu0 %v993
    %v995 = vand.u32 %v589, 4294901760
    %v996 = vsub.f32 %v589, %v995
    %v997 = vand.u32 %v996, 4294901760
    %v998 = vsub.f32 %v996, %v997
    %v999 = vand.u32 %v998, 4294901760
    %1000 = vmatmul.f32.gmra.mxu0 %v999
    %v1001 = vpop.f32.mrf.mxu0
    %v1002 = vadd.f32 %v961, %v1001
    %1003 = vdwg.mxu0
    %v1004 = vand.u32 %v621, 4294901760
    %v1005 = vsub.f32 %v621, %v1004
    %v1006 = vand.u32 %v1005, 4294901760
    %v1007 = vsub.f32 %v1005, %v1006
    %v1008 = vand.u32 %v1007, 4294901760
    %1009 = vmatpush.msra.mxu0 %v1008
    %v1010 = vand.u32 %v620, 4294901760
    %v1011 = vsub.f32 %v620, %v1010
    %v1012 = vand.u32 %v1011, 4294901760
    %v1013 = vsub.f32 %v1011, %v1012
    %v1014 = vand.u32 %v1013, 4294901760
    %1015 = vmatpush.msra.mxu0 %v1014
    %v1016 = vand.u32 %v619, 4294901760
    %v1017 = vsub.f32 %v619, %v1016
    %v1018 = vand.u32 %v1017, 4294901760
    %v1019 = vsub.f32 %v1017, %v1018
    %v1020 = vand.u32 %v1019, 4294901760
    %1021 = vmatpush.msra.mxu0 %v1020
    %v1022 = vand.u32 %v618, 4294901760
    %v1023 = vsub.f32 %v618, %v1022
    %v1024 = vand.u32 %v1023, 4294901760
    %v1025 = vsub.f32 %v1023, %v1024
    %v1026 = vand.u32 %v1025, 4294901760
    %1027 = vmatpush.msra.mxu0 %v1026
    %v1028 = vand.u32 %v617, 4294901760
    %v1029 = vsub.f32 %v617, %v1028
    %v1030 = vand.u32 %v1029, 4294901760
    %v1031 = vsub.f32 %v1029, %v1030
    %v1032 = vand.u32 %v1031, 4294901760
    %1033 = vmatpush.msra.mxu0 %v1032
    %v1034 = vand.u32 %v616, 4294901760
    %v1035 = vsub.f32 %v616, %v1034
    %v1036 = vand.u32 %v1035, 4294901760
    %v1037 = vsub.f32 %v1035, %v1036
    %v1038 = vand.u32 %v1037, 4294901760
    %1039 = vmatpush.msra.mxu0 %v1038
    %v1040 = vand.u32 %v615, 4294901760
    %v1041 = vsub.f32 %v615, %v1040
    %v1042 = vand.u32 %v1041, 4294901760
    %v1043 = vsub.f32 %v1041, %v1042
    %v1044 = vand.u32 %v1043, 4294901760
    %1045 = vmatpush.msra.mxu0 %v1044
    %v1046 = vand.u32 %v614, 4294901760
    %v1047 = vsub.f32 %v614, %v1046
    %v1048 = vand.u32 %v1047, 4294901760
    %v1049 = vsub.f32 %v1047, %v1048
    %v1050 = vand.u32 %v1049, 4294901760
    %1051 = vmatpush.msra.mxu0 %v1050
    %v1052 = vand.u32 %v613, 4294901760
    %v1053 = vsub.f32 %v613, %v1052
    %v1054 = vand.u32 %v1053, 4294901760
    %v1055 = vsub.f32 %v1053, %v1054
    %v1056 = vand.u32 %v1055, 4294901760
    %1057 = vmatpush.msra.mxu0 %v1056
    %v1058 = vand.u32 %v612, 4294901760
    %v1059 = vsub.f32 %v612, %v1058
    %v1060 = vand.u32 %v1059, 4294901760
    %v1061 = vsub.f32 %v1059, %v1060
    %v1062 = vand.u32 %v1061, 4294901760
    %1063 = vmatpush.msra.mxu0 %v1062
    %v1064 = vand.u32 %v611, 4294901760
    %v1065 = vsub.f32 %v611, %v1064
    %v1066 = vand.u32 %v1065, 4294901760
    %v1067 = vsub.f32 %v1065, %v1066
    %v1068 = vand.u32 %v1067, 4294901760
    %1069 = vmatpush.msra.mxu0 %v1068
    %v1070 = vand.u32 %v610, 4294901760
    %v1071 = vsub.f32 %v610, %v1070
    %v1072 = vand.u32 %v1071, 4294901760
    %v1073 = vsub.f32 %v1071, %v1072
    %v1074 = vand.u32 %v1073, 4294901760
    %1075 = vmatpush.msra.mxu0 %v1074
    %v1076 = vand.u32 %v609, 4294901760
    %v1077 = vsub.f32 %v609, %v1076
    %v1078 = vand.u32 %v1077, 4294901760
    %v1079 = vsub.f32 %v1077, %v1078
    %v1080 = vand.u32 %v1079, 4294901760
    %1081 = vmatpush.msra.mxu0 %v1080
    %v1082 = vand.u32 %v608, 4294901760
    %v1083 = vsub.f32 %v608, %v1082
    %v1084 = vand.u32 %v1083, 4294901760
    %v1085 = vsub.f32 %v1083, %v1084
    %v1086 = vand.u32 %v1085, 4294901760
    %1087 = vmatpush.msra.mxu0 %v1086
    %v1088 = vand.u32 %v607, 4294901760
    %v1089 = vsub.f32 %v607, %v1088
    %v1090 = vand.u32 %v1089, 4294901760
    %v1091 = vsub.f32 %v1089, %v1090
    %v1092 = vand.u32 %v1091, 4294901760
    %1093 = vmatpush.msra.mxu0 %v1092
    %v1094 = vand.u32 %v606, 4294901760
    %v1095 = vsub.f32 %v606, %v1094
    %v1096 = vand.u32 %v1095, 4294901760
    %v1097 = vsub.f32 %v1095, %v1096
    %v1098 = vand.u32 %v1097, 4294901760
    %1099 = vmatpush.msra.mxu0 %v1098
    %v1100 = vand.u32 %v589, 4294901760
    %1101 = vmatmul.f32.gmra.mxu0 %v1100
    %v1102 = vpop.f32.mrf.mxu0
    %v1103 = vadd.f32 %v1002, %v1102
    %1104 = vdwg.mxu0
    %v1105 = vand.u32 %v621, 4294901760
    %v1106 = vsub.f32 %v621, %v1105
    %1107 = vmatpush.msra.mxu0 %v1106
    %v1108 = vand.u32 %v620, 4294901760
    %v1109 = vsub.f32 %v620, %v1108
    %1110 = vmatpush.msra.mxu0 %v1109
    %v1111 = vand.u32 %v619, 4294901760
    %v1112 = vsub.f32 %v619, %v1111
    %1113 = vmatpush.msra.mxu0 %v1112
    %v1114 = vand.u32 %v618, 4294901760
    %v1115 = vsub.f32 %v618, %v1114
    %1116 = vmatpush.msra.mxu0 %v1115
    %v1117 = vand.u32 %v617, 4294901760
    %v1118 = vsub.f32 %v617, %v1117
    %1119 = vmatpush.msra.mxu0 %v1118
    %v1120 = vand.u32 %v616, 4294901760
    %v1121 = vsub.f32 %v616, %v1120
    %1122 = vmatpush.msra.mxu0 %v1121
    %v1123 = vand.u32 %v615, 4294901760
    %v1124 = vsub.f32 %v615, %v1123
    %1125 = vmatpush.msra.mxu0 %v1124
    %v1126 = vand.u32 %v614, 4294901760
    %v1127 = vsub.f32 %v614, %v1126
    %1128 = vmatpush.msra.mxu0 %v1127
    %v1129 = vand.u32 %v613, 4294901760
    %v1130 = vsub.f32 %v613, %v1129
    %1131 = vmatpush.msra.mxu0 %v1130
    %v1132 = vand.u32 %v612, 4294901760
    %v1133 = vsub.f32 %v612, %v1132
    %1134 = vmatpush.msra.mxu0 %v1133
    %v1135 = vand.u32 %v611, 4294901760
    %v1136 = vsub.f32 %v611, %v1135
    %1137 = vmatpush.msra.mxu0 %v1136
    %v1138 = vand.u32 %v610, 4294901760
    %v1139 = vsub.f32 %v610, %v1138
    %1140 = vmatpush.msra.mxu0 %v1139
    %v1141 = vand.u32 %v609, 4294901760
    %v1142 = vsub.f32 %v609, %v1141
    %1143 = vmatpush.msra.mxu0 %v1142
    %v1144 = vand.u32 %v608, 4294901760
    %v1145 = vsub.f32 %v608, %v1144
    %1146 = vmatpush.msra.mxu0 %v1145
    %v1147 = vand.u32 %v607, 4294901760
    %v1148 = vsub.f32 %v607, %v1147
    %1149 = vmatpush.msra.mxu0 %v1148
    %v1150 = vand.u32 %v606, 4294901760
    %v1151 = vsub.f32 %v606, %v1150
    %1152 = vmatpush.msra.mxu0 %v1151
    %v1153 = vand.u32 %v589, 4294901760
    %v1154 = vsub.f32 %v589, %v1153
    %1155 = vmatmul.f32.gmra.mxu0 %v1154
    %v1156 = vpop.f32.mrf.mxu0
    %v1157 = vadd.f32 %v1103, %v1156
    %1158 = vdwg.mxu0
    %v1159 = vand.u32 %v621, 4294901760
    %1160 = vmatpush.msra.mxu0 %v1159
    %v1161 = vand.u32 %v620, 4294901760
    %1162 = vmatpush.msra.mxu0 %v1161
    %v1163 = vand.u32 %v619, 4294901760
    %1164 = vmatpush.msra.mxu0 %v1163
    %v1165 = vand.u32 %v618, 4294901760
    %1166 = vmatpush.msra.mxu0 %v1165
    %v1167 = vand.u32 %v617, 4294901760
    %1168 = vmatpush.msra.mxu0 %v1167
    %v1169 = vand.u32 %v616, 4294901760
    %1170 = vmatpush.msra.mxu0 %v1169
    %v1171 = vand.u32 %v615, 4294901760
    %1172 = vmatpush.msra.mxu0 %v1171
    %v1173 = vand.u32 %v614, 4294901760
    %1174 = vmatpush.msra.mxu0 %v1173
    %v1175 = vand.u32 %v613, 4294901760
    %1176 = vmatpush.msra.mxu0 %v1175
    %v1177 = vand.u32 %v612, 4294901760
    %1178 = vmatpush.msra.mxu0 %v1177
    %v1179 = vand.u32 %v611, 4294901760
    %1180 = vmatpush.msra.mxu0 %v1179
    %v1181 = vand.u32 %v610, 4294901760
    %1182 = vmatpush.msra.mxu0 %v1181
    %v1183 = vand.u32 %v609, 4294901760
    %1184 = vmatpush.msra.mxu0 %v1183
    %v1185 = vand.u32 %v608, 4294901760
    %1186 = vmatpush.msra.mxu0 %v1185
    %v1187 = vand.u32 %v607, 4294901760
    %1188 = vmatpush.msra.mxu0 %v1187
    %v1189 = vand.u32 %v606, 4294901760
    %1190 = vmatpush.msra.mxu0 %v1189
    %v1191 = vand.u32 %v589, 4294901760
    %v1192 = vsub.f32 %v589, %v1191
    %v1193 = vand.u32 %v1192, 4294901760
    %1194 = vmatmul.f32.gmra.mxu0 %v1193
    %v1195 = vpop.f32.mrf.mxu0
    %v1196 = vadd.f32 %v1157, %v1195
    %1197 = vdwg.mxu0
    %v1198 = vand.u32 %v621, 4294901760
    %v1199 = vsub.f32 %v621, %v1198
    %v1200 = vand.u32 %v1199, 4294901760
    %1201 = vmatpush.msra.mxu0 %v1200
    %v1202 = vand.u32 %v620, 4294901760
    %v1203 = vsub.f32 %v620, %v1202
    %v1204 = vand.u32 %v1203, 4294901760
    %1205 = vmatpush.msra.mxu0 %v1204
    %v1206 = vand.u32 %v619, 4294901760
    %v1207 = vsub.f32 %v619, %v1206
    %v1208 = vand.u32 %v1207, 4294901760
    %1209 = vmatpush.msra.mxu0 %v1208
    %v1210 = vand.u32 %v618, 4294901760
    %v1211 = vsub.f32 %v618, %v1210
    %v1212 = vand.u32 %v1211, 4294901760
    %1213 = vmatpush.msra.mxu0 %v1212
    %v1214 = vand.u32 %v617, 4294901760
    %v1215 = vsub.f32 %v617, %v1214
    %v1216 = vand.u32 %v1215, 4294901760
    %1217 = vmatpush.msra.mxu0 %v1216
    %v1218 = vand.u32 %v616, 4294901760
    %v1219 = vsub.f32 %v616, %v1218
    %v1220 = vand.u32 %v1219, 4294901760
    %1221 = vmatpush.msra.mxu0 %v1220
    %v1222 = vand.u32 %v615, 4294901760
    %v1223 = vsub.f32 %v615, %v1222
    %v1224 = vand.u32 %v1223, 4294901760
    %1225 = vmatpush.msra.mxu0 %v1224
    %v1226 = vand.u32 %v614, 4294901760
    %v1227 = vsub.f32 %v614, %v1226
    %v1228 = vand.u32 %v1227, 4294901760
    %1229 = vmatpush.msra.mxu0 %v1228
    %v1230 = vand.u32 %v613, 4294901760
    %v1231 = vsub.f32 %v613, %v1230
    %v1232 = vand.u32 %v1231, 4294901760
    %1233 = vmatpush.msra.mxu0 %v1232
    %v1234 = vand.u32 %v612, 4294901760
    %v1235 = vsub.f32 %v612, %v1234
    %v1236 = vand.u32 %v1235, 4294901760
    %1237 = vmatpush.msra.mxu0 %v1236
    %v1238 = vand.u32 %v611, 4294901760
    %v1239 = vsub.f32 %v611, %v1238
    %v1240 = vand.u32 %v1239, 4294901760
    %1241 = vmatpush.msra.mxu0 %v1240
    %v1242 = vand.u32 %v610, 4294901760
    %v1243 = vsub.f32 %v610, %v1242
    %v1244 = vand.u32 %v1243, 4294901760
    %1245 = vmatpush.msra.mxu0 %v1244
    %v1246 = vand.u32 %v609, 4294901760
    %v1247 = vsub.f32 %v609, %v1246
    %v1248 = vand.u32 %v1247, 4294901760
    %1249 = vmatpush.msra.mxu0 %v1248
    %v1250 = vand.u32 %v608, 4294901760
    %v1251 = vsub.f32 %v608, %v1250
    %v1252 = vand.u32 %v1251, 4294901760
    %1253 = vmatpush.msra.mxu0 %v1252
    %v1254 = vand.u32 %v607, 4294901760
    %v1255 = vsub.f32 %v607, %v1254
    %v1256 = vand.u32 %v1255, 4294901760
    %1257 = vmatpush.msra.mxu0 %v1256
    %v1258 = vand.u32 %v606, 4294901760
    %v1259 = vsub.f32 %v606, %v1258
    %v1260 = vand.u32 %v1259, 4294901760
    %1261 = vmatpush.msra.mxu0 %v1260
    %v1262 = vand.u32 %v589, 4294901760
    %1263 = vmatmul.f32.gmra.mxu0 %v1262
    %v1264 = vpop.f32.mrf.mxu0
    %v1265 = vadd.f32 %v1196, %v1264
    %1266 = vdwg.mxu0
    %v1267 = vand.u32 %v621, 4294901760
    %1268 = vmatpush.msra.mxu0 %v1267
    %v1269 = vand.u32 %v620, 4294901760
    %1270 = vmatpush.msra.mxu0 %v1269
    %v1271 = vand.u32 %v619, 4294901760
    %1272 = vmatpush.msra.mxu0 %v1271
    %v1273 = vand.u32 %v618, 4294901760
    %1274 = vmatpush.msra.mxu0 %v1273
    %v1275 = vand.u32 %v617, 4294901760
    %1276 = vmatpush.msra.mxu0 %v1275
    %v1277 = vand.u32 %v616, 4294901760
    %1278 = vmatpush.msra.mxu0 %v1277
    %v1279 = vand.u32 %v615, 4294901760
    %1280 = vmatpush.msra.mxu0 %v1279
    %v1281 = vand.u32 %v614, 4294901760
    %1282 = vmatpush.msra.mxu0 %v1281
    %v1283 = vand.u32 %v613, 4294901760
    %1284 = vmatpush.msra.mxu0 %v1283
    %v1285 = vand.u32 %v612, 4294901760
    %1286 = vmatpush.msra.mxu0 %v1285
    %v1287 = vand.u32 %v611, 4294901760
    %1288 = vmatpush.msra.mxu0 %v1287
    %v1289 = vand.u32 %v610, 4294901760
    %1290 = vmatpush.msra.mxu0 %v1289
    %v1291 = vand.u32 %v609, 4294901760
    %1292 = vmatpush.msra.mxu0 %v1291
    %v1293 = vand.u32 %v608, 4294901760
    %1294 = vmatpush.msra.mxu0 %v1293
    %v1295 = vand.u32 %v607, 4294901760
    %1296 = vmatpush.msra.mxu0 %v1295
    %v1297 = vand.u32 %v606, 4294901760
    %1298 = vmatpush.msra.mxu0 %v1297
    %v1299 = vand.u32 %v589, 4294901760
    %1300 = vmatmul.f32.gmra.mxu0 %v1299
    %v1301 = vpop.f32.mrf.mxu0
    %v1302 = vadd.f32 %v1265, %v1301
    %1303 = vdwg.mxu0
    %s1304 = scalar_lea.vmem %s3, 256
    %v1305 = vld [vmem:[%s1304] sm:$0xff]
    %v1306 = vld [vmem:[%s1304 + $0x8] sm:$0xff]
    %v1307 = vld [vmem:[%s1304 + $0x10] sm:$0xff]
    %v1308 = vld [vmem:[%s1304 + $0x18] sm:$0xff]
    %v1309 = vld [vmem:[%s1304 + $0x20] sm:$0xff]
    %v1310 = vld [vmem:[%s1304 + $0x28] sm:$0xff]
    %v1311 = vld [vmem:[%s1304 + $0x30] sm:$0xff]
    %v1312 = vld [vmem:[%s1304 + $0x38] sm:$0xff]
    %v1313 = vld [vmem:[%s1304 + $0x40] sm:$0xff]
    %v1314 = vld [vmem:[%s1304 + $0x48] sm:$0xff]
    %v1315 = vld [vmem:[%s1304 + $0x50] sm:$0xff]
    %v1316 = vld [vmem:[%s1304 + $0x58] sm:$0xff]
    %v1317 = vld [vmem:[%s1304 + $0x60] sm:$0xff]
    %v1318 = vld [vmem:[%s1304 + $0x68] sm:$0xff]
    %v1319 = vld [vmem:[%s1304 + $0x70] sm:$0xff]
    %v1320 = vld [vmem:[%s1304 + $0x78] sm:$0xff]
    %v1321 = vld [vmem:[%s1304 + $0x80] sm:$0xff]
    %v1322 = vld [vmem:[%s1304 + $0x88] sm:$0xff]
    %v1323 = vld [vmem:[%s1304 + $0x90] sm:$0xff]
    %v1324 = vld [vmem:[%s1304 + $0x98] sm:$0xff]
    %v1325 = vld [vmem:[%s1304 + $0xa0] sm:$0xff]
    %v1326 = vld [vmem:[%s1304 + $0xa8] sm:$0xff]
    %v1327 = vld [vmem:[%s1304 + $0xb0] sm:$0xff]
    %v1328 = vld [vmem:[%s1304 + $0xb8] sm:$0xff]
    %v1329 = vld [vmem:[%s1304 + $0xc0] sm:$0xff]
    %v1330 = vld [vmem:[%s1304 + $0xc8] sm:$0xff]
    %v1331 = vld [vmem:[%s1304 + $0xd0] sm:$0xff]
    %v1332 = vld [vmem:[%s1304 + $0xd8] sm:$0xff]
    %v1333 = vld [vmem:[%s1304 + $0xe0] sm:$0xff]
    %v1334 = vld [vmem:[%s1304 + $0xe8] sm:$0xff]
    %v1335 = vld [vmem:[%s1304 + $0xf0] sm:$0xff]
    %v1336 = vld [vmem:[%s1304 + $0xf8] sm:$0xff]
    %v1337 = vand.u32 %v1320, 4294901760
    %1338 = vmatpush.msra.mxu0 %v1337
    %v1339 = vand.u32 %v1319, 4294901760
    %1340 = vmatpush.msra.mxu0 %v1339
    %v1341 = vand.u32 %v1318, 4294901760
    %1342 = vmatpush.msra.mxu0 %v1341
    %v1343 = vand.u32 %v1317, 4294901760
    %1344 = vmatpush.msra.mxu0 %v1343
    %v1345 = vand.u32 %v1316, 4294901760
    %1346 = vmatpush.msra.mxu0 %v1345
    %v1347 = vand.u32 %v1315, 4294901760
    %1348 = vmatpush.msra.mxu0 %v1347
    %v1349 = vand.u32 %v1314, 4294901760
    %1350 = vmatpush.msra.mxu0 %v1349
    %v1351 = vand.u32 %v1313, 4294901760
    %1352 = vmatpush.msra.mxu0 %v1351
    %v1353 = vand.u32 %v1312, 4294901760
    %1354 = vmatpush.msra.mxu0 %v1353
    %v1355 = vand.u32 %v1311, 4294901760
    %1356 = vmatpush.msra.mxu0 %v1355
    %v1357 = vand.u32 %v1310, 4294901760
    %1358 = vmatpush.msra.mxu0 %v1357
    %v1359 = vand.u32 %v1309, 4294901760
    %1360 = vmatpush.msra.mxu0 %v1359
    %v1361 = vand.u32 %v1308, 4294901760
    %1362 = vmatpush.msra.mxu0 %v1361
    %v1363 = vand.u32 %v1307, 4294901760
    %1364 = vmatpush.msra.mxu0 %v1363
    %v1365 = vand.u32 %v1306, 4294901760
    %1366 = vmatpush.msra.mxu0 %v1365
    %v1367 = vand.u32 %v1305, 4294901760
    %1368 = vmatpush.msra.mxu0 %v1367
    %v1369 = vand.u32 %v588, 4294901760
    %v1370 = vsub.f32 %v588, %v1369
    %v1371 = vand.u32 %v1370, 4294901760
    %v1372 = vsub.f32 %v1370, %v1371
    %v1373 = vand.u32 %v1372, 4294901760
    %1374 = vmatmul.f32.gmra.mxu0 %v1373
    %v1375 = vpop.f32.mrf.mxu0
    %v1376 = vadd.f32 0.0, %v1375
    %1377 = vdwg.mxu0
    %v1378 = vand.u32 %v1320, 4294901760
    %v1379 = vsub.f32 %v1320, %v1378
    %v1380 = vand.u32 %v1379, 4294901760
    %v1381 = vsub.f32 %v1379, %v1380
    %v1382 = vand.u32 %v1381, 4294901760
    %1383 = vmatpush.msra.mxu0 %v1382
    %v1384 = vand.u32 %v1319, 4294901760
    %v1385 = vsub.f32 %v1319, %v1384
    %v1386 = vand.u32 %v1385, 4294901760
    %v1387 = vsub.f32 %v1385, %v1386
    %v1388 = vand.u32 %v1387, 4294901760
    %1389 = vmatpush.msra.mxu0 %v1388
    %v1390 = vand.u32 %v1318, 4294901760
    %v1391 = vsub.f32 %v1318, %v1390
    %v1392 = vand.u32 %v1391, 4294901760
    %v1393 = vsub.f32 %v1391, %v1392
    %v1394 = vand.u32 %v1393, 4294901760
    %1395 = vmatpush.msra.mxu0 %v1394
    %v1396 = vand.u32 %v1317, 4294901760
    %v1397 = vsub.f32 %v1317, %v1396
    %v1398 = vand.u32 %v1397, 4294901760
    %v1399 = vsub.f32 %v1397, %v1398
    %v1400 = vand.u32 %v1399, 4294901760
    %1401 = vmatpush.msra.mxu0 %v1400
    %v1402 = vand.u32 %v1316, 4294901760
    %v1403 = vsub.f32 %v1316, %v1402
    %v1404 = vand.u32 %v1403, 4294901760
    %v1405 = vsub.f32 %v1403, %v1404
    %v1406 = vand.u32 %v1405, 4294901760
    %1407 = vmatpush.msra.mxu0 %v1406
    %v1408 = vand.u32 %v1315, 4294901760
    %v1409 = vsub.f32 %v1315, %v1408
    %v1410 = vand.u32 %v1409, 4294901760
    %v1411 = vsub.f32 %v1409, %v1410
    %v1412 = vand.u32 %v1411, 4294901760
    %1413 = vmatpush.msra.mxu0 %v1412
    %v1414 = vand.u32 %v1314, 4294901760
    %v1415 = vsub.f32 %v1314, %v1414
    %v1416 = vand.u32 %v1415, 4294901760
    %v1417 = vsub.f32 %v1415, %v1416
    %v1418 = vand.u32 %v1417, 4294901760
    %1419 = vmatpush.msra.mxu0 %v1418
    %v1420 = vand.u32 %v1313, 4294901760
    %v1421 = vsub.f32 %v1313, %v1420
    %v1422 = vand.u32 %v1421, 4294901760
    %v1423 = vsub.f32 %v1421, %v1422
    %v1424 = vand.u32 %v1423, 4294901760
    %1425 = vmatpush.msra.mxu0 %v1424
    %v1426 = vand.u32 %v1312, 4294901760
    %v1427 = vsub.f32 %v1312, %v1426
    %v1428 = vand.u32 %v1427, 4294901760
    %v1429 = vsub.f32 %v1427, %v1428
    %v1430 = vand.u32 %v1429, 4294901760
    %1431 = vmatpush.msra.mxu0 %v1430
    %v1432 = vand.u32 %v1311, 4294901760
    %v1433 = vsub.f32 %v1311, %v1432
    %v1434 = vand.u32 %v1433, 4294901760
    %v1435 = vsub.f32 %v1433, %v1434
    %v1436 = vand.u32 %v1435, 4294901760
    %1437 = vmatpush.msra.mxu0 %v1436
    %v1438 = vand.u32 %v1310, 4294901760
    %v1439 = vsub.f32 %v1310, %v1438
    %v1440 = vand.u32 %v1439, 4294901760
    %v1441 = vsub.f32 %v1439, %v1440
    %v1442 = vand.u32 %v1441, 4294901760
    %1443 = vmatpush.msra.mxu0 %v1442
    %v1444 = vand.u32 %v1309, 4294901760
    %v1445 = vsub.f32 %v1309, %v1444
    %v1446 = vand.u32 %v1445, 4294901760
    %v1447 = vsub.f32 %v1445, %v1446
    %v1448 = vand.u32 %v1447, 4294901760
    %1449 = vmatpush.msra.mxu0 %v1448
    %v1450 = vand.u32 %v1308, 4294901760
    %v1451 = vsub.f32 %v1308, %v1450
    %v1452 = vand.u32 %v1451, 4294901760
    %v1453 = vsub.f32 %v1451, %v1452
    %v1454 = vand.u32 %v1453, 4294901760
    %1455 = vmatpush.msra.mxu0 %v1454
    %v1456 = vand.u32 %v1307, 4294901760
    %v1457 = vsub.f32 %v1307, %v1456
    %v1458 = vand.u32 %v1457, 4294901760
    %v1459 = vsub.f32 %v1457, %v1458
    %v1460 = vand.u32 %v1459, 4294901760
    %1461 = vmatpush.msra.mxu0 %v1460
    %v1462 = vand.u32 %v1306, 4294901760
    %v1463 = vsub.f32 %v1306, %v1462
    %v1464 = vand.u32 %v1463, 4294901760
    %v1465 = vsub.f32 %v1463, %v1464
    %v1466 = vand.u32 %v1465, 4294901760
    %1467 = vmatpush.msra.mxu0 %v1466
    %v1468 = vand.u32 %v1305, 4294901760
    %v1469 = vsub.f32 %v1305, %v1468
    %v1470 = vand.u32 %v1469, 4294901760
    %v1471 = vsub.f32 %v1469, %v1470
    %v1472 = vand.u32 %v1471, 4294901760
    %1473 = vmatpush.msra.mxu0 %v1472
    %v1474 = vand.u32 %v588, 4294901760
    %1475 = vmatmul.f32.gmra.mxu0 %v1474
    %v1476 = vpop.f32.mrf.mxu0
    %v1477 = vadd.f32 %v1376, %v1476
    %1478 = vdwg.mxu0
    %v1479 = vand.u32 %v1320, 4294901760
    %v1480 = vsub.f32 %v1320, %v1479
    %1481 = vmatpush.msra.mxu0 %v1480
    %v1482 = vand.u32 %v1319, 4294901760
    %v1483 = vsub.f32 %v1319, %v1482
    %1484 = vmatpush.msra.mxu0 %v1483
    %v1485 = vand.u32 %v1318, 4294901760
    %v1486 = vsub.f32 %v1318, %v1485
    %1487 = vmatpush.msra.mxu0 %v1486
    %v1488 = vand.u32 %v1317, 4294901760
    %v1489 = vsub.f32 %v1317, %v1488
    %1490 = vmatpush.msra.mxu0 %v1489
    %v1491 = vand.u32 %v1316, 4294901760
    %v1492 = vsub.f32 %v1316, %v1491
    %1493 = vmatpush.msra.mxu0 %v1492
    %v1494 = vand.u32 %v1315, 4294901760
    %v1495 = vsub.f32 %v1315, %v1494
    %1496 = vmatpush.msra.mxu0 %v1495
    %v1497 = vand.u32 %v1314, 4294901760
    %v1498 = vsub.f32 %v1314, %v1497
    %1499 = vmatpush.msra.mxu0 %v1498
    %v1500 = vand.u32 %v1313, 4294901760
    %v1501 = vsub.f32 %v1313, %v1500
    %1502 = vmatpush.msra.mxu0 %v1501
    %v1503 = vand.u32 %v1312, 4294901760
    %v1504 = vsub.f32 %v1312, %v1503
    %1505 = vmatpush.msra.mxu0 %v1504
    %v1506 = vand.u32 %v1311, 4294901760
    %v1507 = vsub.f32 %v1311, %v1506
    %1508 = vmatpush.msra.mxu0 %v1507
    %v1509 = vand.u32 %v1310, 4294901760
    %v1510 = vsub.f32 %v1310, %v1509
    %1511 = vmatpush.msra.mxu0 %v1510
    %v1512 = vand.u32 %v1309, 4294901760
    %v1513 = vsub.f32 %v1309, %v1512
    %1514 = vmatpush.msra.mxu0 %v1513
    %v1515 = vand.u32 %v1308, 4294901760
    %v1516 = vsub.f32 %v1308, %v1515
    %1517 = vmatpush.msra.mxu0 %v1516
    %v1518 = vand.u32 %v1307, 4294901760
    %v1519 = vsub.f32 %v1307, %v1518
    %1520 = vmatpush.msra.mxu0 %v1519
    %v1521 = vand.u32 %v1306, 4294901760
    %v1522 = vsub.f32 %v1306, %v1521
    %1523 = vmatpush.msra.mxu0 %v1522
    %v1524 = vand.u32 %v1305, 4294901760
    %v1525 = vsub.f32 %v1305, %v1524
    %1526 = vmatpush.msra.mxu0 %v1525
    %v1527 = vand.u32 %v588, 4294901760
    %v1528 = vsub.f32 %v588, %v1527
    %1529 = vmatmul.f32.gmra.mxu0 %v1528
    %v1530 = vpop.f32.mrf.mxu0
    %v1531 = vadd.f32 %v1477, %v1530
    %1532 = vdwg.mxu0
    %v1533 = vand.u32 %v1320, 4294901760
    %1534 = vmatpush.msra.mxu0 %v1533
    %v1535 = vand.u32 %v1319, 4294901760
    %1536 = vmatpush.msra.mxu0 %v1535
    %v1537 = vand.u32 %v1318, 4294901760
    %1538 = vmatpush.msra.mxu0 %v1537
    %v1539 = vand.u32 %v1317, 4294901760
    %1540 = vmatpush.msra.mxu0 %v1539
    %v1541 = vand.u32 %v1316, 4294901760
    %1542 = vmatpush.msra.mxu0 %v1541
    %v1543 = vand.u32 %v1315, 4294901760
    %1544 = vmatpush.msra.mxu0 %v1543
    %v1545 = vand.u32 %v1314, 4294901760
    %1546 = vmatpush.msra.mxu0 %v1545
    %v1547 = vand.u32 %v1313, 4294901760
    %1548 = vmatpush.msra.mxu0 %v1547
    %v1549 = vand.u32 %v1312, 4294901760
    %1550 = vmatpush.msra.mxu0 %v1549
    %v1551 = vand.u32 %v1311, 4294901760
    %1552 = vmatpush.msra.mxu0 %v1551
    %v1553 = vand.u32 %v1310, 4294901760
    %1554 = vmatpush.msra.mxu0 %v1553
    %v1555 = vand.u32 %v1309, 4294901760
    %1556 = vmatpush.msra.mxu0 %v1555
    %v1557 = vand.u32 %v1308, 4294901760
    %1558 = vmatpush.msra.mxu0 %v1557
    %v1559 = vand.u32 %v1307, 4294901760
    %1560 = vmatpush.msra.mxu0 %v1559
    %v1561 = vand.u32 %v1306, 4294901760
    %1562 = vmatpush.msra.mxu0 %v1561
    %v1563 = vand.u32 %v1305, 4294901760
    %1564 = vmatpush.msra.mxu0 %v1563
    %v1565 = vand.u32 %v588, 4294901760
    %v1566 = vsub.f32 %v588, %v1565
    %v1567 = vand.u32 %v1566, 4294901760
    %1568 = vmatmul.f32.gmra.mxu0 %v1567
    %v1569 = vpop.f32.mrf.mxu0
    %v1570 = vadd.f32 %v1531, %v1569
    %1571 = vdwg.mxu0
    %v1572 = vand.u32 %v1320, 4294901760
    %v1573 = vsub.f32 %v1320, %v1572
    %v1574 = vand.u32 %v1573, 4294901760
    %1575 = vmatpush.msra.mxu0 %v1574
    %v1576 = vand.u32 %v1319, 4294901760
    %v1577 = vsub.f32 %v1319, %v1576
    %v1578 = vand.u32 %v1577, 4294901760
    %1579 = vmatpush.msra.mxu0 %v1578
    %v1580 = vand.u32 %v1318, 4294901760
    %v1581 = vsub.f32 %v1318, %v1580
    %v1582 = vand.u32 %v1581, 4294901760
    %1583 = vmatpush.msra.mxu0 %v1582
    %v1584 = vand.u32 %v1317, 4294901760
    %v1585 = vsub.f32 %v1317, %v1584
    %v1586 = vand.u32 %v1585, 4294901760
    %1587 = vmatpush.msra.mxu0 %v1586
    %v1588 = vand.u32 %v1316, 4294901760
    %v1589 = vsub.f32 %v1316, %v1588
    %v1590 = vand.u32 %v1589, 4294901760
    %1591 = vmatpush.msra.mxu0 %v1590
    %v1592 = vand.u32 %v1315, 4294901760
    %v1593 = vsub.f32 %v1315, %v1592
    %v1594 = vand.u32 %v1593, 4294901760
    %1595 = vmatpush.msra.mxu0 %v1594
    %v1596 = vand.u32 %v1314, 4294901760
    %v1597 = vsub.f32 %v1314, %v1596
    %v1598 = vand.u32 %v1597, 4294901760
    %1599 = vmatpush.msra.mxu0 %v1598
    %v1600 = vand.u32 %v1313, 4294901760
    %v1601 = vsub.f32 %v1313, %v1600
    %v1602 = vand.u32 %v1601, 4294901760
    %1603 = vmatpush.msra.mxu0 %v1602
    %v1604 = vand.u32 %v1312, 4294901760
    %v1605 = vsub.f32 %v1312, %v1604
    %v1606 = vand.u32 %v1605, 4294901760
    %1607 = vmatpush.msra.mxu0 %v1606
    %v1608 = vand.u32 %v1311, 4294901760
    %v1609 = vsub.f32 %v1311, %v1608
    %v1610 = vand.u32 %v1609, 4294901760
    %1611 = vmatpush.msra.mxu0 %v1610
    %v1612 = vand.u32 %v1310, 4294901760
    %v1613 = vsub.f32 %v1310, %v1612
    %v1614 = vand.u32 %v1613, 4294901760
    %1615 = vmatpush.msra.mxu0 %v1614
    %v1616 = vand.u32 %v1309, 4294901760
    %v1617 = vsub.f32 %v1309, %v1616
    %v1618 = vand.u32 %v1617, 4294901760
    %1619 = vmatpush.msra.mxu0 %v1618
    %v1620 = vand.u32 %v1308, 4294901760
    %v1621 = vsub.f32 %v1308, %v1620
    %v1622 = vand.u32 %v1621, 4294901760
    %1623 = vmatpush.msra.mxu0 %v1622
    %v1624 = vand.u32 %v1307, 4294901760
    %v1625 = vsub.f32 %v1307, %v1624
    %v1626 = vand.u32 %v1625, 4294901760
    %1627 = vmatpush.msra.mxu0 %v1626
    %v1628 = vand.u32 %v1306, 4294901760
    %v1629 = vsub.f32 %v1306, %v1628
    %v1630 = vand.u32 %v1629, 4294901760
    %1631 = vmatpush.msra.mxu0 %v1630
    %v1632 = vand.u32 %v1305, 4294901760
    %v1633 = vsub.f32 %v1305, %v1632
    %v1634 = vand.u32 %v1633, 4294901760
    %1635 = vmatpush.msra.mxu0 %v1634
    %v1636 = vand.u32 %v588, 4294901760
    %1637 = vmatmul.f32.gmra.mxu0 %v1636
    %v1638 = vpop.f32.mrf.mxu0
    %v1639 = vadd.f32 %v1570, %v1638
    %1640 = vdwg.mxu0
    %v1641 = vand.u32 %v1320, 4294901760
    %1642 = vmatpush.msra.mxu0 %v1641
    %v1643 = vand.u32 %v1319, 4294901760
    %1644 = vmatpush.msra.mxu0 %v1643
    %v1645 = vand.u32 %v1318, 4294901760
    %1646 = vmatpush.msra.mxu0 %v1645
    %v1647 = vand.u32 %v1317, 4294901760
    %1648 = vmatpush.msra.mxu0 %v1647
    %v1649 = vand.u32 %v1316, 4294901760
    %1650 = vmatpush.msra.mxu0 %v1649
    %v1651 = vand.u32 %v1315, 4294901760
    %1652 = vmatpush.msra.mxu0 %v1651
    %v1653 = vand.u32 %v1314, 4294901760
    %1654 = vmatpush.msra.mxu0 %v1653
    %v1655 = vand.u32 %v1313, 4294901760
    %1656 = vmatpush.msra.mxu0 %v1655
    %v1657 = vand.u32 %v1312, 4294901760
    %1658 = vmatpush.msra.mxu0 %v1657
    %v1659 = vand.u32 %v1311, 4294901760
    %1660 = vmatpush.msra.mxu0 %v1659
    %v1661 = vand.u32 %v1310, 4294901760
    %1662 = vmatpush.msra.mxu0 %v1661
    %v1663 = vand.u32 %v1309, 4294901760
    %1664 = vmatpush.msra.mxu0 %v1663
    %v1665 = vand.u32 %v1308, 4294901760
    %1666 = vmatpush.msra.mxu0 %v1665
    %v1667 = vand.u32 %v1307, 4294901760
    %1668 = vmatpush.msra.mxu0 %v1667
    %v1669 = vand.u32 %v1306, 4294901760
    %1670 = vmatpush.msra.mxu0 %v1669
    %v1671 = vand.u32 %v1305, 4294901760
    %1672 = vmatpush.msra.mxu0 %v1671
    %v1673 = vand.u32 %v588, 4294901760
    %1674 = vmatmul.f32.gmra.mxu0 %v1673
    %v1675 = vpop.f32.mrf.mxu0
    %v1676 = vadd.f32 %v1639, %v1675
    %1677 = vdwg.mxu0
    %v1678 = vand.u32 %v1336, 4294901760
    %1679 = vmatpush.msra.mxu0 %v1678
    %v1680 = vand.u32 %v1335, 4294901760
    %1681 = vmatpush.msra.mxu0 %v1680
    %v1682 = vand.u32 %v1334, 4294901760
    %1683 = vmatpush.msra.mxu0 %v1682
    %v1684 = vand.u32 %v1333, 4294901760
    %1685 = vmatpush.msra.mxu0 %v1684
    %v1686 = vand.u32 %v1332, 4294901760
    %1687 = vmatpush.msra.mxu0 %v1686
    %v1688 = vand.u32 %v1331, 4294901760
    %1689 = vmatpush.msra.mxu0 %v1688
    %v1690 = vand.u32 %v1330, 4294901760
    %1691 = vmatpush.msra.mxu0 %v1690
    %v1692 = vand.u32 %v1329, 4294901760
    %1693 = vmatpush.msra.mxu0 %v1692
    %v1694 = vand.u32 %v1328, 4294901760
    %1695 = vmatpush.msra.mxu0 %v1694
    %v1696 = vand.u32 %v1327, 4294901760
    %1697 = vmatpush.msra.mxu0 %v1696
    %v1698 = vand.u32 %v1326, 4294901760
    %1699 = vmatpush.msra.mxu0 %v1698
    %v1700 = vand.u32 %v1325, 4294901760
    %1701 = vmatpush.msra.mxu0 %v1700
    %v1702 = vand.u32 %v1324, 4294901760
    %1703 = vmatpush.msra.mxu0 %v1702
    %v1704 = vand.u32 %v1323, 4294901760
    %1705 = vmatpush.msra.mxu0 %v1704
    %v1706 = vand.u32 %v1322, 4294901760
    %1707 = vmatpush.msra.mxu0 %v1706
    %v1708 = vand.u32 %v1321, 4294901760
    %1709 = vmatpush.msra.mxu0 %v1708
    %v1710 = vand.u32 %v589, 4294901760
    %v1711 = vsub.f32 %v589, %v1710
    %v1712 = vand.u32 %v1711, 4294901760
    %v1713 = vsub.f32 %v1711, %v1712
    %v1714 = vand.u32 %v1713, 4294901760
    %1715 = vmatmul.f32.gmra.mxu0 %v1714
    %v1716 = vpop.f32.mrf.mxu0
    %v1717 = vadd.f32 %v1676, %v1716
    %1718 = vdwg.mxu0
    %v1719 = vand.u32 %v1336, 4294901760
    %v1720 = vsub.f32 %v1336, %v1719
    %v1721 = vand.u32 %v1720, 4294901760
    %v1722 = vsub.f32 %v1720, %v1721
    %v1723 = vand.u32 %v1722, 4294901760
    %1724 = vmatpush.msra.mxu0 %v1723
    %v1725 = vand.u32 %v1335, 4294901760
    %v1726 = vsub.f32 %v1335, %v1725
    %v1727 = vand.u32 %v1726, 4294901760
    %v1728 = vsub.f32 %v1726, %v1727
    %v1729 = vand.u32 %v1728, 4294901760
    %1730 = vmatpush.msra.mxu0 %v1729
    %v1731 = vand.u32 %v1334, 4294901760
    %v1732 = vsub.f32 %v1334, %v1731
    %v1733 = vand.u32 %v1732, 4294901760
    %v1734 = vsub.f32 %v1732, %v1733
    %v1735 = vand.u32 %v1734, 4294901760
    %1736 = vmatpush.msra.mxu0 %v1735
    %v1737 = vand.u32 %v1333, 4294901760
    %v1738 = vsub.f32 %v1333, %v1737
    %v1739 = vand.u32 %v1738, 4294901760
    %v1740 = vsub.f32 %v1738, %v1739
    %v1741 = vand.u32 %v1740, 4294901760
    %1742 = vmatpush.msra.mxu0 %v1741
    %v1743 = vand.u32 %v1332, 4294901760
    %v1744 = vsub.f32 %v1332, %v1743
    %v1745 = vand.u32 %v1744, 4294901760
    %v1746 = vsub.f32 %v1744, %v1745
    %v1747 = vand.u32 %v1746, 4294901760
    %1748 = vmatpush.msra.mxu0 %v1747
    %v1749 = vand.u32 %v1331, 4294901760
    %v1750 = vsub.f32 %v1331, %v1749
    %v1751 = vand.u32 %v1750, 4294901760
    %v1752 = vsub.f32 %v1750, %v1751
    %v1753 = vand.u32 %v1752, 4294901760
    %1754 = vmatpush.msra.mxu0 %v1753
    %v1755 = vand.u32 %v1330, 4294901760
    %v1756 = vsub.f32 %v1330, %v1755
    %v1757 = vand.u32 %v1756, 4294901760
    %v1758 = vsub.f32 %v1756, %v1757
    %v1759 = vand.u32 %v1758, 4294901760
    %1760 = vmatpush.msra.mxu0 %v1759
    %v1761 = vand.u32 %v1329, 4294901760
    %v1762 = vsub.f32 %v1329, %v1761
    %v1763 = vand.u32 %v1762, 4294901760
    %v1764 = vsub.f32 %v1762, %v1763
    %v1765 = vand.u32 %v1764, 4294901760
    %1766 = vmatpush.msra.mxu0 %v1765
    %v1767 = vand.u32 %v1328, 4294901760
    %v1768 = vsub.f32 %v1328, %v1767
    %v1769 = vand.u32 %v1768, 4294901760
    %v1770 = vsub.f32 %v1768, %v1769
    %v1771 = vand.u32 %v1770, 4294901760
    %1772 = vmatpush.msra.mxu0 %v1771
    %v1773 = vand.u32 %v1327, 4294901760
    %v1774 = vsub.f32 %v1327, %v1773
    %v1775 = vand.u32 %v1774, 4294901760
    %v1776 = vsub.f32 %v1774, %v1775
    %v1777 = vand.u32 %v1776, 4294901760
    %1778 = vmatpush.msra.mxu0 %v1777
    %v1779 = vand.u32 %v1326, 4294901760
    %v1780 = vsub.f32 %v1326, %v1779
    %v1781 = vand.u32 %v1780, 4294901760
    %v1782 = vsub.f32 %v1780, %v1781
    %v1783 = vand.u32 %v1782, 4294901760
    %1784 = vmatpush.msra.mxu0 %v1783
    %v1785 = vand.u32 %v1325, 4294901760
    %v1786 = vsub.f32 %v1325, %v1785
    %v1787 = vand.u32 %v1786, 4294901760
    %v1788 = vsub.f32 %v1786, %v1787
    %v1789 = vand.u32 %v1788, 4294901760
    %1790 = vmatpush.msra.mxu0 %v1789
    %v1791 = vand.u32 %v1324, 4294901760
    %v1792 = vsub.f32 %v1324, %v1791
    %v1793 = vand.u32 %v1792, 4294901760
    %v1794 = vsub.f32 %v1792, %v1793
    %v1795 = vand.u32 %v1794, 4294901760
    %1796 = vmatpush.msra.mxu0 %v1795
    %v1797 = vand.u32 %v1323, 4294901760
    %v1798 = vsub.f32 %v1323, %v1797
    %v1799 = vand.u32 %v1798, 4294901760
    %v1800 = vsub.f32 %v1798, %v1799
    %v1801 = vand.u32 %v1800, 4294901760
    %1802 = vmatpush.msra.mxu0 %v1801
    %v1803 = vand.u32 %v1322, 4294901760
    %v1804 = vsub.f32 %v1322, %v1803
    %v1805 = vand.u32 %v1804, 4294901760
    %v1806 = vsub.f32 %v1804, %v1805
    %v1807 = vand.u32 %v1806, 4294901760
    %1808 = vmatpush.msra.mxu0 %v1807
    %v1809 = vand.u32 %v1321, 4294901760
    %v1810 = vsub.f32 %v1321, %v1809
    %v1811 = vand.u32 %v1810, 4294901760
    %v1812 = vsub.f32 %v1810, %v1811
    %v1813 = vand.u32 %v1812, 4294901760
    %1814 = vmatpush.msra.mxu0 %v1813
    %v1815 = vand.u32 %v589, 4294901760
    %1816 = vmatmul.f32.gmra.mxu0 %v1815
    %v1817 = vpop.f32.mrf.mxu0
    %v1818 = vadd.f32 %v1717, %v1817
    %1819 = vdwg.mxu0
    %v1820 = vand.u32 %v1336, 4294901760
    %v1821 = vsub.f32 %v1336, %v1820
    %1822 = vmatpush.msra.mxu0 %v1821
    %v1823 = vand.u32 %v1335, 4294901760
    %v1824 = vsub.f32 %v1335, %v1823
    %1825 = vmatpush.msra.mxu0 %v1824
    %v1826 = vand.u32 %v1334, 4294901760
    %v1827 = vsub.f32 %v1334, %v1826
    %1828 = vmatpush.msra.mxu0 %v1827
    %v1829 = vand.u32 %v1333, 4294901760
    %v1830 = vsub.f32 %v1333, %v1829
    %1831 = vmatpush.msra.mxu0 %v1830
    %v1832 = vand.u32 %v1332, 4294901760
    %v1833 = vsub.f32 %v1332, %v1832
    %1834 = vmatpush.msra.mxu0 %v1833
    %v1835 = vand.u32 %v1331, 4294901760
    %v1836 = vsub.f32 %v1331, %v1835
    %1837 = vmatpush.msra.mxu0 %v1836
    %v1838 = vand.u32 %v1330, 4294901760
    %v1839 = vsub.f32 %v1330, %v1838
    %1840 = vmatpush.msra.mxu0 %v1839
    %v1841 = vand.u32 %v1329, 4294901760
    %v1842 = vsub.f32 %v1329, %v1841
    %1843 = vmatpush.msra.mxu0 %v1842
    %v1844 = vand.u32 %v1328, 4294901760
    %v1845 = vsub.f32 %v1328, %v1844
    %1846 = vmatpush.msra.mxu0 %v1845
    %v1847 = vand.u32 %v1327, 4294901760
    %v1848 = vsub.f32 %v1327, %v1847
    %1849 = vmatpush.msra.mxu0 %v1848
    %v1850 = vand.u32 %v1326, 4294901760
    %v1851 = vsub.f32 %v1326, %v1850
    %1852 = vmatpush.msra.mxu0 %v1851
    %v1853 = vand.u32 %v1325, 4294901760
    %v1854 = vsub.f32 %v1325, %v1853
    %1855 = vmatpush.msra.mxu0 %v1854
    %v1856 = vand.u32 %v1324, 4294901760
    %v1857 = vsub.f32 %v1324, %v1856
    %1858 = vmatpush.msra.mxu0 %v1857
    %v1859 = vand.u32 %v1323, 4294901760
    %v1860 = vsub.f32 %v1323, %v1859
    %1861 = vmatpush.msra.mxu0 %v1860
    %v1862 = vand.u32 %v1322, 4294901760
    %v1863 = vsub.f32 %v1322, %v1862
    %1864 = vmatpush.msra.mxu0 %v1863
    %v1865 = vand.u32 %v1321, 4294901760
    %v1866 = vsub.f32 %v1321, %v1865
    %1867 = vmatpush.msra.mxu0 %v1866
    %v1868 = vand.u32 %v589, 4294901760
    %v1869 = vsub.f32 %v589, %v1868
    %1870 = vmatmul.f32.gmra.mxu0 %v1869
    %v1871 = vpop.f32.mrf.mxu0
    %v1872 = vadd.f32 %v1818, %v1871
    %1873 = vdwg.mxu0
    %v1874 = vand.u32 %v1336, 4294901760
    %1875 = vmatpush.msra.mxu0 %v1874
    %v1876 = vand.u32 %v1335, 4294901760
    %1877 = vmatpush.msra.mxu0 %v1876
    %v1878 = vand.u32 %v1334, 4294901760
    %1879 = vmatpush.msra.mxu0 %v1878
    %v1880 = vand.u32 %v1333, 4294901760
    %1881 = vmatpush.msra.mxu0 %v1880
    %v1882 = vand.u32 %v1332, 4294901760
    %1883 = vmatpush.msra.mxu0 %v1882
    %v1884 = vand.u32 %v1331, 4294901760
    %1885 = vmatpush.msra.mxu0 %v1884
    %v1886 = vand.u32 %v1330, 4294901760
    %1887 = vmatpush.msra.mxu0 %v1886
    %v1888 = vand.u32 %v1329, 4294901760
    %1889 = vmatpush.msra.mxu0 %v1888
    %v1890 = vand.u32 %v1328, 4294901760
    %1891 = vmatpush.msra.mxu0 %v1890
    %v1892 = vand.u32 %v1327, 4294901760
    %1893 = vmatpush.msra.mxu0 %v1892
    %v1894 = vand.u32 %v1326, 4294901760
    %1895 = vmatpush.msra.mxu0 %v1894
    %v1896 = vand.u32 %v1325, 4294901760
    %1897 = vmatpush.msra.mxu0 %v1896
    %v1898 = vand.u32 %v1324, 4294901760
    %1899 = vmatpush.msra.mxu0 %v1898
    %v1900 = vand.u32 %v1323, 4294901760
    %1901 = vmatpush.msra.mxu0 %v1900
    %v1902 = vand.u32 %v1322, 4294901760
    %1903 = vmatpush.msra.mxu0 %v1902
    %v1904 = vand.u32 %v1321, 4294901760
    %1905 = vmatpush.msra.mxu0 %v1904
    %v1906 = vand.u32 %v589, 4294901760
    %v1907 = vsub.f32 %v589, %v1906
    %v1908 = vand.u32 %v1907, 4294901760
    %1909 = vmatmul.f32.gmra.mxu0 %v1908
    %v1910 = vpop.f32.mrf.mxu0
    %v1911 = vadd.f32 %v1872, %v1910
    %1912 = vdwg.mxu0
    %v1913 = vand.u32 %v1336, 4294901760
    %v1914 = vsub.f32 %v1336, %v1913
    %v1915 = vand.u32 %v1914, 4294901760
    %1916 = vmatpush.msra.mxu0 %v1915
    %v1917 = vand.u32 %v1335, 4294901760
    %v1918 = vsub.f32 %v1335, %v1917
    %v1919 = vand.u32 %v1918, 4294901760
    %1920 = vmatpush.msra.mxu0 %v1919
    %v1921 = vand.u32 %v1334, 4294901760
    %v1922 = vsub.f32 %v1334, %v1921
    %v1923 = vand.u32 %v1922, 4294901760
    %1924 = vmatpush.msra.mxu0 %v1923
    %v1925 = vand.u32 %v1333, 4294901760
    %v1926 = vsub.f32 %v1333, %v1925
    %v1927 = vand.u32 %v1926, 4294901760
    %1928 = vmatpush.msra.mxu0 %v1927
    %v1929 = vand.u32 %v1332, 4294901760
    %v1930 = vsub.f32 %v1332, %v1929
    %v1931 = vand.u32 %v1930, 4294901760
    %1932 = vmatpush.msra.mxu0 %v1931
    %v1933 = vand.u32 %v1331, 4294901760
    %v1934 = vsub.f32 %v1331, %v1933
    %v1935 = vand.u32 %v1934, 4294901760
    %1936 = vmatpush.msra.mxu0 %v1935
    %v1937 = vand.u32 %v1330, 4294901760
    %v1938 = vsub.f32 %v1330, %v1937
    %v1939 = vand.u32 %v1938, 4294901760
    %1940 = vmatpush.msra.mxu0 %v1939
    %v1941 = vand.u32 %v1329, 4294901760
    %v1942 = vsub.f32 %v1329, %v1941
    %v1943 = vand.u32 %v1942, 4294901760
    %1944 = vmatpush.msra.mxu0 %v1943
    %v1945 = vand.u32 %v1328, 4294901760
    %v1946 = vsub.f32 %v1328, %v1945
    %v1947 = vand.u32 %v1946, 4294901760
    %1948 = vmatpush.msra.mxu0 %v1947
    %v1949 = vand.u32 %v1327, 4294901760
    %v1950 = vsub.f32 %v1327, %v1949
    %v1951 = vand.u32 %v1950, 4294901760
    %1952 = vmatpush.msra.mxu0 %v1951
    %v1953 = vand.u32 %v1326, 4294901760
    %v1954 = vsub.f32 %v1326, %v1953
    %v1955 = vand.u32 %v1954, 4294901760
    %1956 = vmatpush.msra.mxu0 %v1955
    %v1957 = vand.u32 %v1325, 4294901760
    %v1958 = vsub.f32 %v1325, %v1957
    %v1959 = vand.u32 %v1958, 4294901760
    %1960 = vmatpush.msra.mxu0 %v1959
    %v1961 = vand.u32 %v1324, 4294901760
    %v1962 = vsub.f32 %v1324, %v1961
    %v1963 = vand.u32 %v1962, 4294901760
    %1964 = vmatpush.msra.mxu0 %v1963
    %v1965 = vand.u32 %v1323, 4294901760
    %v1966 = vsub.f32 %v1323, %v1965
    %v1967 = vand.u32 %v1966, 4294901760
    %1968 = vmatpush.msra.mxu0 %v1967
    %v1969 = vand.u32 %v1322, 4294901760
    %v1970 = vsub.f32 %v1322, %v1969
    %v1971 = vand.u32 %v1970, 4294901760
    %1972 = vmatpush.msra.mxu0 %v1971
    %v1973 = vand.u32 %v1321, 4294901760
    %v1974 = vsub.f32 %v1321, %v1973
    %v1975 = vand.u32 %v1974, 4294901760
    %1976 = vmatpush.msra.mxu0 %v1975
    %v1977 = vand.u32 %v589, 4294901760
    %1978 = vmatmul.f32.gmra.mxu0 %v1977
    %v1979 = vpop.f32.mrf.mxu0
    %v1980 = vadd.f32 %v1911, %v1979
    %1981 = vdwg.mxu0
    %v1982 = vand.u32 %v1336, 4294901760
    %1983 = vmatpush.msra.mxu0 %v1982
    %v1984 = vand.u32 %v1335, 4294901760
    %1985 = vmatpush.msra.mxu0 %v1984
    %v1986 = vand.u32 %v1334, 4294901760
    %1987 = vmatpush.msra.mxu0 %v1986
    %v1988 = vand.u32 %v1333, 4294901760
    %1989 = vmatpush.msra.mxu0 %v1988
    %v1990 = vand.u32 %v1332, 4294901760
    %1991 = vmatpush.msra.mxu0 %v1990
    %v1992 = vand.u32 %v1331, 4294901760
    %1993 = vmatpush.msra.mxu0 %v1992
    %v1994 = vand.u32 %v1330, 4294901760
    %1995 = vmatpush.msra.mxu0 %v1994
    %v1996 = vand.u32 %v1329, 4294901760
    %1997 = vmatpush.msra.mxu0 %v1996
    %v1998 = vand.u32 %v1328, 4294901760
    %1999 = vmatpush.msra.mxu0 %v1998
    %v2000 = vand.u32 %v1327, 4294901760
    %2001 = vmatpush.msra.mxu0 %v2000
    %v2002 = vand.u32 %v1326, 4294901760
    %2003 = vmatpush.msra.mxu0 %v2002
    %v2004 = vand.u32 %v1325, 4294901760
    %2005 = vmatpush.msra.mxu0 %v2004
    %v2006 = vand.u32 %v1324, 4294901760
    %2007 = vmatpush.msra.mxu0 %v2006
    %v2008 = vand.u32 %v1323, 4294901760
    %2009 = vmatpush.msra.mxu0 %v2008
    %v2010 = vand.u32 %v1322, 4294901760
    %2011 = vmatpush.msra.mxu0 %v2010
    %v2012 = vand.u32 %v1321, 4294901760
    %2013 = vmatpush.msra.mxu0 %v2012
    %v2014 = vand.u32 %v589, 4294901760
    %2015 = vmatmul.f32.gmra.mxu0 %v2014
    %v2016 = vpop.f32.mrf.mxu0
    %v2017 = vadd.f32 %v1980, %v2016
    %2018 = vdwg.mxu0
    %s2019 = scalar_lea.vmem %s3, 512
    %v2020 = vld [vmem:[%s2019] sm:$0xff]
    %v2021 = vld [vmem:[%s2019 + $0x8] sm:$0xff]
    %v2022 = vld [vmem:[%s2019 + $0x10] sm:$0xff]
    %v2023 = vld [vmem:[%s2019 + $0x18] sm:$0xff]
    %v2024 = vld [vmem:[%s2019 + $0x20] sm:$0xff]
    %v2025 = vld [vmem:[%s2019 + $0x28] sm:$0xff]
    %v2026 = vld [vmem:[%s2019 + $0x30] sm:$0xff]
    %v2027 = vld [vmem:[%s2019 + $0x38] sm:$0xff]
    %v2028 = vld [vmem:[%s2019 + $0x40] sm:$0xff]
    %v2029 = vld [vmem:[%s2019 + $0x48] sm:$0xff]
    %v2030 = vld [vmem:[%s2019 + $0x50] sm:$0xff]
    %v2031 = vld [vmem:[%s2019 + $0x58] sm:$0xff]
    %v2032 = vld [vmem:[%s2019 + $0x60] sm:$0xff]
    %v2033 = vld [vmem:[%s2019 + $0x68] sm:$0xff]
    %v2034 = vld [vmem:[%s2019 + $0x70] sm:$0xff]
    %v2035 = vld [vmem:[%s2019 + $0x78] sm:$0xff]
    %v2036 = vld [vmem:[%s2019 + $0x80] sm:$0xff]
    %v2037 = vld [vmem:[%s2019 + $0x88] sm:$0xff]
    %v2038 = vld [vmem:[%s2019 + $0x90] sm:$0xff]
    %v2039 = vld [vmem:[%s2019 + $0x98] sm:$0xff]
    %v2040 = vld [vmem:[%s2019 + $0xa0] sm:$0xff]
    %v2041 = vld [vmem:[%s2019 + $0xa8] sm:$0xff]
    %v2042 = vld [vmem:[%s2019 + $0xb0] sm:$0xff]
    %v2043 = vld [vmem:[%s2019 + $0xb8] sm:$0xff]
    %v2044 = vld [vmem:[%s2019 + $0xc0] sm:$0xff]
    %v2045 = vld [vmem:[%s2019 + $0xc8] sm:$0xff]
    %v2046 = vld [vmem:[%s2019 + $0xd0] sm:$0xff]
    %v2047 = vld [vmem:[%s2019 + $0xd8] sm:$0xff]
    %v2048 = vld [vmem:[%s2019 + $0xe0] sm:$0xff]
    %v2049 = vld [vmem:[%s2019 + $0xe8] sm:$0xff]
    %v2050 = vld [vmem:[%s2019 + $0xf0] sm:$0xff]
    %v2051 = vld [vmem:[%s2019 + $0xf8] sm:$0xff]
    %v2052 = vand.u32 %v2035, 4294901760
    %2053 = vmatpush.msra.mxu0 %v2052
    %v2054 = vand.u32 %v2034, 4294901760
    %2055 = vmatpush.msra.mxu0 %v2054
    %v2056 = vand.u32 %v2033, 4294901760
    %2057 = vmatpush.msra.mxu0 %v2056
    %v2058 = vand.u32 %v2032, 4294901760
    %2059 = vmatpush.msra.mxu0 %v2058
    %v2060 = vand.u32 %v2031, 4294901760
    %2061 = vmatpush.msra.mxu0 %v2060
    %v2062 = vand.u32 %v2030, 4294901760
    %2063 = vmatpush.msra.mxu0 %v2062
    %v2064 = vand.u32 %v2029, 4294901760
    %2065 = vmatpush.msra.mxu0 %v2064
    %v2066 = vand.u32 %v2028, 4294901760
    %2067 = vmatpush.msra.mxu0 %v2066
    %v2068 = vand.u32 %v2027, 4294901760
    %2069 = vmatpush.msra.mxu0 %v2068
    %v2070 = vand.u32 %v2026, 4294901760
    %2071 = vmatpush.msra.mxu0 %v2070
    %v2072 = vand.u32 %v2025, 4294901760
    %2073 = vmatpush.msra.mxu0 %v2072
    %v2074 = vand.u32 %v2024, 4294901760
    %2075 = vmatpush.msra.mxu0 %v2074
    %v2076 = vand.u32 %v2023, 4294901760
    %2077 = vmatpush.msra.mxu0 %v2076
    %v2078 = vand.u32 %v2022, 4294901760
    %2079 = vmatpush.msra.mxu0 %v2078
    %v2080 = vand.u32 %v2021, 4294901760
    %2081 = vmatpush.msra.mxu0 %v2080
    %v2082 = vand.u32 %v2020, 4294901760
    %2083 = vmatpush.msra.mxu0 %v2082
    %v2084 = vand.u32 %v588, 4294901760
    %v2085 = vsub.f32 %v588, %v2084
    %v2086 = vand.u32 %v2085, 4294901760
    %v2087 = vsub.f32 %v2085, %v2086
    %v2088 = vand.u32 %v2087, 4294901760
    %2089 = vmatmul.f32.gmra.mxu0 %v2088
    %v2090 = vpop.f32.mrf.mxu0
    %v2091 = vadd.f32 0.0, %v2090
    %2092 = vdwg.mxu0
    %v2093 = vand.u32 %v2035, 4294901760
    %v2094 = vsub.f32 %v2035, %v2093
    %v2095 = vand.u32 %v2094, 4294901760
    %v2096 = vsub.f32 %v2094, %v2095
    %v2097 = vand.u32 %v2096, 4294901760
    %2098 = vmatpush.msra.mxu0 %v2097
    %v2099 = vand.u32 %v2034, 4294901760
    %v2100 = vsub.f32 %v2034, %v2099
    %v2101 = vand.u32 %v2100, 4294901760
    %v2102 = vsub.f32 %v2100, %v2101
    %v2103 = vand.u32 %v2102, 4294901760
    %2104 = vmatpush.msra.mxu0 %v2103
    %v2105 = vand.u32 %v2033, 4294901760
    %v2106 = vsub.f32 %v2033, %v2105
    %v2107 = vand.u32 %v2106, 4294901760
    %v2108 = vsub.f32 %v2106, %v2107
    %v2109 = vand.u32 %v2108, 4294901760
    %2110 = vmatpush.msra.mxu0 %v2109
    %v2111 = vand.u32 %v2032, 4294901760
    %v2112 = vsub.f32 %v2032, %v2111
    %v2113 = vand.u32 %v2112, 4294901760
    %v2114 = vsub.f32 %v2112, %v2113
    %v2115 = vand.u32 %v2114, 4294901760
    %2116 = vmatpush.msra.mxu0 %v2115
    %v2117 = vand.u32 %v2031, 4294901760
    %v2118 = vsub.f32 %v2031, %v2117
    %v2119 = vand.u32 %v2118, 4294901760
    %v2120 = vsub.f32 %v2118, %v2119
    %v2121 = vand.u32 %v2120, 4294901760
    %2122 = vmatpush.msra.mxu0 %v2121
    %v2123 = vand.u32 %v2030, 4294901760
    %v2124 = vsub.f32 %v2030, %v2123
    %v2125 = vand.u32 %v2124, 4294901760
    %v2126 = vsub.f32 %v2124, %v2125
    %v2127 = vand.u32 %v2126, 4294901760
    %2128 = vmatpush.msra.mxu0 %v2127
    %v2129 = vand.u32 %v2029, 4294901760
    %v2130 = vsub.f32 %v2029, %v2129
    %v2131 = vand.u32 %v2130, 4294901760
    %v2132 = vsub.f32 %v2130, %v2131
    %v2133 = vand.u32 %v2132, 4294901760
    %2134 = vmatpush.msra.mxu0 %v2133
    %v2135 = vand.u32 %v2028, 4294901760
    %v2136 = vsub.f32 %v2028, %v2135
    %v2137 = vand.u32 %v2136, 4294901760
    %v2138 = vsub.f32 %v2136, %v2137
    %v2139 = vand.u32 %v2138, 4294901760
    %2140 = vmatpush.msra.mxu0 %v2139
    %v2141 = vand.u32 %v2027, 4294901760
    %v2142 = vsub.f32 %v2027, %v2141
    %v2143 = vand.u32 %v2142, 4294901760
    %v2144 = vsub.f32 %v2142, %v2143
    %v2145 = vand.u32 %v2144, 4294901760
    %2146 = vmatpush.msra.mxu0 %v2145
    %v2147 = vand.u32 %v2026, 4294901760
    %v2148 = vsub.f32 %v2026, %v2147
    %v2149 = vand.u32 %v2148, 4294901760
    %v2150 = vsub.f32 %v2148, %v2149
    %v2151 = vand.u32 %v2150, 4294901760
    %2152 = vmatpush.msra.mxu0 %v2151
    %v2153 = vand.u32 %v2025, 4294901760
    %v2154 = vsub.f32 %v2025, %v2153
    %v2155 = vand.u32 %v2154, 4294901760
    %v2156 = vsub.f32 %v2154, %v2155
    %v2157 = vand.u32 %v2156, 4294901760
    %2158 = vmatpush.msra.mxu0 %v2157
    %v2159 = vand.u32 %v2024, 4294901760
    %v2160 = vsub.f32 %v2024, %v2159
    %v2161 = vand.u32 %v2160, 4294901760
    %v2162 = vsub.f32 %v2160, %v2161
    %v2163 = vand.u32 %v2162, 4294901760
    %2164 = vmatpush.msra.mxu0 %v2163
    %v2165 = vand.u32 %v2023, 4294901760
    %v2166 = vsub.f32 %v2023, %v2165
    %v2167 = vand.u32 %v2166, 4294901760
    %v2168 = vsub.f32 %v2166, %v2167
    %v2169 = vand.u32 %v2168, 4294901760
    %2170 = vmatpush.msra.mxu0 %v2169
    %v2171 = vand.u32 %v2022, 4294901760
    %v2172 = vsub.f32 %v2022, %v2171
    %v2173 = vand.u32 %v2172, 4294901760
    %v2174 = vsub.f32 %v2172, %v2173
    %v2175 = vand.u32 %v2174, 4294901760
    %2176 = vmatpush.msra.mxu0 %v2175
    %v2177 = vand.u32 %v2021, 4294901760
    %v2178 = vsub.f32 %v2021, %v2177
    %v2179 = vand.u32 %v2178, 4294901760
    %v2180 = vsub.f32 %v2178, %v2179
    %v2181 = vand.u32 %v2180, 4294901760
    %2182 = vmatpush.msra.mxu0 %v2181
    %v2183 = vand.u32 %v2020, 4294901760
    %v2184 = vsub.f32 %v2020, %v2183
    %v2185 = vand.u32 %v2184, 4294901760
    %v2186 = vsub.f32 %v2184, %v2185
    %v2187 = vand.u32 %v2186, 4294901760
    %2188 = vmatpush.msra.mxu0 %v2187
    %v2189 = vand.u32 %v588, 4294901760
    %2190 = vmatmul.f32.gmra.mxu0 %v2189
    %v2191 = vpop.f32.mrf.mxu0
    %v2192 = vadd.f32 %v2091, %v2191
    %2193 = vdwg.mxu0
    %v2194 = vand.u32 %v2035, 4294901760
    %v2195 = vsub.f32 %v2035, %v2194
    %2196 = vmatpush.msra.mxu0 %v2195
    %v2197 = vand.u32 %v2034, 4294901760
    %v2198 = vsub.f32 %v2034, %v2197
    %2199 = vmatpush.msra.mxu0 %v2198
    %v2200 = vand.u32 %v2033, 4294901760
    %v2201 = vsub.f32 %v2033, %v2200
    %2202 = vmatpush.msra.mxu0 %v2201
    %v2203 = vand.u32 %v2032, 4294901760
    %v2204 = vsub.f32 %v2032, %v2203
    %2205 = vmatpush.msra.mxu0 %v2204
    %v2206 = vand.u32 %v2031, 4294901760
    %v2207 = vsub.f32 %v2031, %v2206
    %2208 = vmatpush.msra.mxu0 %v2207
    %v2209 = vand.u32 %v2030, 4294901760
    %v2210 = vsub.f32 %v2030, %v2209
    %2211 = vmatpush.msra.mxu0 %v2210
    %v2212 = vand.u32 %v2029, 4294901760
    %v2213 = vsub.f32 %v2029, %v2212
    %2214 = vmatpush.msra.mxu0 %v2213
    %v2215 = vand.u32 %v2028, 4294901760
    %v2216 = vsub.f32 %v2028, %v2215
    %2217 = vmatpush.msra.mxu0 %v2216
    %v2218 = vand.u32 %v2027, 4294901760
    %v2219 = vsub.f32 %v2027, %v2218
    %2220 = vmatpush.msra.mxu0 %v2219
    %v2221 = vand.u32 %v2026, 4294901760
    %v2222 = vsub.f32 %v2026, %v2221
    %2223 = vmatpush.msra.mxu0 %v2222
    %v2224 = vand.u32 %v2025, 4294901760
    %v2225 = vsub.f32 %v2025, %v2224
    %2226 = vmatpush.msra.mxu0 %v2225
    %v2227 = vand.u32 %v2024, 4294901760
    %v2228 = vsub.f32 %v2024, %v2227
    %2229 = vmatpush.msra.mxu0 %v2228
    %v2230 = vand.u32 %v2023, 4294901760
    %v2231 = vsub.f32 %v2023, %v2230
    %2232 = vmatpush.msra.mxu0 %v2231
    %v2233 = vand.u32 %v2022, 4294901760
    %v2234 = vsub.f32 %v2022, %v2233
    %2235 = vmatpush.msra.mxu0 %v2234
    %v2236 = vand.u32 %v2021, 4294901760
    %v2237 = vsub.f32 %v2021, %v2236
    %2238 = vmatpush.msra.mxu0 %v2237
    %v2239 = vand.u32 %v2020, 4294901760
    %v2240 = vsub.f32 %v2020, %v2239
    %2241 = vmatpush.msra.mxu0 %v2240
    %v2242 = vand.u32 %v588, 4294901760
    %v2243 = vsub.f32 %v588, %v2242
    %2244 = vmatmul.f32.gmra.mxu0 %v2243
    %v2245 = vpop.f32.mrf.mxu0
    %v2246 = vadd.f32 %v2192, %v2245
    %2247 = vdwg.mxu0
    %v2248 = vand.u32 %v2035, 4294901760
    %2249 = vmatpush.msra.mxu0 %v2248
    %v2250 = vand.u32 %v2034, 4294901760
    %2251 = vmatpush.msra.mxu0 %v2250
    %v2252 = vand.u32 %v2033, 4294901760
    %2253 = vmatpush.msra.mxu0 %v2252
    %v2254 = vand.u32 %v2032, 4294901760
    %2255 = vmatpush.msra.mxu0 %v2254
    %v2256 = vand.u32 %v2031, 4294901760
    %2257 = vmatpush.msra.mxu0 %v2256
    %v2258 = vand.u32 %v2030, 4294901760
    %2259 = vmatpush.msra.mxu0 %v2258
    %v2260 = vand.u32 %v2029, 4294901760
    %2261 = vmatpush.msra.mxu0 %v2260
    %v2262 = vand.u32 %v2028, 4294901760
    %2263 = vmatpush.msra.mxu0 %v2262
    %v2264 = vand.u32 %v2027, 4294901760
    %2265 = vmatpush.msra.mxu0 %v2264
    %v2266 = vand.u32 %v2026, 4294901760
    %2267 = vmatpush.msra.mxu0 %v2266
    %v2268 = vand.u32 %v2025, 4294901760
    %2269 = vmatpush.msra.mxu0 %v2268
    %v2270 = vand.u32 %v2024, 4294901760
    %2271 = vmatpush.msra.mxu0 %v2270
    %v2272 = vand.u32 %v2023, 4294901760
    %2273 = vmatpush.msra.mxu0 %v2272
    %v2274 = vand.u32 %v2022, 4294901760
    %2275 = vmatpush.msra.mxu0 %v2274
    %v2276 = vand.u32 %v2021, 4294901760
    %2277 = vmatpush.msra.mxu0 %v2276
    %v2278 = vand.u32 %v2020, 4294901760
    %2279 = vmatpush.msra.mxu0 %v2278
    %v2280 = vand.u32 %v588, 4294901760
    %v2281 = vsub.f32 %v588, %v2280
    %v2282 = vand.u32 %v2281, 4294901760
    %2283 = vmatmul.f32.gmra.mxu0 %v2282
    %v2284 = vpop.f32.mrf.mxu0
    %v2285 = vadd.f32 %v2246, %v2284
    %2286 = vdwg.mxu0
    %v2287 = vand.u32 %v2035, 4294901760
    %v2288 = vsub.f32 %v2035, %v2287
    %v2289 = vand.u32 %v2288, 4294901760
    %2290 = vmatpush.msra.mxu0 %v2289
    %v2291 = vand.u32 %v2034, 4294901760
    %v2292 = vsub.f32 %v2034, %v2291
    %v2293 = vand.u32 %v2292, 4294901760
    %2294 = vmatpush.msra.mxu0 %v2293
    %v2295 = vand.u32 %v2033, 4294901760
    %v2296 = vsub.f32 %v2033, %v2295
    %v2297 = vand.u32 %v2296, 4294901760
    %2298 = vmatpush.msra.mxu0 %v2297
    %v2299 = vand.u32 %v2032, 4294901760
    %v2300 = vsub.f32 %v2032, %v2299
    %v2301 = vand.u32 %v2300, 4294901760
    %2302 = vmatpush.msra.mxu0 %v2301
    %v2303 = vand.u32 %v2031, 4294901760
    %v2304 = vsub.f32 %v2031, %v2303
    %v2305 = vand.u32 %v2304, 4294901760
    %2306 = vmatpush.msra.mxu0 %v2305
    %v2307 = vand.u32 %v2030, 4294901760
    %v2308 = vsub.f32 %v2030, %v2307
    %v2309 = vand.u32 %v2308, 4294901760
    %2310 = vmatpush.msra.mxu0 %v2309
    %v2311 = vand.u32 %v2029, 4294901760
    %v2312 = vsub.f32 %v2029, %v2311
    %v2313 = vand.u32 %v2312, 4294901760
    %2314 = vmatpush.msra.mxu0 %v2313
    %v2315 = vand.u32 %v2028, 4294901760
    %v2316 = vsub.f32 %v2028, %v2315
    %v2317 = vand.u32 %v2316, 4294901760
    %2318 = vmatpush.msra.mxu0 %v2317
    %v2319 = vand.u32 %v2027, 4294901760
    %v2320 = vsub.f32 %v2027, %v2319
    %v2321 = vand.u32 %v2320, 4294901760
    %2322 = vmatpush.msra.mxu0 %v2321
    %v2323 = vand.u32 %v2026, 4294901760
    %v2324 = vsub.f32 %v2026, %v2323
    %v2325 = vand.u32 %v2324, 4294901760
    %2326 = vmatpush.msra.mxu0 %v2325
    %v2327 = vand.u32 %v2025, 4294901760
    %v2328 = vsub.f32 %v2025, %v2327
    %v2329 = vand.u32 %v2328, 4294901760
    %2330 = vmatpush.msra.mxu0 %v2329
    %v2331 = vand.u32 %v2024, 4294901760
    %v2332 = vsub.f32 %v2024, %v2331
    %v2333 = vand.u32 %v2332, 4294901760
    %2334 = vmatpush.msra.mxu0 %v2333
    %v2335 = vand.u32 %v2023, 4294901760
    %v2336 = vsub.f32 %v2023, %v2335
    %v2337 = vand.u32 %v2336, 4294901760
    %2338 = vmatpush.msra.mxu0 %v2337
    %v2339 = vand.u32 %v2022, 4294901760
    %v2340 = vsub.f32 %v2022, %v2339
    %v2341 = vand.u32 %v2340, 4294901760
    %2342 = vmatpush.msra.mxu0 %v2341
    %v2343 = vand.u32 %v2021, 4294901760
    %v2344 = vsub.f32 %v2021, %v2343
    %v2345 = vand.u32 %v2344, 4294901760
    %2346 = vmatpush.msra.mxu0 %v2345
    %v2347 = vand.u32 %v2020, 4294901760
    %v2348 = vsub.f32 %v2020, %v2347
    %v2349 = vand.u32 %v2348, 4294901760
    %2350 = vmatpush.msra.mxu0 %v2349
    %v2351 = vand.u32 %v588, 4294901760
    %2352 = vmatmul.f32.gmra.mxu0 %v2351
    %v2353 = vpop.f32.mrf.mxu0
    %v2354 = vadd.f32 %v2285, %v2353
    %2355 = vdwg.mxu0
    %v2356 = vand.u32 %v2035, 4294901760
    %2357 = vmatpush.msra.mxu0 %v2356
    %v2358 = vand.u32 %v2034, 4294901760
    %2359 = vmatpush.msra.mxu0 %v2358
    %v2360 = vand.u32 %v2033, 4294901760
    %2361 = vmatpush.msra.mxu0 %v2360
    %v2362 = vand.u32 %v2032, 4294901760
    %2363 = vmatpush.msra.mxu0 %v2362
    %v2364 = vand.u32 %v2031, 4294901760
    %2365 = vmatpush.msra.mxu0 %v2364
    %v2366 = vand.u32 %v2030, 4294901760
    %2367 = vmatpush.msra.mxu0 %v2366
    %v2368 = vand.u32 %v2029, 4294901760
    %2369 = vmatpush.msra.mxu0 %v2368
    %v2370 = vand.u32 %v2028, 4294901760
    %2371 = vmatpush.msra.mxu0 %v2370
    %v2372 = vand.u32 %v2027, 4294901760
    %2373 = vmatpush.msra.mxu0 %v2372
    %v2374 = vand.u32 %v2026, 4294901760
    %2375 = vmatpush.msra.mxu0 %v2374
    %v2376 = vand.u32 %v2025, 4294901760
    %2377 = vmatpush.msra.mxu0 %v2376
    %v2378 = vand.u32 %v2024, 4294901760
    %2379 = vmatpush.msra.mxu0 %v2378
    %v2380 = vand.u32 %v2023, 4294901760
    %2381 = vmatpush.msra.mxu0 %v2380
    %v2382 = vand.u32 %v2022, 4294901760
    %2383 = vmatpush.msra.mxu0 %v2382
    %v2384 = vand.u32 %v2021, 4294901760
    %2385 = vmatpush.msra.mxu0 %v2384
    %v2386 = vand.u32 %v2020, 4294901760
    %2387 = vmatpush.msra.mxu0 %v2386
    %v2388 = vand.u32 %v588, 4294901760
    %2389 = vmatmul.f32.gmra.mxu0 %v2388
    %v2390 = vpop.f32.mrf.mxu0
    %v2391 = vadd.f32 %v2354, %v2390
    %2392 = vdwg.mxu0
    %v2393 = vand.u32 %v2051, 4294901760
    %2394 = vmatpush.msra.mxu0 %v2393
    %v2395 = vand.u32 %v2050, 4294901760
    %2396 = vmatpush.msra.mxu0 %v2395
    %v2397 = vand.u32 %v2049, 4294901760
    %2398 = vmatpush.msra.mxu0 %v2397
    %v2399 = vand.u32 %v2048, 4294901760
    %2400 = vmatpush.msra.mxu0 %v2399
    %v2401 = vand.u32 %v2047, 4294901760
    %2402 = vmatpush.msra.mxu0 %v2401
    %v2403 = vand.u32 %v2046, 4294901760
    %2404 = vmatpush.msra.mxu0 %v2403
    %v2405 = vand.u32 %v2045, 4294901760
    %2406 = vmatpush.msra.mxu0 %v2405
    %v2407 = vand.u32 %v2044, 4294901760
    %2408 = vmatpush.msra.mxu0 %v2407
    %v2409 = vand.u32 %v2043, 4294901760
    %2410 = vmatpush.msra.mxu0 %v2409
    %v2411 = vand.u32 %v2042, 4294901760
    %2412 = vmatpush.msra.mxu0 %v2411
    %v2413 = vand.u32 %v2041, 4294901760
    %2414 = vmatpush.msra.mxu0 %v2413
    %v2415 = vand.u32 %v2040, 4294901760
    %2416 = vmatpush.msra.mxu0 %v2415
    %v2417 = vand.u32 %v2039, 4294901760
    %2418 = vmatpush.msra.mxu0 %v2417
    %v2419 = vand.u32 %v2038, 4294901760
    %2420 = vmatpush.msra.mxu0 %v2419
    %v2421 = vand.u32 %v2037, 4294901760
    %2422 = vmatpush.msra.mxu0 %v2421
    %v2423 = vand.u32 %v2036, 4294901760
    %2424 = vmatpush.msra.mxu0 %v2423
    %v2425 = vand.u32 %v589, 4294901760
    %v2426 = vsub.f32 %v589, %v2425
    %v2427 = vand.u32 %v2426, 4294901760
    %v2428 = vsub.f32 %v2426, %v2427
    %v2429 = vand.u32 %v2428, 4294901760
    %2430 = vmatmul.f32.gmra.mxu0 %v2429
    %v2431 = vpop.f32.mrf.mxu0
    %v2432 = vadd.f32 %v2391, %v2431
    %2433 = vdwg.mxu0
    %v2434 = vand.u32 %v2051, 4294901760
    %v2435 = vsub.f32 %v2051, %v2434
    %v2436 = vand.u32 %v2435, 4294901760
    %v2437 = vsub.f32 %v2435, %v2436
    %v2438 = vand.u32 %v2437, 4294901760
    %2439 = vmatpush.msra.mxu0 %v2438
    %v2440 = vand.u32 %v2050, 4294901760
    %v2441 = vsub.f32 %v2050, %v2440
    %v2442 = vand.u32 %v2441, 4294901760
    %v2443 = vsub.f32 %v2441, %v2442
    %v2444 = vand.u32 %v2443, 4294901760
    %2445 = vmatpush.msra.mxu0 %v2444
    %v2446 = vand.u32 %v2049, 4294901760
    %v2447 = vsub.f32 %v2049, %v2446
    %v2448 = vand.u32 %v2447, 4294901760
    %v2449 = vsub.f32 %v2447, %v2448
    %v2450 = vand.u32 %v2449, 4294901760
    %2451 = vmatpush.msra.mxu0 %v2450
    %v2452 = vand.u32 %v2048, 4294901760
    %v2453 = vsub.f32 %v2048, %v2452
    %v2454 = vand.u32 %v2453, 4294901760
    %v2455 = vsub.f32 %v2453, %v2454
    %v2456 = vand.u32 %v2455, 4294901760
    %2457 = vmatpush.msra.mxu0 %v2456
    %v2458 = vand.u32 %v2047, 4294901760
    %v2459 = vsub.f32 %v2047, %v2458
    %v2460 = vand.u32 %v2459, 4294901760
    %v2461 = vsub.f32 %v2459, %v2460
    %v2462 = vand.u32 %v2461, 4294901760
    %2463 = vmatpush.msra.mxu0 %v2462
    %v2464 = vand.u32 %v2046, 4294901760
    %v2465 = vsub.f32 %v2046, %v2464
    %v2466 = vand.u32 %v2465, 4294901760
    %v2467 = vsub.f32 %v2465, %v2466
    %v2468 = vand.u32 %v2467, 4294901760
    %2469 = vmatpush.msra.mxu0 %v2468
    %v2470 = vand.u32 %v2045, 4294901760
    %v2471 = vsub.f32 %v2045, %v2470
    %v2472 = vand.u32 %v2471, 4294901760
    %v2473 = vsub.f32 %v2471, %v2472
    %v2474 = vand.u32 %v2473, 4294901760
    %2475 = vmatpush.msra.mxu0 %v2474
    %v2476 = vand.u32 %v2044, 4294901760
    %v2477 = vsub.f32 %v2044, %v2476
    %v2478 = vand.u32 %v2477, 4294901760
    %v2479 = vsub.f32 %v2477, %v2478
    %v2480 = vand.u32 %v2479, 4294901760
    %2481 = vmatpush.msra.mxu0 %v2480
    %v2482 = vand.u32 %v2043, 4294901760
    %v2483 = vsub.f32 %v2043, %v2482
    %v2484 = vand.u32 %v2483, 4294901760
    %v2485 = vsub.f32 %v2483, %v2484
    %v2486 = vand.u32 %v2485, 4294901760
    %2487 = vmatpush.msra.mxu0 %v2486
    %v2488 = vand.u32 %v2042, 4294901760
    %v2489 = vsub.f32 %v2042, %v2488
    %v2490 = vand.u32 %v2489, 4294901760
    %v2491 = vsub.f32 %v2489, %v2490
    %v2492 = vand.u32 %v2491, 4294901760
    %2493 = vmatpush.msra.mxu0 %v2492
    %v2494 = vand.u32 %v2041, 4294901760
    %v2495 = vsub.f32 %v2041, %v2494
    %v2496 = vand.u32 %v2495, 4294901760
    %v2497 = vsub.f32 %v2495, %v2496
    %v2498 = vand.u32 %v2497, 4294901760
    %2499 = vmatpush.msra.mxu0 %v2498
    %v2500 = vand.u32 %v2040, 4294901760
    %v2501 = vsub.f32 %v2040, %v2500
    %v2502 = vand.u32 %v2501, 4294901760
    %v2503 = vsub.f32 %v2501, %v2502
    %v2504 = vand.u32 %v2503, 4294901760
    %2505 = vmatpush.msra.mxu0 %v2504
    %v2506 = vand.u32 %v2039, 4294901760
    %v2507 = vsub.f32 %v2039, %v2506
    %v2508 = vand.u32 %v2507, 4294901760
    %v2509 = vsub.f32 %v2507, %v2508
    %v2510 = vand.u32 %v2509, 4294901760
    %2511 = vmatpush.msra.mxu0 %v2510
    %v2512 = vand.u32 %v2038, 4294901760
    %v2513 = vsub.f32 %v2038, %v2512
    %v2514 = vand.u32 %v2513, 4294901760
    %v2515 = vsub.f32 %v2513, %v2514
    %v2516 = vand.u32 %v2515, 4294901760
    %2517 = vmatpush.msra.mxu0 %v2516
    %v2518 = vand.u32 %v2037, 4294901760
    %v2519 = vsub.f32 %v2037, %v2518
    %v2520 = vand.u32 %v2519, 4294901760
    %v2521 = vsub.f32 %v2519, %v2520
    %v2522 = vand.u32 %v2521, 4294901760
    %2523 = vmatpush.msra.mxu0 %v2522
    %v2524 = vand.u32 %v2036, 4294901760
    %v2525 = vsub.f32 %v2036, %v2524
    %v2526 = vand.u32 %v2525, 4294901760
    %v2527 = vsub.f32 %v2525, %v2526
    %v2528 = vand.u32 %v2527, 4294901760
    %2529 = vmatpush.msra.mxu0 %v2528
    %v2530 = vand.u32 %v589, 4294901760
    %2531 = vmatmul.f32.gmra.mxu0 %v2530
    %v2532 = vpop.f32.mrf.mxu0
    %v2533 = vadd.f32 %v2432, %v2532
    %2534 = vdwg.mxu0
    %v2535 = vand.u32 %v2051, 4294901760
    %v2536 = vsub.f32 %v2051, %v2535
    %2537 = vmatpush.msra.mxu0 %v2536
    %v2538 = vand.u32 %v2050, 4294901760
    %v2539 = vsub.f32 %v2050, %v2538
    %2540 = vmatpush.msra.mxu0 %v2539
    %v2541 = vand.u32 %v2049, 4294901760
    %v2542 = vsub.f32 %v2049, %v2541
    %2543 = vmatpush.msra.mxu0 %v2542
    %v2544 = vand.u32 %v2048, 4294901760
    %v2545 = vsub.f32 %v2048, %v2544
    %2546 = vmatpush.msra.mxu0 %v2545
    %v2547 = vand.u32 %v2047, 4294901760
    %v2548 = vsub.f32 %v2047, %v2547
    %2549 = vmatpush.msra.mxu0 %v2548
    %v2550 = vand.u32 %v2046, 4294901760
    %v2551 = vsub.f32 %v2046, %v2550
    %2552 = vmatpush.msra.mxu0 %v2551
    %v2553 = vand.u32 %v2045, 4294901760
    %v2554 = vsub.f32 %v2045, %v2553
    %2555 = vmatpush.msra.mxu0 %v2554
    %v2556 = vand.u32 %v2044, 4294901760
    %v2557 = vsub.f32 %v2044, %v2556
    %2558 = vmatpush.msra.mxu0 %v2557
    %v2559 = vand.u32 %v2043, 4294901760
    %v2560 = vsub.f32 %v2043, %v2559
    %2561 = vmatpush.msra.mxu0 %v2560
    %v2562 = vand.u32 %v2042, 4294901760
    %v2563 = vsub.f32 %v2042, %v2562
    %2564 = vmatpush.msra.mxu0 %v2563
    %v2565 = vand.u32 %v2041, 4294901760
    %v2566 = vsub.f32 %v2041, %v2565
    %2567 = vmatpush.msra.mxu0 %v2566
    %v2568 = vand.u32 %v2040, 4294901760
    %v2569 = vsub.f32 %v2040, %v2568
    %2570 = vmatpush.msra.mxu0 %v2569
    %v2571 = vand.u32 %v2039, 4294901760
    %v2572 = vsub.f32 %v2039, %v2571
    %2573 = vmatpush.msra.mxu0 %v2572
    %v2574 = vand.u32 %v2038, 4294901760
    %v2575 = vsub.f32 %v2038, %v2574
    %2576 = vmatpush.msra.mxu0 %v2575
    %v2577 = vand.u32 %v2037, 4294901760
    %v2578 = vsub.f32 %v2037, %v2577
    %2579 = vmatpush.msra.mxu0 %v2578
    %v2580 = vand.u32 %v2036, 4294901760
    %v2581 = vsub.f32 %v2036, %v2580
    %2582 = vmatpush.msra.mxu0 %v2581
    %v2583 = vand.u32 %v589, 4294901760
    %v2584 = vsub.f32 %v589, %v2583
    %2585 = vmatmul.f32.gmra.mxu0 %v2584
    %v2586 = vpop.f32.mrf.mxu0
    %v2587 = vadd.f32 %v2533, %v2586
    %2588 = vdwg.mxu0
    %v2589 = vand.u32 %v2051, 4294901760
    %2590 = vmatpush.msra.mxu0 %v2589
    %v2591 = vand.u32 %v2050, 4294901760
    %2592 = vmatpush.msra.mxu0 %v2591
    %v2593 = vand.u32 %v2049, 4294901760
    %2594 = vmatpush.msra.mxu0 %v2593
    %v2595 = vand.u32 %v2048, 4294901760
    %2596 = vmatpush.msra.mxu0 %v2595
    %v2597 = vand.u32 %v2047, 4294901760
    %2598 = vmatpush.msra.mxu0 %v2597
    %v2599 = vand.u32 %v2046, 4294901760
    %2600 = vmatpush.msra.mxu0 %v2599
    %v2601 = vand.u32 %v2045, 4294901760
    %2602 = vmatpush.msra.mxu0 %v2601
    %v2603 = vand.u32 %v2044, 4294901760
    %2604 = vmatpush.msra.mxu0 %v2603
    %v2605 = vand.u32 %v2043, 4294901760
    %2606 = vmatpush.msra.mxu0 %v2605
    %v2607 = vand.u32 %v2042, 4294901760
    %2608 = vmatpush.msra.mxu0 %v2607
    %v2609 = vand.u32 %v2041, 4294901760
    %2610 = vmatpush.msra.mxu0 %v2609
    %v2611 = vand.u32 %v2040, 4294901760
    %2612 = vmatpush.msra.mxu0 %v2611
    %v2613 = vand.u32 %v2039, 4294901760
    %2614 = vmatpush.msra.mxu0 %v2613
    %v2615 = vand.u32 %v2038, 4294901760
    %2616 = vmatpush.msra.mxu0 %v2615
    %v2617 = vand.u32 %v2037, 4294901760
    %2618 = vmatpush.msra.mxu0 %v2617
    %v2619 = vand.u32 %v2036, 4294901760
    %2620 = vmatpush.msra.mxu0 %v2619
    %v2621 = vand.u32 %v589, 4294901760
    %v2622 = vsub.f32 %v589, %v2621
    %v2623 = vand.u32 %v2622, 4294901760
    %2624 = vmatmul.f32.gmra.mxu0 %v2623
    %v2625 = vpop.f32.mrf.mxu0
    %v2626 = vadd.f32 %v2587, %v2625
    %2627 = vdwg.mxu0
    %v2628 = vand.u32 %v2051, 4294901760
    %v2629 = vsub.f32 %v2051, %v2628
    %v2630 = vand.u32 %v2629, 4294901760
    %2631 = vmatpush.msra.mxu0 %v2630
    %v2632 = vand.u32 %v2050, 4294901760
    %v2633 = vsub.f32 %v2050, %v2632
    %v2634 = vand.u32 %v2633, 4294901760
    %2635 = vmatpush.msra.mxu0 %v2634
    %v2636 = vand.u32 %v2049, 4294901760
    %v2637 = vsub.f32 %v2049, %v2636
    %v2638 = vand.u32 %v2637, 4294901760
    %2639 = vmatpush.msra.mxu0 %v2638
    %v2640 = vand.u32 %v2048, 4294901760
    %v2641 = vsub.f32 %v2048, %v2640
    %v2642 = vand.u32 %v2641, 4294901760
    %2643 = vmatpush.msra.mxu0 %v2642
    %v2644 = vand.u32 %v2047, 4294901760
    %v2645 = vsub.f32 %v2047, %v2644
    %v2646 = vand.u32 %v2645, 4294901760
    %2647 = vmatpush.msra.mxu0 %v2646
    %v2648 = vand.u32 %v2046, 4294901760
    %v2649 = vsub.f32 %v2046, %v2648
    %v2650 = vand.u32 %v2649, 4294901760
    %2651 = vmatpush.msra.mxu0 %v2650
    %v2652 = vand.u32 %v2045, 4294901760
    %v2653 = vsub.f32 %v2045, %v2652
    %v2654 = vand.u32 %v2653, 4294901760
    %2655 = vmatpush.msra.mxu0 %v2654
    %v2656 = vand.u32 %v2044, 4294901760
    %v2657 = vsub.f32 %v2044, %v2656
    %v2658 = vand.u32 %v2657, 4294901760
    %2659 = vmatpush.msra.mxu0 %v2658
    %v2660 = vand.u32 %v2043, 4294901760
    %v2661 = vsub.f32 %v2043, %v2660
    %v2662 = vand.u32 %v2661, 4294901760
    %2663 = vmatpush.msra.mxu0 %v2662
    %v2664 = vand.u32 %v2042, 4294901760
    %v2665 = vsub.f32 %v2042, %v2664
    %v2666 = vand.u32 %v2665, 4294901760
    %2667 = vmatpush.msra.mxu0 %v2666
    %v2668 = vand.u32 %v2041, 4294901760
    %v2669 = vsub.f32 %v2041, %v2668
    %v2670 = vand.u32 %v2669, 4294901760
    %2671 = vmatpush.msra.mxu0 %v2670
    %v2672 = vand.u32 %v2040, 4294901760
    %v2673 = vsub.f32 %v2040, %v2672
    %v2674 = vand.u32 %v2673, 4294901760
    %2675 = vmatpush.msra.mxu0 %v2674
    %v2676 = vand.u32 %v2039, 4294901760
    %v2677 = vsub.f32 %v2039, %v2676
    %v2678 = vand.u32 %v2677, 4294901760
    %2679 = vmatpush.msra.mxu0 %v2678
    %v2680 = vand.u32 %v2038, 4294901760
    %v2681 = vsub.f32 %v2038, %v2680
    %v2682 = vand.u32 %v2681, 4294901760
    %2683 = vmatpush.msra.mxu0 %v2682
    %v2684 = vand.u32 %v2037, 4294901760
    %v2685 = vsub.f32 %v2037, %v2684
    %v2686 = vand.u32 %v2685, 4294901760
    %2687 = vmatpush.msra.mxu0 %v2686
    %v2688 = vand.u32 %v2036, 4294901760
    %v2689 = vsub.f32 %v2036, %v2688
    %v2690 = vand.u32 %v2689, 4294901760
    %2691 = vmatpush.msra.mxu0 %v2690
    %v2692 = vand.u32 %v589, 4294901760
    %2693 = vmatmul.f32.gmra.mxu0 %v2692
    %v2694 = vpop.f32.mrf.mxu0
    %v2695 = vadd.f32 %v2626, %v2694
    %2696 = vdwg.mxu0
    %v2697 = vand.u32 %v2051, 4294901760
    %2698 = vmatpush.msra.mxu0 %v2697
    %v2699 = vand.u32 %v2050, 4294901760
    %2700 = vmatpush.msra.mxu0 %v2699
    %v2701 = vand.u32 %v2049, 4294901760
    %2702 = vmatpush.msra.mxu0 %v2701
    %v2703 = vand.u32 %v2048, 4294901760
    %2704 = vmatpush.msra.mxu0 %v2703
    %v2705 = vand.u32 %v2047, 4294901760
    %2706 = vmatpush.msra.mxu0 %v2705
    %v2707 = vand.u32 %v2046, 4294901760
    %2708 = vmatpush.msra.mxu0 %v2707
    %v2709 = vand.u32 %v2045, 4294901760
    %2710 = vmatpush.msra.mxu0 %v2709
    %v2711 = vand.u32 %v2044, 4294901760
    %2712 = vmatpush.msra.mxu0 %v2711
    %v2713 = vand.u32 %v2043, 4294901760
    %2714 = vmatpush.msra.mxu0 %v2713
    %v2715 = vand.u32 %v2042, 4294901760
    %2716 = vmatpush.msra.mxu0 %v2715
    %v2717 = vand.u32 %v2041, 4294901760
    %2718 = vmatpush.msra.mxu0 %v2717
    %v2719 = vand.u32 %v2040, 4294901760
    %2720 = vmatpush.msra.mxu0 %v2719
    %v2721 = vand.u32 %v2039, 4294901760
    %2722 = vmatpush.msra.mxu0 %v2721
    %v2723 = vand.u32 %v2038, 4294901760
    %2724 = vmatpush.msra.mxu0 %v2723
    %v2725 = vand.u32 %v2037, 4294901760
    %2726 = vmatpush.msra.mxu0 %v2725
    %v2727 = vand.u32 %v2036, 4294901760
    %2728 = vmatpush.msra.mxu0 %v2727
    %v2729 = vand.u32 %v589, 4294901760
    %2730 = vmatmul.f32.gmra.mxu0 %v2729
    %v2731 = vpop.f32.mrf.mxu0
    %v2732 = vadd.f32 %v2695, %v2731
    %2733 = vdwg.mxu0
    %s2734 = scalar_lea.vmem %s3, 768
    %v2735 = vld [vmem:[%s2734] sm:$0xff]
    %v2736 = vld [vmem:[%s2734 + $0x8] sm:$0xff]
    %v2737 = vld [vmem:[%s2734 + $0x10] sm:$0xff]
    %v2738 = vld [vmem:[%s2734 + $0x18] sm:$0xff]
    %v2739 = vld [vmem:[%s2734 + $0x20] sm:$0xff]
    %v2740 = vld [vmem:[%s2734 + $0x28] sm:$0xff]
    %v2741 = vld [vmem:[%s2734 + $0x30] sm:$0xff]
    %v2742 = vld [vmem:[%s2734 + $0x38] sm:$0xff]
    %v2743 = vld [vmem:[%s2734 + $0x40] sm:$0xff]
    %v2744 = vld [vmem:[%s2734 + $0x48] sm:$0xff]
    %v2745 = vld [vmem:[%s2734 + $0x50] sm:$0xff]
    %v2746 = vld [vmem:[%s2734 + $0x58] sm:$0xff]
    %v2747 = vld [vmem:[%s2734 + $0x60] sm:$0xff]
    %v2748 = vld [vmem:[%s2734 + $0x68] sm:$0xff]
    %v2749 = vld [vmem:[%s2734 + $0x70] sm:$0xff]
    %v2750 = vld [vmem:[%s2734 + $0x78] sm:$0xff]
    %v2751 = vld [vmem:[%s2734 + $0x80] sm:$0xff]
    %v2752 = vld [vmem:[%s2734 + $0x88] sm:$0xff]
    %v2753 = vld [vmem:[%s2734 + $0x90] sm:$0xff]
    %v2754 = vld [vmem:[%s2734 + $0x98] sm:$0xff]
    %v2755 = vld [vmem:[%s2734 + $0xa0] sm:$0xff]
    %v2756 = vld [vmem:[%s2734 + $0xa8] sm:$0xff]
    %v2757 = vld [vmem:[%s2734 + $0xb0] sm:$0xff]
    %v2758 = vld [vmem:[%s2734 + $0xb8] sm:$0xff]
    %v2759 = vld [vmem:[%s2734 + $0xc0] sm:$0xff]
    %v2760 = vld [vmem:[%s2734 + $0xc8] sm:$0xff]
    %v2761 = vld [vmem:[%s2734 + $0xd0] sm:$0xff]
    %v2762 = vld [vmem:[%s2734 + $0xd8] sm:$0xff]
    %v2763 = vld [vmem:[%s2734 + $0xe0] sm:$0xff]
    %v2764 = vld [vmem:[%s2734 + $0xe8] sm:$0xff]
    %v2765 = vld [vmem:[%s2734 + $0xf0] sm:$0xff]
    %v2766 = vld [vmem:[%s2734 + $0xf8] sm:$0xff]
    %v2767 = vand.u32 %v2750, 4294901760
    %2768 = vmatpush.msra.mxu0 %v2767
    %v2769 = vand.u32 %v2749, 4294901760
    %2770 = vmatpush.msra.mxu0 %v2769
    %v2771 = vand.u32 %v2748, 4294901760
    %2772 = vmatpush.msra.mxu0 %v2771
    %v2773 = vand.u32 %v2747, 4294901760
    %2774 = vmatpush.msra.mxu0 %v2773
    %v2775 = vand.u32 %v2746, 4294901760
    %2776 = vmatpush.msra.mxu0 %v2775
    %v2777 = vand.u32 %v2745, 4294901760
    %2778 = vmatpush.msra.mxu0 %v2777
    %v2779 = vand.u32 %v2744, 4294901760
    %2780 = vmatpush.msra.mxu0 %v2779
    %v2781 = vand.u32 %v2743, 4294901760
    %2782 = vmatpush.msra.mxu0 %v2781
    %v2783 = vand.u32 %v2742, 4294901760
    %2784 = vmatpush.msra.mxu0 %v2783
    %v2785 = vand.u32 %v2741, 4294901760
    %2786 = vmatpush.msra.mxu0 %v2785
    %v2787 = vand.u32 %v2740, 4294901760
    %2788 = vmatpush.msra.mxu0 %v2787
    %v2789 = vand.u32 %v2739, 4294901760
    %2790 = vmatpush.msra.mxu0 %v2789
    %v2791 = vand.u32 %v2738, 4294901760
    %2792 = vmatpush.msra.mxu0 %v2791
    %v2793 = vand.u32 %v2737, 4294901760
    %2794 = vmatpush.msra.mxu0 %v2793
    %v2795 = vand.u32 %v2736, 4294901760
    %2796 = vmatpush.msra.mxu0 %v2795
    %v2797 = vand.u32 %v2735, 4294901760
    %2798 = vmatpush.msra.mxu0 %v2797
    %v2799 = vand.u32 %v588, 4294901760
    %v2800 = vsub.f32 %v588, %v2799
    %v2801 = vand.u32 %v2800, 4294901760
    %v2802 = vsub.f32 %v2800, %v2801
    %v2803 = vand.u32 %v2802, 4294901760
    %2804 = vmatmul.f32.gmra.mxu0 %v2803
    %v2805 = vpop.f32.mrf.mxu0
    %v2806 = vadd.f32 0.0, %v2805
    %2807 = vdwg.mxu0
    %v2808 = vand.u32 %v2750, 4294901760
    %v2809 = vsub.f32 %v2750, %v2808
    %v2810 = vand.u32 %v2809, 4294901760
    %v2811 = vsub.f32 %v2809, %v2810
    %v2812 = vand.u32 %v2811, 4294901760
    %2813 = vmatpush.msra.mxu0 %v2812
    %v2814 = vand.u32 %v2749, 4294901760
    %v2815 = vsub.f32 %v2749, %v2814
    %v2816 = vand.u32 %v2815, 4294901760
    %v2817 = vsub.f32 %v2815, %v2816
    %v2818 = vand.u32 %v2817, 4294901760
    %2819 = vmatpush.msra.mxu0 %v2818
    %v2820 = vand.u32 %v2748, 4294901760
    %v2821 = vsub.f32 %v2748, %v2820
    %v2822 = vand.u32 %v2821, 4294901760
    %v2823 = vsub.f32 %v2821, %v2822
    %v2824 = vand.u32 %v2823, 4294901760
    %2825 = vmatpush.msra.mxu0 %v2824
    %v2826 = vand.u32 %v2747, 4294901760
    %v2827 = vsub.f32 %v2747, %v2826
    %v2828 = vand.u32 %v2827, 4294901760
    %v2829 = vsub.f32 %v2827, %v2828
    %v2830 = vand.u32 %v2829, 4294901760
    %2831 = vmatpush.msra.mxu0 %v2830
    %v2832 = vand.u32 %v2746, 4294901760
    %v2833 = vsub.f32 %v2746, %v2832
    %v2834 = vand.u32 %v2833, 4294901760
    %v2835 = vsub.f32 %v2833, %v2834
    %v2836 = vand.u32 %v2835, 4294901760
    %2837 = vmatpush.msra.mxu0 %v2836
    %v2838 = vand.u32 %v2745, 4294901760
    %v2839 = vsub.f32 %v2745, %v2838
    %v2840 = vand.u32 %v2839, 4294901760
    %v2841 = vsub.f32 %v2839, %v2840
    %v2842 = vand.u32 %v2841, 4294901760
    %2843 = vmatpush.msra.mxu0 %v2842
    %v2844 = vand.u32 %v2744, 4294901760
    %v2845 = vsub.f32 %v2744, %v2844
    %v2846 = vand.u32 %v2845, 4294901760
    %v2847 = vsub.f32 %v2845, %v2846
    %v2848 = vand.u32 %v2847, 4294901760
    %2849 = vmatpush.msra.mxu0 %v2848
    %v2850 = vand.u32 %v2743, 4294901760
    %v2851 = vsub.f32 %v2743, %v2850
    %v2852 = vand.u32 %v2851, 4294901760
    %v2853 = vsub.f32 %v2851, %v2852
    %v2854 = vand.u32 %v2853, 4294901760
    %2855 = vmatpush.msra.mxu0 %v2854
    %v2856 = vand.u32 %v2742, 4294901760
    %v2857 = vsub.f32 %v2742, %v2856
    %v2858 = vand.u32 %v2857, 4294901760
    %v2859 = vsub.f32 %v2857, %v2858
    %v2860 = vand.u32 %v2859, 4294901760
    %2861 = vmatpush.msra.mxu0 %v2860
    %v2862 = vand.u32 %v2741, 4294901760
    %v2863 = vsub.f32 %v2741, %v2862
    %v2864 = vand.u32 %v2863, 4294901760
    %v2865 = vsub.f32 %v2863, %v2864
    %v2866 = vand.u32 %v2865, 4294901760
    %2867 = vmatpush.msra.mxu0 %v2866
    %v2868 = vand.u32 %v2740, 4294901760
    %v2869 = vsub.f32 %v2740, %v2868
    %v2870 = vand.u32 %v2869, 4294901760
    %v2871 = vsub.f32 %v2869, %v2870
    %v2872 = vand.u32 %v2871, 4294901760
    %2873 = vmatpush.msra.mxu0 %v2872
    %v2874 = vand.u32 %v2739, 4294901760
    %v2875 = vsub.f32 %v2739, %v2874
    %v2876 = vand.u32 %v2875, 4294901760
    %v2877 = vsub.f32 %v2875, %v2876
    %v2878 = vand.u32 %v2877, 4294901760
    %2879 = vmatpush.msra.mxu0 %v2878
    %v2880 = vand.u32 %v2738, 4294901760
    %v2881 = vsub.f32 %v2738, %v2880
    %v2882 = vand.u32 %v2881, 4294901760
    %v2883 = vsub.f32 %v2881, %v2882
    %v2884 = vand.u32 %v2883, 4294901760
    %2885 = vmatpush.msra.mxu0 %v2884
    %v2886 = vand.u32 %v2737, 4294901760
    %v2887 = vsub.f32 %v2737, %v2886
    %v2888 = vand.u32 %v2887, 4294901760
    %v2889 = vsub.f32 %v2887, %v2888
    %v2890 = vand.u32 %v2889, 4294901760
    %2891 = vmatpush.msra.mxu0 %v2890
    %v2892 = vand.u32 %v2736, 4294901760
    %v2893 = vsub.f32 %v2736, %v2892
    %v2894 = vand.u32 %v2893, 4294901760
    %v2895 = vsub.f32 %v2893, %v2894
    %v2896 = vand.u32 %v2895, 4294901760
    %2897 = vmatpush.msra.mxu0 %v2896
    %v2898 = vand.u32 %v2735, 4294901760
    %v2899 = vsub.f32 %v2735, %v2898
    %v2900 = vand.u32 %v2899, 4294901760
    %v2901 = vsub.f32 %v2899, %v2900
    %v2902 = vand.u32 %v2901, 4294901760
    %2903 = vmatpush.msra.mxu0 %v2902
    %v2904 = vand.u32 %v588, 4294901760
    %2905 = vmatmul.f32.gmra.mxu0 %v2904
    %v2906 = vpop.f32.mrf.mxu0
    %v2907 = vadd.f32 %v2806, %v2906
    %2908 = vdwg.mxu0
    %v2909 = vand.u32 %v2750, 4294901760
    %v2910 = vsub.f32 %v2750, %v2909
    %2911 = vmatpush.msra.mxu0 %v2910
    %v2912 = vand.u32 %v2749, 4294901760
    %v2913 = vsub.f32 %v2749, %v2912
    %2914 = vmatpush.msra.mxu0 %v2913
    %v2915 = vand.u32 %v2748, 4294901760
    %v2916 = vsub.f32 %v2748, %v2915
    %2917 = vmatpush.msra.mxu0 %v2916
    %v2918 = vand.u32 %v2747, 4294901760
    %v2919 = vsub.f32 %v2747, %v2918
    %2920 = vmatpush.msra.mxu0 %v2919
    %v2921 = vand.u32 %v2746, 4294901760
    %v2922 = vsub.f32 %v2746, %v2921
    %2923 = vmatpush.msra.mxu0 %v2922
    %v2924 = vand.u32 %v2745, 4294901760
    %v2925 = vsub.f32 %v2745, %v2924
    %2926 = vmatpush.msra.mxu0 %v2925
    %v2927 = vand.u32 %v2744, 4294901760
    %v2928 = vsub.f32 %v2744, %v2927
    %2929 = vmatpush.msra.mxu0 %v2928
    %v2930 = vand.u32 %v2743, 4294901760
    %v2931 = vsub.f32 %v2743, %v2930
    %2932 = vmatpush.msra.mxu0 %v2931
    %v2933 = vand.u32 %v2742, 4294901760
    %v2934 = vsub.f32 %v2742, %v2933
    %2935 = vmatpush.msra.mxu0 %v2934
    %v2936 = vand.u32 %v2741, 4294901760
    %v2937 = vsub.f32 %v2741, %v2936
    %2938 = vmatpush.msra.mxu0 %v2937
    %v2939 = vand.u32 %v2740, 4294901760
    %v2940 = vsub.f32 %v2740, %v2939
    %2941 = vmatpush.msra.mxu0 %v2940
    %v2942 = vand.u32 %v2739, 4294901760
    %v2943 = vsub.f32 %v2739, %v2942
    %2944 = vmatpush.msra.mxu0 %v2943
    %v2945 = vand.u32 %v2738, 4294901760
    %v2946 = vsub.f32 %v2738, %v2945
    %2947 = vmatpush.msra.mxu0 %v2946
    %v2948 = vand.u32 %v2737, 4294901760
    %v2949 = vsub.f32 %v2737, %v2948
    %2950 = vmatpush.msra.mxu0 %v2949
    %v2951 = vand.u32 %v2736, 4294901760
    %v2952 = vsub.f32 %v2736, %v2951
    %2953 = vmatpush.msra.mxu0 %v2952
    %v2954 = vand.u32 %v2735, 4294901760
    %v2955 = vsub.f32 %v2735, %v2954
    %2956 = vmatpush.msra.mxu0 %v2955
    %v2957 = vand.u32 %v588, 4294901760
    %v2958 = vsub.f32 %v588, %v2957
    %2959 = vmatmul.f32.gmra.mxu0 %v2958
    %v2960 = vpop.f32.mrf.mxu0
    %v2961 = vadd.f32 %v2907, %v2960
    %2962 = vdwg.mxu0
    %v2963 = vand.u32 %v2750, 4294901760
    %2964 = vmatpush.msra.mxu0 %v2963
    %v2965 = vand.u32 %v2749, 4294901760
    %2966 = vmatpush.msra.mxu0 %v2965
    %v2967 = vand.u32 %v2748, 4294901760
    %2968 = vmatpush.msra.mxu0 %v2967
    %v2969 = vand.u32 %v2747, 4294901760
    %2970 = vmatpush.msra.mxu0 %v2969
    %v2971 = vand.u32 %v2746, 4294901760
    %2972 = vmatpush.msra.mxu0 %v2971
    %v2973 = vand.u32 %v2745, 4294901760
    %2974 = vmatpush.msra.mxu0 %v2973
    %v2975 = vand.u32 %v2744, 4294901760
    %2976 = vmatpush.msra.mxu0 %v2975
    %v2977 = vand.u32 %v2743, 4294901760
    %2978 = vmatpush.msra.mxu0 %v2977
    %v2979 = vand.u32 %v2742, 4294901760
    %2980 = vmatpush.msra.mxu0 %v2979
    %v2981 = vand.u32 %v2741, 4294901760
    %2982 = vmatpush.msra.mxu0 %v2981
    %v2983 = vand.u32 %v2740, 4294901760
    %2984 = vmatpush.msra.mxu0 %v2983
    %v2985 = vand.u32 %v2739, 4294901760
    %2986 = vmatpush.msra.mxu0 %v2985
    %v2987 = vand.u32 %v2738, 4294901760
    %2988 = vmatpush.msra.mxu0 %v2987
    %v2989 = vand.u32 %v2737, 4294901760
    %2990 = vmatpush.msra.mxu0 %v2989
    %v2991 = vand.u32 %v2736, 4294901760
    %2992 = vmatpush.msra.mxu0 %v2991
    %v2993 = vand.u32 %v2735, 4294901760
    %2994 = vmatpush.msra.mxu0 %v2993
    %v2995 = vand.u32 %v588, 4294901760
    %v2996 = vsub.f32 %v588, %v2995
    %v2997 = vand.u32 %v2996, 4294901760
    %2998 = vmatmul.f32.gmra.mxu0 %v2997
    %v2999 = vpop.f32.mrf.mxu0
    %v3000 = vadd.f32 %v2961, %v2999
    %3001 = vdwg.mxu0
    %v3002 = vand.u32 %v2750, 4294901760
    %v3003 = vsub.f32 %v2750, %v3002
    %v3004 = vand.u32 %v3003, 4294901760
    %3005 = vmatpush.msra.mxu0 %v3004
    %v3006 = vand.u32 %v2749, 4294901760
    %v3007 = vsub.f32 %v2749, %v3006
    %v3008 = vand.u32 %v3007, 4294901760
    %3009 = vmatpush.msra.mxu0 %v3008
    %v3010 = vand.u32 %v2748, 4294901760
    %v3011 = vsub.f32 %v2748, %v3010
    %v3012 = vand.u32 %v3011, 4294901760
    %3013 = vmatpush.msra.mxu0 %v3012
    %v3014 = vand.u32 %v2747, 4294901760
    %v3015 = vsub.f32 %v2747, %v3014
    %v3016 = vand.u32 %v3015, 4294901760
    %3017 = vmatpush.msra.mxu0 %v3016
    %v3018 = vand.u32 %v2746, 4294901760
    %v3019 = vsub.f32 %v2746, %v3018
    %v3020 = vand.u32 %v3019, 4294901760
    %3021 = vmatpush.msra.mxu0 %v3020
    %v3022 = vand.u32 %v2745, 4294901760
    %v3023 = vsub.f32 %v2745, %v3022
    %v3024 = vand.u32 %v3023, 4294901760
    %3025 = vmatpush.msra.mxu0 %v3024
    %v3026 = vand.u32 %v2744, 4294901760
    %v3027 = vsub.f32 %v2744, %v3026
    %v3028 = vand.u32 %v3027, 4294901760
    %3029 = vmatpush.msra.mxu0 %v3028
    %v3030 = vand.u32 %v2743, 4294901760
    %v3031 = vsub.f32 %v2743, %v3030
    %v3032 = vand.u32 %v3031, 4294901760
    %3033 = vmatpush.msra.mxu0 %v3032
    %v3034 = vand.u32 %v2742, 4294901760
    %v3035 = vsub.f32 %v2742, %v3034
    %v3036 = vand.u32 %v3035, 4294901760
    %3037 = vmatpush.msra.mxu0 %v3036
    %v3038 = vand.u32 %v2741, 4294901760
    %v3039 = vsub.f32 %v2741, %v3038
    %v3040 = vand.u32 %v3039, 4294901760
    %3041 = vmatpush.msra.mxu0 %v3040
    %v3042 = vand.u32 %v2740, 4294901760
    %v3043 = vsub.f32 %v2740, %v3042
    %v3044 = vand.u32 %v3043, 4294901760
    %3045 = vmatpush.msra.mxu0 %v3044
    %v3046 = vand.u32 %v2739, 4294901760
    %v3047 = vsub.f32 %v2739, %v3046
    %v3048 = vand.u32 %v3047, 4294901760
    %3049 = vmatpush.msra.mxu0 %v3048
    %v3050 = vand.u32 %v2738, 4294901760
    %v3051 = vsub.f32 %v2738, %v3050
    %v3052 = vand.u32 %v3051, 4294901760
    %3053 = vmatpush.msra.mxu0 %v3052
    %v3054 = vand.u32 %v2737, 4294901760
    %v3055 = vsub.f32 %v2737, %v3054
    %v3056 = vand.u32 %v3055, 4294901760
    %3057 = vmatpush.msra.mxu0 %v3056
    %v3058 = vand.u32 %v2736, 4294901760
    %v3059 = vsub.f32 %v2736, %v3058
    %v3060 = vand.u32 %v3059, 4294901760
    %3061 = vmatpush.msra.mxu0 %v3060
    %v3062 = vand.u32 %v2735, 4294901760
    %v3063 = vsub.f32 %v2735, %v3062
    %v3064 = vand.u32 %v3063, 4294901760
    %3065 = vmatpush.msra.mxu0 %v3064
    %v3066 = vand.u32 %v588, 4294901760
    %3067 = vmatmul.f32.gmra.mxu0 %v3066
    %v3068 = vpop.f32.mrf.mxu0
    %v3069 = vadd.f32 %v3000, %v3068
    %3070 = vdwg.mxu0
    %v3071 = vand.u32 %v2750, 4294901760
    %3072 = vmatpush.msra.mxu0 %v3071
    %v3073 = vand.u32 %v2749, 4294901760
    %3074 = vmatpush.msra.mxu0 %v3073
    %v3075 = vand.u32 %v2748, 4294901760
    %3076 = vmatpush.msra.mxu0 %v3075
    %v3077 = vand.u32 %v2747, 4294901760
    %3078 = vmatpush.msra.mxu0 %v3077
    %v3079 = vand.u32 %v2746, 4294901760
    %3080 = vmatpush.msra.mxu0 %v3079
    %v3081 = vand.u32 %v2745, 4294901760
    %3082 = vmatpush.msra.mxu0 %v3081
    %v3083 = vand.u32 %v2744, 4294901760
    %3084 = vmatpush.msra.mxu0 %v3083
    %v3085 = vand.u32 %v2743, 4294901760
    %3086 = vmatpush.msra.mxu0 %v3085
    %v3087 = vand.u32 %v2742, 4294901760
    %3088 = vmatpush.msra.mxu0 %v3087
    %v3089 = vand.u32 %v2741, 4294901760
    %3090 = vmatpush.msra.mxu0 %v3089
    %v3091 = vand.u32 %v2740, 4294901760
    %3092 = vmatpush.msra.mxu0 %v3091
    %v3093 = vand.u32 %v2739, 4294901760
    %3094 = vmatpush.msra.mxu0 %v3093
    %v3095 = vand.u32 %v2738, 4294901760
    %3096 = vmatpush.msra.mxu0 %v3095
    %v3097 = vand.u32 %v2737, 4294901760
    %3098 = vmatpush.msra.mxu0 %v3097
    %v3099 = vand.u32 %v2736, 4294901760
    %3100 = vmatpush.msra.mxu0 %v3099
    %v3101 = vand.u32 %v2735, 4294901760
    %3102 = vmatpush.msra.mxu0 %v3101
    %v3103 = vand.u32 %v588, 4294901760
    %3104 = vmatmul.f32.gmra.mxu0 %v3103
    %v3105 = vpop.f32.mrf.mxu0
    %v3106 = vadd.f32 %v3069, %v3105
    %3107 = vdwg.mxu0
    %v3108 = vand.u32 %v2766, 4294901760
    %3109 = vmatpush.msra.mxu0 %v3108
    %v3110 = vand.u32 %v2765, 4294901760
    %3111 = vmatpush.msra.mxu0 %v3110
    %v3112 = vand.u32 %v2764, 4294901760
    %3113 = vmatpush.msra.mxu0 %v3112
    %v3114 = vand.u32 %v2763, 4294901760
    %3115 = vmatpush.msra.mxu0 %v3114
    %v3116 = vand.u32 %v2762, 4294901760
    %3117 = vmatpush.msra.mxu0 %v3116
    %v3118 = vand.u32 %v2761, 4294901760
    %3119 = vmatpush.msra.mxu0 %v3118
    %v3120 = vand.u32 %v2760, 4294901760
    %3121 = vmatpush.msra.mxu0 %v3120
    %v3122 = vand.u32 %v2759, 4294901760
    %3123 = vmatpush.msra.mxu0 %v3122
    %v3124 = vand.u32 %v2758, 4294901760
    %3125 = vmatpush.msra.mxu0 %v3124
    %v3126 = vand.u32 %v2757, 4294901760
    %3127 = vmatpush.msra.mxu0 %v3126
    %v3128 = vand.u32 %v2756, 4294901760
    %3129 = vmatpush.msra.mxu0 %v3128
    %v3130 = vand.u32 %v2755, 4294901760
    %3131 = vmatpush.msra.mxu0 %v3130
    %v3132 = vand.u32 %v2754, 4294901760
    %3133 = vmatpush.msra.mxu0 %v3132
    %v3134 = vand.u32 %v2753, 4294901760
    %3135 = vmatpush.msra.mxu0 %v3134
    %v3136 = vand.u32 %v2752, 4294901760
    %3137 = vmatpush.msra.mxu0 %v3136
    %v3138 = vand.u32 %v2751, 4294901760
    %3139 = vmatpush.msra.mxu0 %v3138
    %v3140 = vand.u32 %v589, 4294901760
    %v3141 = vsub.f32 %v589, %v3140
    %v3142 = vand.u32 %v3141, 4294901760
    %v3143 = vsub.f32 %v3141, %v3142
    %v3144 = vand.u32 %v3143, 4294901760
    %3145 = vmatmul.f32.gmra.mxu0 %v3144
    %v3146 = vpop.f32.mrf.mxu0
    %v3147 = vadd.f32 %v3106, %v3146
    %3148 = vdwg.mxu0
    %v3149 = vand.u32 %v2766, 4294901760
    %v3150 = vsub.f32 %v2766, %v3149
    %v3151 = vand.u32 %v3150, 4294901760
    %v3152 = vsub.f32 %v3150, %v3151
    %v3153 = vand.u32 %v3152, 4294901760
    %3154 = vmatpush.msra.mxu0 %v3153
    %v3155 = vand.u32 %v2765, 4294901760
    %v3156 = vsub.f32 %v2765, %v3155
    %v3157 = vand.u32 %v3156, 4294901760
    %v3158 = vsub.f32 %v3156, %v3157
    %v3159 = vand.u32 %v3158, 4294901760
    %3160 = vmatpush.msra.mxu0 %v3159
    %v3161 = vand.u32 %v2764, 4294901760
    %v3162 = vsub.f32 %v2764, %v3161
    %v3163 = vand.u32 %v3162, 4294901760
    %v3164 = vsub.f32 %v3162, %v3163
    %v3165 = vand.u32 %v3164, 4294901760
    %3166 = vmatpush.msra.mxu0 %v3165
    %v3167 = vand.u32 %v2763, 4294901760
    %v3168 = vsub.f32 %v2763, %v3167
    %v3169 = vand.u32 %v3168, 4294901760
    %v3170 = vsub.f32 %v3168, %v3169
    %v3171 = vand.u32 %v3170, 4294901760
    %3172 = vmatpush.msra.mxu0 %v3171
    %v3173 = vand.u32 %v2762, 4294901760
    %v3174 = vsub.f32 %v2762, %v3173
    %v3175 = vand.u32 %v3174, 4294901760
    %v3176 = vsub.f32 %v3174, %v3175
    %v3177 = vand.u32 %v3176, 4294901760
    %3178 = vmatpush.msra.mxu0 %v3177
    %v3179 = vand.u32 %v2761, 4294901760
    %v3180 = vsub.f32 %v2761, %v3179
    %v3181 = vand.u32 %v3180, 4294901760
    %v3182 = vsub.f32 %v3180, %v3181
    %v3183 = vand.u32 %v3182, 4294901760
    %3184 = vmatpush.msra.mxu0 %v3183
    %v3185 = vand.u32 %v2760, 4294901760
    %v3186 = vsub.f32 %v2760, %v3185
    %v3187 = vand.u32 %v3186, 4294901760
    %v3188 = vsub.f32 %v3186, %v3187
    %v3189 = vand.u32 %v3188, 4294901760
    %3190 = vmatpush.msra.mxu0 %v3189
    %v3191 = vand.u32 %v2759, 4294901760
    %v3192 = vsub.f32 %v2759, %v3191
    %v3193 = vand.u32 %v3192, 4294901760
    %v3194 = vsub.f32 %v3192, %v3193
    %v3195 = vand.u32 %v3194, 4294901760
    %3196 = vmatpush.msra.mxu0 %v3195
    %v3197 = vand.u32 %v2758, 4294901760
    %v3198 = vsub.f32 %v2758, %v3197
    %v3199 = vand.u32 %v3198, 4294901760
    %v3200 = vsub.f32 %v3198, %v3199
    %v3201 = vand.u32 %v3200, 4294901760
    %3202 = vmatpush.msra.mxu0 %v3201
    %v3203 = vand.u32 %v2757, 4294901760
    %v3204 = vsub.f32 %v2757, %v3203
    %v3205 = vand.u32 %v3204, 4294901760
    %v3206 = vsub.f32 %v3204, %v3205
    %v3207 = vand.u32 %v3206, 4294901760
    %3208 = vmatpush.msra.mxu0 %v3207
    %v3209 = vand.u32 %v2756, 4294901760
    %v3210 = vsub.f32 %v2756, %v3209
    %v3211 = vand.u32 %v3210, 4294901760
    %v3212 = vsub.f32 %v3210, %v3211
    %v3213 = vand.u32 %v3212, 4294901760
    %3214 = vmatpush.msra.mxu0 %v3213
    %v3215 = vand.u32 %v2755, 4294901760
    %v3216 = vsub.f32 %v2755, %v3215
    %v3217 = vand.u32 %v3216, 4294901760
    %v3218 = vsub.f32 %v3216, %v3217
    %v3219 = vand.u32 %v3218, 4294901760
    %3220 = vmatpush.msra.mxu0 %v3219
    %v3221 = vand.u32 %v2754, 4294901760
    %v3222 = vsub.f32 %v2754, %v3221
    %v3223 = vand.u32 %v3222, 4294901760
    %v3224 = vsub.f32 %v3222, %v3223
    %v3225 = vand.u32 %v3224, 4294901760
    %3226 = vmatpush.msra.mxu0 %v3225
    %v3227 = vand.u32 %v2753, 4294901760
    %v3228 = vsub.f32 %v2753, %v3227
    %v3229 = vand.u32 %v3228, 4294901760
    %v3230 = vsub.f32 %v3228, %v3229
    %v3231 = vand.u32 %v3230, 4294901760
    %3232 = vmatpush.msra.mxu0 %v3231
    %v3233 = vand.u32 %v2752, 4294901760
    %v3234 = vsub.f32 %v2752, %v3233
    %v3235 = vand.u32 %v3234, 4294901760
    %v3236 = vsub.f32 %v3234, %v3235
    %v3237 = vand.u32 %v3236, 4294901760
    %3238 = vmatpush.msra.mxu0 %v3237
    %v3239 = vand.u32 %v2751, 4294901760
    %v3240 = vsub.f32 %v2751, %v3239
    %v3241 = vand.u32 %v3240, 4294901760
    %v3242 = vsub.f32 %v3240, %v3241
    %v3243 = vand.u32 %v3242, 4294901760
    %3244 = vmatpush.msra.mxu0 %v3243
    %v3245 = vand.u32 %v589, 4294901760
    %3246 = vmatmul.f32.gmra.mxu0 %v3245
    %v3247 = vpop.f32.mrf.mxu0
    %v3248 = vadd.f32 %v3147, %v3247
    %3249 = vdwg.mxu0
    %v3250 = vand.u32 %v2766, 4294901760
    %v3251 = vsub.f32 %v2766, %v3250
    %3252 = vmatpush.msra.mxu0 %v3251
    %v3253 = vand.u32 %v2765, 4294901760
    %v3254 = vsub.f32 %v2765, %v3253
    %3255 = vmatpush.msra.mxu0 %v3254
    %v3256 = vand.u32 %v2764, 4294901760
    %v3257 = vsub.f32 %v2764, %v3256
    %3258 = vmatpush.msra.mxu0 %v3257
    %v3259 = vand.u32 %v2763, 4294901760
    %v3260 = vsub.f32 %v2763, %v3259
    %3261 = vmatpush.msra.mxu0 %v3260
    %v3262 = vand.u32 %v2762, 4294901760
    %v3263 = vsub.f32 %v2762, %v3262
    %3264 = vmatpush.msra.mxu0 %v3263
    %v3265 = vand.u32 %v2761, 4294901760
    %v3266 = vsub.f32 %v2761, %v3265
    %3267 = vmatpush.msra.mxu0 %v3266
    %v3268 = vand.u32 %v2760, 4294901760
    %v3269 = vsub.f32 %v2760, %v3268
    %3270 = vmatpush.msra.mxu0 %v3269
    %v3271 = vand.u32 %v2759, 4294901760
    %v3272 = vsub.f32 %v2759, %v3271
    %3273 = vmatpush.msra.mxu0 %v3272
    %v3274 = vand.u32 %v2758, 4294901760
    %v3275 = vsub.f32 %v2758, %v3274
    %3276 = vmatpush.msra.mxu0 %v3275
    %v3277 = vand.u32 %v2757, 4294901760
    %v3278 = vsub.f32 %v2757, %v3277
    %3279 = vmatpush.msra.mxu0 %v3278
    %v3280 = vand.u32 %v2756, 4294901760
    %v3281 = vsub.f32 %v2756, %v3280
    %3282 = vmatpush.msra.mxu0 %v3281
    %v3283 = vand.u32 %v2755, 4294901760
    %v3284 = vsub.f32 %v2755, %v3283
    %3285 = vmatpush.msra.mxu0 %v3284
    %v3286 = vand.u32 %v2754, 4294901760
    %v3287 = vsub.f32 %v2754, %v3286
    %3288 = vmatpush.msra.mxu0 %v3287
    %v3289 = vand.u32 %v2753, 4294901760
    %v3290 = vsub.f32 %v2753, %v3289
    %3291 = vmatpush.msra.mxu0 %v3290
    %v3292 = vand.u32 %v2752, 4294901760
    %v3293 = vsub.f32 %v2752, %v3292
    %3294 = vmatpush.msra.mxu0 %v3293
    %v3295 = vand.u32 %v2751, 4294901760
    %v3296 = vsub.f32 %v2751, %v3295
    %3297 = vmatpush.msra.mxu0 %v3296
    %v3298 = vand.u32 %v589, 4294901760
    %v3299 = vsub.f32 %v589, %v3298
    %3300 = vmatmul.f32.gmra.mxu0 %v3299
    %v3301 = vpop.f32.mrf.mxu0
    %v3302 = vadd.f32 %v3248, %v3301
    %3303 = vdwg.mxu0
    %v3304 = vand.u32 %v2766, 4294901760
    %3305 = vmatpush.msra.mxu0 %v3304
    %v3306 = vand.u32 %v2765, 4294901760
    %3307 = vmatpush.msra.mxu0 %v3306
    %v3308 = vand.u32 %v2764, 4294901760
    %3309 = vmatpush.msra.mxu0 %v3308
    %v3310 = vand.u32 %v2763, 4294901760
    %3311 = vmatpush.msra.mxu0 %v3310
    %v3312 = vand.u32 %v2762, 4294901760
    %3313 = vmatpush.msra.mxu0 %v3312
    %v3314 = vand.u32 %v2761, 4294901760
    %3315 = vmatpush.msra.mxu0 %v3314
    %v3316 = vand.u32 %v2760, 4294901760
    %3317 = vmatpush.msra.mxu0 %v3316
    %v3318 = vand.u32 %v2759, 4294901760
    %3319 = vmatpush.msra.mxu0 %v3318
    %v3320 = vand.u32 %v2758, 4294901760
    %3321 = vmatpush.msra.mxu0 %v3320
    %v3322 = vand.u32 %v2757, 4294901760
    %3323 = vmatpush.msra.mxu0 %v3322
    %v3324 = vand.u32 %v2756, 4294901760
    %3325 = vmatpush.msra.mxu0 %v3324
    %v3326 = vand.u32 %v2755, 4294901760
    %3327 = vmatpush.msra.mxu0 %v3326
    %v3328 = vand.u32 %v2754, 4294901760
    %3329 = vmatpush.msra.mxu0 %v3328
    %v3330 = vand.u32 %v2753, 4294901760
    %3331 = vmatpush.msra.mxu0 %v3330
    %v3332 = vand.u32 %v2752, 4294901760
    %3333 = vmatpush.msra.mxu0 %v3332
    %v3334 = vand.u32 %v2751, 4294901760
    %3335 = vmatpush.msra.mxu0 %v3334
    %v3336 = vand.u32 %v589, 4294901760
    %v3337 = vsub.f32 %v589, %v3336
    %v3338 = vand.u32 %v3337, 4294901760
    %3339 = vmatmul.f32.gmra.mxu0 %v3338
    %v3340 = vpop.f32.mrf.mxu0
    %v3341 = vadd.f32 %v3302, %v3340
    %3342 = vdwg.mxu0
    %v3343 = vand.u32 %v2766, 4294901760
    %v3344 = vsub.f32 %v2766, %v3343
    %v3345 = vand.u32 %v3344, 4294901760
    %3346 = vmatpush.msra.mxu0 %v3345
    %v3347 = vand.u32 %v2765, 4294901760
    %v3348 = vsub.f32 %v2765, %v3347
    %v3349 = vand.u32 %v3348, 4294901760
    %3350 = vmatpush.msra.mxu0 %v3349
    %v3351 = vand.u32 %v2764, 4294901760
    %v3352 = vsub.f32 %v2764, %v3351
    %v3353 = vand.u32 %v3352, 4294901760
    %3354 = vmatpush.msra.mxu0 %v3353
    %v3355 = vand.u32 %v2763, 4294901760
    %v3356 = vsub.f32 %v2763, %v3355
    %v3357 = vand.u32 %v3356, 4294901760
    %3358 = vmatpush.msra.mxu0 %v3357
    %v3359 = vand.u32 %v2762, 4294901760
    %v3360 = vsub.f32 %v2762, %v3359
    %v3361 = vand.u32 %v3360, 4294901760
    %3362 = vmatpush.msra.mxu0 %v3361
    %v3363 = vand.u32 %v2761, 4294901760
    %v3364 = vsub.f32 %v2761, %v3363
    %v3365 = vand.u32 %v3364, 4294901760
    %3366 = vmatpush.msra.mxu0 %v3365
    %v3367 = vand.u32 %v2760, 4294901760
    %v3368 = vsub.f32 %v2760, %v3367
    %v3369 = vand.u32 %v3368, 4294901760
    %3370 = vmatpush.msra.mxu0 %v3369
    %v3371 = vand.u32 %v2759, 4294901760
    %v3372 = vsub.f32 %v2759, %v3371
    %v3373 = vand.u32 %v3372, 4294901760
    %3374 = vmatpush.msra.mxu0 %v3373
    %v3375 = vand.u32 %v2758, 4294901760
    %v3376 = vsub.f32 %v2758, %v3375
    %v3377 = vand.u32 %v3376, 4294901760
    %3378 = vmatpush.msra.mxu0 %v3377
    %v3379 = vand.u32 %v2757, 4294901760
    %v3380 = vsub.f32 %v2757, %v3379
    %v3381 = vand.u32 %v3380, 4294901760
    %3382 = vmatpush.msra.mxu0 %v3381
    %v3383 = vand.u32 %v2756, 4294901760
    %v3384 = vsub.f32 %v2756, %v3383
    %v3385 = vand.u32 %v3384, 4294901760
    %3386 = vmatpush.msra.mxu0 %v3385
    %v3387 = vand.u32 %v2755, 4294901760
    %v3388 = vsub.f32 %v2755, %v3387
    %v3389 = vand.u32 %v3388, 4294901760
    %3390 = vmatpush.msra.mxu0 %v3389
    %v3391 = vand.u32 %v2754, 4294901760
    %v3392 = vsub.f32 %v2754, %v3391
    %v3393 = vand.u32 %v3392, 4294901760
    %3394 = vmatpush.msra.mxu0 %v3393
    %v3395 = vand.u32 %v2753, 4294901760
    %v3396 = vsub.f32 %v2753, %v3395
    %v3397 = vand.u32 %v3396, 4294901760
    %3398 = vmatpush.msra.mxu0 %v3397
    %v3399 = vand.u32 %v2752, 4294901760
    %v3400 = vsub.f32 %v2752, %v3399
    %v3401 = vand.u32 %v3400, 4294901760
    %3402 = vmatpush.msra.mxu0 %v3401
    %v3403 = vand.u32 %v2751, 4294901760
    %v3404 = vsub.f32 %v2751, %v3403
    %v3405 = vand.u32 %v3404, 4294901760
    %3406 = vmatpush.msra.mxu0 %v3405
    %v3407 = vand.u32 %v589, 4294901760
    %3408 = vmatmul.f32.gmra.mxu0 %v3407
    %v3409 = vpop.f32.mrf.mxu0
    %v3410 = vadd.f32 %v3341, %v3409
    %3411 = vdwg.mxu0
    %v3412 = vand.u32 %v2766, 4294901760
    %3413 = vmatpush.msra.mxu0 %v3412
    %v3414 = vand.u32 %v2765, 4294901760
    %3415 = vmatpush.msra.mxu0 %v3414
    %v3416 = vand.u32 %v2764, 4294901760
    %3417 = vmatpush.msra.mxu0 %v3416
    %v3418 = vand.u32 %v2763, 4294901760
    %3419 = vmatpush.msra.mxu0 %v3418
    %v3420 = vand.u32 %v2762, 4294901760
    %3421 = vmatpush.msra.mxu0 %v3420
    %v3422 = vand.u32 %v2761, 4294901760
    %3423 = vmatpush.msra.mxu0 %v3422
    %v3424 = vand.u32 %v2760, 4294901760
    %3425 = vmatpush.msra.mxu0 %v3424
    %v3426 = vand.u32 %v2759, 4294901760
    %3427 = vmatpush.msra.mxu0 %v3426
    %v3428 = vand.u32 %v2758, 4294901760
    %3429 = vmatpush.msra.mxu0 %v3428
    %v3430 = vand.u32 %v2757, 4294901760
    %3431 = vmatpush.msra.mxu0 %v3430
    %v3432 = vand.u32 %v2756, 4294901760
    %3433 = vmatpush.msra.mxu0 %v3432
    %v3434 = vand.u32 %v2755, 4294901760
    %3435 = vmatpush.msra.mxu0 %v3434
    %v3436 = vand.u32 %v2754, 4294901760
    %3437 = vmatpush.msra.mxu0 %v3436
    %v3438 = vand.u32 %v2753, 4294901760
    %3439 = vmatpush.msra.mxu0 %v3438
    %v3440 = vand.u32 %v2752, 4294901760
    %3441 = vmatpush.msra.mxu0 %v3440
    %v3442 = vand.u32 %v2751, 4294901760
    %3443 = vmatpush.msra.mxu0 %v3442
    %v3444 = vand.u32 %v589, 4294901760
    %3445 = vmatmul.f32.gmra.mxu0 %v3444
    %v3446 = vpop.f32.mrf.mxu0
    %v3447 = vadd.f32 %v3410, %v3446
    %3448 = vdwg.mxu0
    %v3449 = vmax.f32 %v1302, %v2017
    %v3450 = vmax.f32 %v2732, %v3447
    %v3451 = vmax.f32 %v3449, %v3450
    %vm3452 = vcmask 521216
    %3453 = vst.msk [vmem:[#allocation2] sm:$0x3f] %vm3452, %v3451
    %v3454 = vld [vmem:[#allocation2] sm:$0x1]
    %vm3455 = vcmask 253952
    %3456 = vst.msk [vmem:[#allocation3] sm:$0x1] %vm3455, %v3454
    %v3457 = vld [vmem:[#allocation2 + $0x1] sm:$0x1]
    %3459 = vrot.lane.b32.xlu0 %v3457, 32
    %v3460 = vpop.permute.xlu0 %3459
    %vm3462 = vcmask 516352
    %3463 = vst.msk [vmem:[#allocation3] sm:$0x1] %vm3462, %v3460
    %v3464 = vld [vmem:[#allocation2 + $0x2] sm:$0x1]
    %3466 = vrot.lane.b32.xlu0 %v3464, 64
    %v3467 = vpop.permute.xlu0 %3466
    %vm3469 = vcmask 778752
    %3470 = vst.msk [vmem:[#allocation3] sm:$0x1] %vm3469, %v3467
    %v3471 = vld [vmem:[#allocation2 + $0x3] sm:$0x1]
    %3473 = vrot.lane.b32.xlu0 %v3471, 96
    %v3474 = vpop.permute.xlu0 %3473
    %vm3476 = vcmask 1041152
    %3477 = vst.msk [vmem:[#allocation3] sm:$0x1] %vm3476, %v3474
    %v3478 = vld [vmem:[#allocation2 + $0x4] sm:$0x1]
    %3479 = vst.msk [vmem:[#allocation3 + $0x2] sm:$0x1] %vm3455, %v3478
    %v3480 = vld [vmem:[#allocation2 + $0x5] sm:$0x1]
    %3482 = vrot.lane.b32.xlu0 %v3480, 32
    %v3483 = vpop.permute.xlu0 %3482
    %3485 = vst.msk [vmem:[#allocation3 + $0x2] sm:$0x1] %vm3462, %v3483
    %v3486 = vld [vmem:[#allocation2] sm:$0x1]
    %3488 = vrot.lane.b32.xlu0 %v3486, 96
    %v3489 = vpop.permute.xlu0 %3488
    %3491 = vst.msk [vmem:[#allocation3 + $0x1] sm:$0x1] %vm3455, %v3489
    %v3492 = vld [vmem:[#allocation2 + $0x1] sm:$0x1]
    %3493 = vst.msk [vmem:[#allocation3 + $0x1] sm:$0x1] %vm3462, %v3492
    %v3494 = vld [vmem:[#allocation2 + $0x2] sm:$0x1]
    %3496 = vrot.lane.b32.xlu0 %v3494, 32
    %v3497 = vpop.permute.xlu0 %3496
    %3499 = vst.msk [vmem:[#allocation3 + $0x1] sm:$0x1] %vm3469, %v3497
    %v3500 = vld [vmem:[#allocation2 + $0x3] sm:$0x1]
    %3502 = vrot.lane.b32.xlu0 %v3500, 64
    %v3503 = vpop.permute.xlu0 %3502
    %3505 = vst.msk [vmem:[#allocation3 + $0x1] sm:$0x1] %vm3476, %v3503
    %v3506 = vld [vmem:[#allocation2 + $0x4] sm:$0x1]
    %3508 = vrot.lane.b32.xlu0 %v3506, 96
    %v3509 = vpop.permute.xlu0 %3508
    %3511 = vst.msk [vmem:[#allocation3 + $0x3] sm:$0x1] %vm3455, %v3509
    %v3512 = vld [vmem:[#allocation2 + $0x5] sm:$0x1]
    %3513 = vst.msk [vmem:[#allocation3 + $0x3] sm:$0x1] %vm3462, %v3512
    %v3514 = vld [vmem:[#allocation3] sm:$0xf]
    %v3515 = vld [vmem:[%s4] sm:$0xff]
    %v3516 = vld [vmem:[%s4 + $0x8] sm:$0xff]
    %v3517 = vld [vmem:[%s4 + $0x10] sm:$0xff]
    %v3518 = vld [vmem:[%s4 + $0x18] sm:$0xff]
    %v3519 = vld [vmem:[%s4 + $0x20] sm:$0xff]
    %v3520 = vld [vmem:[%s4 + $0x28] sm:$0xff]
    %v3521 = vld [vmem:[%s4 + $0x30] sm:$0xff]
    %v3522 = vld [vmem:[%s4 + $0x38] sm:$0xff]
    %v3523 = vld [vmem:[%s4 + $0x40] sm:$0xff]
    %v3524 = vld [vmem:[%s4 + $0x48] sm:$0xff]
    %v3525 = vld [vmem:[%s4 + $0x50] sm:$0xff]
    %v3526 = vld [vmem:[%s4 + $0x58] sm:$0xff]
    %v3527 = vld [vmem:[%s4 + $0x60] sm:$0xff]
    %v3528 = vld [vmem:[%s4 + $0x68] sm:$0xff]
    %v3529 = vld [vmem:[%s4 + $0x70] sm:$0xff]
    %v3530 = vld [vmem:[%s4 + $0x78] sm:$0xff]
    %v3531 = vld [vmem:[%s4 + $0x80] sm:$0xff]
    %v3532 = vld [vmem:[%s4 + $0x88] sm:$0xff]
    %v3533 = vld [vmem:[%s4 + $0x90] sm:$0xff]
    %v3534 = vld [vmem:[%s4 + $0x98] sm:$0xff]
    %v3535 = vld [vmem:[%s4 + $0xa0] sm:$0xff]
    %v3536 = vld [vmem:[%s4 + $0xa8] sm:$0xff]
    %v3537 = vld [vmem:[%s4 + $0xb0] sm:$0xff]
    %v3538 = vld [vmem:[%s4 + $0xb8] sm:$0xff]
    %v3539 = vld [vmem:[%s4 + $0xc0] sm:$0xff]
    %v3540 = vld [vmem:[%s4 + $0xc8] sm:$0xff]
    %v3541 = vld [vmem:[%s4 + $0xd0] sm:$0xff]
    %v3542 = vld [vmem:[%s4 + $0xd8] sm:$0xff]
    %v3543 = vld [vmem:[%s4 + $0xe0] sm:$0xff]
    %v3544 = vld [vmem:[%s4 + $0xe8] sm:$0xff]
    %v3545 = vld [vmem:[%s4 + $0xf0] sm:$0xff]
    %v3546 = vld [vmem:[%s4 + $0xf8] sm:$0xff]
    %v3547 = vld [vmem:[%s4 + $0x100] sm:$0xff]
    %v3548 = vld [vmem:[%s4 + $0x108] sm:$0xff]
    %v3549 = vld [vmem:[%s4 + $0x110] sm:$0xff]
    %v3550 = vld [vmem:[%s4 + $0x118] sm:$0xff]
    %v3551 = vld [vmem:[%s4 + $0x120] sm:$0xff]
    %v3552 = vld [vmem:[%s4 + $0x128] sm:$0xff]
    %v3553 = vld [vmem:[%s4 + $0x130] sm:$0xff]
    %v3554 = vld [vmem:[%s4 + $0x138] sm:$0xff]
    %v3555 = vld [vmem:[%s4 + $0x140] sm:$0xff]
    %v3556 = vld [vmem:[%s4 + $0x148] sm:$0xff]
    %v3557 = vld [vmem:[%s4 + $0x150] sm:$0xff]
    %v3558 = vld [vmem:[%s4 + $0x158] sm:$0xff]
    %v3559 = vld [vmem:[%s4 + $0x160] sm:$0xff]
    %v3560 = vld [vmem:[%s4 + $0x168] sm:$0xff]
    %v3561 = vld [vmem:[%s4 + $0x170] sm:$0xff]
    %v3562 = vld [vmem:[%s4 + $0x178] sm:$0xff]
    %v3563 = vld [vmem:[%s5] sm:$0x3]
    %v3565 = vperm.slane %v3563, 0
    %v3566 = vperm.slane %v3563, 1
    %3570 = vst [vmem:[#allocation1] ss:$4 sm:$0xff] %v3514
    %v3571 = vld.sshfl [vmem:[#allocation1] sm:$0xff pattern:$0x73625140]
    %v3572 = vld.sshfl [vmem:[#allocation1 + $0x8] sm:$0xff pattern:$0x73625140]
    %vm3574 = vcmask 523264
    %v3575 = vsel %vm3574, %v3572, 0
    %v3577 = vand.u32 %v3545, 4294901760
    %3578 = vmatpush.msra.mxu0 %v3577
    %v3579 = vand.u32 %v3543, 4294901760
    %3580 = vmatpush.msra.mxu0 %v3579
    %v3581 = vand.u32 %v3541, 4294901760
    %3582 = vmatpush.msra.mxu0 %v3581
    %v3583 = vand.u32 %v3539, 4294901760
    %3584 = vmatpush.msra.mxu0 %v3583
    %v3585 = vand.u32 %v3537, 4294901760
    %3586 = vmatpush.msra.mxu0 %v3585
    %v3587 = vand.u32 %v3535, 4294901760
    %3588 = vmatpush.msra.mxu0 %v3587
    %v3589 = vand.u32 %v3533, 4294901760
    %3590 = vmatpush.msra.mxu0 %v3589
    %v3591 = vand.u32 %v3531, 4294901760
    %3592 = vmatpush.msra.mxu0 %v3591
    %v3593 = vand.u32 %v3529, 4294901760
    %3594 = vmatpush.msra.mxu0 %v3593
    %v3595 = vand.u32 %v3527, 4294901760
    %3596 = vmatpush.msra.mxu0 %v3595
    %v3597 = vand.u32 %v3525, 4294901760
    %3598 = vmatpush.msra.mxu0 %v3597
    %v3599 = vand.u32 %v3523, 4294901760
    %3600 = vmatpush.msra.mxu0 %v3599
    %v3601 = vand.u32 %v3521, 4294901760
    %3602 = vmatpush.msra.mxu0 %v3601
    %v3603 = vand.u32 %v3519, 4294901760
    %3604 = vmatpush.msra.mxu0 %v3603
    %v3605 = vand.u32 %v3517, 4294901760
    %3606 = vmatpush.msra.mxu0 %v3605
    %v3607 = vand.u32 %v3515, 4294901760
    %3608 = vmatpush.msra.mxu0 %v3607
    %v3609 = vand.u32 %v3571, 4294901760
    %v3610 = vsub.f32 %v3571, %v3609
    %v3611 = vand.u32 %v3610, 4294901760
    %v3612 = vsub.f32 %v3610, %v3611
    %v3613 = vand.u32 %v3612, 4294901760
    %3614 = vmatmul.f32.gmra.mxu0 %v3613
    %v3615 = vpop.f32.mrf.mxu0
    %v3616 = vadd.f32 %v3565, %v3615
    %3617 = vdwg.mxu0
    %v3618 = vand.u32 %v3545, 4294901760
    %v3619 = vsub.f32 %v3545, %v3618
    %v3620 = vand.u32 %v3619, 4294901760
    %v3621 = vsub.f32 %v3619, %v3620
    %v3622 = vand.u32 %v3621, 4294901760
    %3623 = vmatpush.msra.mxu0 %v3622
    %v3624 = vand.u32 %v3543, 4294901760
    %v3625 = vsub.f32 %v3543, %v3624
    %v3626 = vand.u32 %v3625, 4294901760
    %v3627 = vsub.f32 %v3625, %v3626
    %v3628 = vand.u32 %v3627, 4294901760
    %3629 = vmatpush.msra.mxu0 %v3628
    %v3630 = vand.u32 %v3541, 4294901760
    %v3631 = vsub.f32 %v3541, %v3630
    %v3632 = vand.u32 %v3631, 4294901760
    %v3633 = vsub.f32 %v3631, %v3632
    %v3634 = vand.u32 %v3633, 4294901760
    %3635 = vmatpush.msra.mxu0 %v3634
    %v3636 = vand.u32 %v3539, 4294901760
    %v3637 = vsub.f32 %v3539, %v3636
    %v3638 = vand.u32 %v3637, 4294901760
    %v3639 = vsub.f32 %v3637, %v3638
    %v3640 = vand.u32 %v3639, 4294901760
    %3641 = vmatpush.msra.mxu0 %v3640
    %v3642 = vand.u32 %v3537, 4294901760
    %v3643 = vsub.f32 %v3537, %v3642
    %v3644 = vand.u32 %v3643, 4294901760
    %v3645 = vsub.f32 %v3643, %v3644
    %v3646 = vand.u32 %v3645, 4294901760
    %3647 = vmatpush.msra.mxu0 %v3646
    %v3648 = vand.u32 %v3535, 4294901760
    %v3649 = vsub.f32 %v3535, %v3648
    %v3650 = vand.u32 %v3649, 4294901760
    %v3651 = vsub.f32 %v3649, %v3650
    %v3652 = vand.u32 %v3651, 4294901760
    %3653 = vmatpush.msra.mxu0 %v3652
    %v3654 = vand.u32 %v3533, 4294901760
    %v3655 = vsub.f32 %v3533, %v3654
    %v3656 = vand.u32 %v3655, 4294901760
    %v3657 = vsub.f32 %v3655, %v3656
    %v3658 = vand.u32 %v3657, 4294901760
    %3659 = vmatpush.msra.mxu0 %v3658
    %v3660 = vand.u32 %v3531, 4294901760
    %v3661 = vsub.f32 %v3531, %v3660
    %v3662 = vand.u32 %v3661, 4294901760
    %v3663 = vsub.f32 %v3661, %v3662
    %v3664 = vand.u32 %v3663, 4294901760
    %3665 = vmatpush.msra.mxu0 %v3664
    %v3666 = vand.u32 %v3529, 4294901760
    %v3667 = vsub.f32 %v3529, %v3666
    %v3668 = vand.u32 %v3667, 4294901760
    %v3669 = vsub.f32 %v3667, %v3668
    %v3670 = vand.u32 %v3669, 4294901760
    %3671 = vmatpush.msra.mxu0 %v3670
    %v3672 = vand.u32 %v3527, 4294901760
    %v3673 = vsub.f32 %v3527, %v3672
    %v3674 = vand.u32 %v3673, 4294901760
    %v3675 = vsub.f32 %v3673, %v3674
    %v3676 = vand.u32 %v3675, 4294901760
    %3677 = vmatpush.msra.mxu0 %v3676
    %v3678 = vand.u32 %v3525, 4294901760
    %v3679 = vsub.f32 %v3525, %v3678
    %v3680 = vand.u32 %v3679, 4294901760
    %v3681 = vsub.f32 %v3679, %v3680
    %v3682 = vand.u32 %v3681, 4294901760
    %3683 = vmatpush.msra.mxu0 %v3682
    %v3684 = vand.u32 %v3523, 4294901760
    %v3685 = vsub.f32 %v3523, %v3684
    %v3686 = vand.u32 %v3685, 4294901760
    %v3687 = vsub.f32 %v3685, %v3686
    %v3688 = vand.u32 %v3687, 4294901760
    %3689 = vmatpush.msra.mxu0 %v3688
    %v3690 = vand.u32 %v3521, 4294901760
    %v3691 = vsub.f32 %v3521, %v3690
    %v3692 = vand.u32 %v3691, 4294901760
    %v3693 = vsub.f32 %v3691, %v3692
    %v3694 = vand.u32 %v3693, 4294901760
    %3695 = vmatpush.msra.mxu0 %v3694
    %v3696 = vand.u32 %v3519, 4294901760
    %v3697 = vsub.f32 %v3519, %v3696
    %v3698 = vand.u32 %v3697, 4294901760
    %v3699 = vsub.f32 %v3697, %v3698
    %v3700 = vand.u32 %v3699, 4294901760
    %3701 = vmatpush.msra.mxu0 %v3700
    %v3702 = vand.u32 %v3517, 4294901760
    %v3703 = vsub.f32 %v3517, %v3702
    %v3704 = vand.u32 %v3703, 4294901760
    %v3705 = vsub.f32 %v3703, %v3704
    %v3706 = vand.u32 %v3705, 4294901760
    %3707 = vmatpush.msra.mxu0 %v3706
    %v3708 = vand.u32 %v3515, 4294901760
    %v3709 = vsub.f32 %v3515, %v3708
    %v3710 = vand.u32 %v3709, 4294901760
    %v3711 = vsub.f32 %v3709, %v3710
    %v3712 = vand.u32 %v3711, 4294901760
    %3713 = vmatpush.msra.mxu0 %v3712
    %v3714 = vand.u32 %v3571, 4294901760
    %3715 = vmatmul.f32.gmra.mxu0 %v3714
    %v3716 = vpop.f32.mrf.mxu0
    %v3717 = vadd.f32 %v3616, %v3716
    %3718 = vdwg.mxu0
    %v3719 = vand.u32 %v3545, 4294901760
    %v3720 = vsub.f32 %v3545, %v3719
    %3721 = vmatpush.msra.mxu0 %v3720
    %v3722 = vand.u32 %v3543, 4294901760
    %v3723 = vsub.f32 %v3543, %v3722
    %3724 = vmatpush.msra.mxu0 %v3723
    %v3725 = vand.u32 %v3541, 4294901760
    %v3726 = vsub.f32 %v3541, %v3725
    %3727 = vmatpush.msra.mxu0 %v3726
    %v3728 = vand.u32 %v3539, 4294901760
    %v3729 = vsub.f32 %v3539, %v3728
    %3730 = vmatpush.msra.mxu0 %v3729
    %v3731 = vand.u32 %v3537, 4294901760
    %v3732 = vsub.f32 %v3537, %v3731
    %3733 = vmatpush.msra.mxu0 %v3732
    %v3734 = vand.u32 %v3535, 4294901760
    %v3735 = vsub.f32 %v3535, %v3734
    %3736 = vmatpush.msra.mxu0 %v3735
    %v3737 = vand.u32 %v3533, 4294901760
    %v3738 = vsub.f32 %v3533, %v3737
    %3739 = vmatpush.msra.mxu0 %v3738
    %v3740 = vand.u32 %v3531, 4294901760
    %v3741 = vsub.f32 %v3531, %v3740
    %3742 = vmatpush.msra.mxu0 %v3741
    %v3743 = vand.u32 %v3529, 4294901760
    %v3744 = vsub.f32 %v3529, %v3743
    %3745 = vmatpush.msra.mxu0 %v3744
    %v3746 = vand.u32 %v3527, 4294901760
    %v3747 = vsub.f32 %v3527, %v3746
    %3748 = vmatpush.msra.mxu0 %v3747
    %v3749 = vand.u32 %v3525, 4294901760
    %v3750 = vsub.f32 %v3525, %v3749
    %3751 = vmatpush.msra.mxu0 %v3750
    %v3752 = vand.u32 %v3523, 4294901760
    %v3753 = vsub.f32 %v3523, %v3752
    %3754 = vmatpush.msra.mxu0 %v3753
    %v3755 = vand.u32 %v3521, 4294901760
    %v3756 = vsub.f32 %v3521, %v3755
    %3757 = vmatpush.msra.mxu0 %v3756
    %v3758 = vand.u32 %v3519, 4294901760
    %v3759 = vsub.f32 %v3519, %v3758
    %3760 = vmatpush.msra.mxu0 %v3759
    %v3761 = vand.u32 %v3517, 4294901760
    %v3762 = vsub.f32 %v3517, %v3761
    %3763 = vmatpush.msra.mxu0 %v3762
    %v3764 = vand.u32 %v3515, 4294901760
    %v3765 = vsub.f32 %v3515, %v3764
    %3766 = vmatpush.msra.mxu0 %v3765
    %v3767 = vand.u32 %v3571, 4294901760
    %v3768 = vsub.f32 %v3571, %v3767
    %3769 = vmatmul.f32.gmra.mxu0 %v3768
    %v3770 = vpop.f32.mrf.mxu0
    %v3771 = vadd.f32 %v3717, %v3770
    %3772 = vdwg.mxu0
    %v3773 = vand.u32 %v3545, 4294901760
    %3774 = vmatpush.msra.mxu0 %v3773
    %v3775 = vand.u32 %v3543, 4294901760
    %3776 = vmatpush.msra.mxu0 %v3775
    %v3777 = vand.u32 %v3541, 4294901760
    %3778 = vmatpush.msra.mxu0 %v3777
    %v3779 = vand.u32 %v3539, 4294901760
    %3780 = vmatpush.msra.mxu0 %v3779
    %v3781 = vand.u32 %v3537, 4294901760
    %3782 = vmatpush.msra.mxu0 %v3781
    %v3783 = vand.u32 %v3535, 4294901760
    %3784 = vmatpush.msra.mxu0 %v3783
    %v3785 = vand.u32 %v3533, 4294901760
    %3786 = vmatpush.msra.mxu0 %v3785
    %v3787 = vand.u32 %v3531, 4294901760
    %3788 = vmatpush.msra.mxu0 %v3787
    %v3789 = vand.u32 %v3529, 4294901760
    %3790 = vmatpush.msra.mxu0 %v3789
    %v3791 = vand.u32 %v3527, 4294901760
    %3792 = vmatpush.msra.mxu0 %v3791
    %v3793 = vand.u32 %v3525, 4294901760
    %3794 = vmatpush.msra.mxu0 %v3793
    %v3795 = vand.u32 %v3523, 4294901760
    %3796 = vmatpush.msra.mxu0 %v3795
    %v3797 = vand.u32 %v3521, 4294901760
    %3798 = vmatpush.msra.mxu0 %v3797
    %v3799 = vand.u32 %v3519, 4294901760
    %3800 = vmatpush.msra.mxu0 %v3799
    %v3801 = vand.u32 %v3517, 4294901760
    %3802 = vmatpush.msra.mxu0 %v3801
    %v3803 = vand.u32 %v3515, 4294901760
    %3804 = vmatpush.msra.mxu0 %v3803
    %v3805 = vand.u32 %v3571, 4294901760
    %v3806 = vsub.f32 %v3571, %v3805
    %v3807 = vand.u32 %v3806, 4294901760
    %3808 = vmatmul.f32.gmra.mxu0 %v3807
    %v3809 = vpop.f32.mrf.mxu0
    %v3810 = vadd.f32 %v3771, %v3809
    %3811 = vdwg.mxu0
    %v3812 = vand.u32 %v3545, 4294901760
    %v3813 = vsub.f32 %v3545, %v3812
    %v3814 = vand.u32 %v3813, 4294901760
    %3815 = vmatpush.msra.mxu0 %v3814
    %v3816 = vand.u32 %v3543, 4294901760
    %v3817 = vsub.f32 %v3543, %v3816
    %v3818 = vand.u32 %v3817, 4294901760
    %3819 = vmatpush.msra.mxu0 %v3818
    %v3820 = vand.u32 %v3541, 4294901760
    %v3821 = vsub.f32 %v3541, %v3820
    %v3822 = vand.u32 %v3821, 4294901760
    %3823 = vmatpush.msra.mxu0 %v3822
    %v3824 = vand.u32 %v3539, 4294901760
    %v3825 = vsub.f32 %v3539, %v3824
    %v3826 = vand.u32 %v3825, 4294901760
    %3827 = vmatpush.msra.mxu0 %v3826
    %v3828 = vand.u32 %v3537, 4294901760
    %v3829 = vsub.f32 %v3537, %v3828
    %v3830 = vand.u32 %v3829, 4294901760
    %3831 = vmatpush.msra.mxu0 %v3830
    %v3832 = vand.u32 %v3535, 4294901760
    %v3833 = vsub.f32 %v3535, %v3832
    %v3834 = vand.u32 %v3833, 4294901760
    %3835 = vmatpush.msra.mxu0 %v3834
    %v3836 = vand.u32 %v3533, 4294901760
    %v3837 = vsub.f32 %v3533, %v3836
    %v3838 = vand.u32 %v3837, 4294901760
    %3839 = vmatpush.msra.mxu0 %v3838
    %v3840 = vand.u32 %v3531, 4294901760
    %v3841 = vsub.f32 %v3531, %v3840
    %v3842 = vand.u32 %v3841, 4294901760
    %3843 = vmatpush.msra.mxu0 %v3842
    %v3844 = vand.u32 %v3529, 4294901760
    %v3845 = vsub.f32 %v3529, %v3844
    %v3846 = vand.u32 %v3845, 4294901760
    %3847 = vmatpush.msra.mxu0 %v3846
    %v3848 = vand.u32 %v3527, 4294901760
    %v3849 = vsub.f32 %v3527, %v3848
    %v3850 = vand.u32 %v3849, 4294901760
    %3851 = vmatpush.msra.mxu0 %v3850
    %v3852 = vand.u32 %v3525, 4294901760
    %v3853 = vsub.f32 %v3525, %v3852
    %v3854 = vand.u32 %v3853, 4294901760
    %3855 = vmatpush.msra.mxu0 %v3854
    %v3856 = vand.u32 %v3523, 4294901760
    %v3857 = vsub.f32 %v3523, %v3856
    %v3858 = vand.u32 %v3857, 4294901760
    %3859 = vmatpush.msra.mxu0 %v3858
    %v3860 = vand.u32 %v3521, 4294901760
    %v3861 = vsub.f32 %v3521, %v3860
    %v3862 = vand.u32 %v3861, 4294901760
    %3863 = vmatpush.msra.mxu0 %v3862
    %v3864 = vand.u32 %v3519, 4294901760
    %v3865 = vsub.f32 %v3519, %v3864
    %v3866 = vand.u32 %v3865, 4294901760
    %3867 = vmatpush.msra.mxu0 %v3866
    %v3868 = vand.u32 %v3517, 4294901760
    %v3869 = vsub.f32 %v3517, %v3868
    %v3870 = vand.u32 %v3869, 4294901760
    %3871 = vmatpush.msra.mxu0 %v3870
    %v3872 = vand.u32 %v3515, 4294901760
    %v3873 = vsub.f32 %v3515, %v3872
    %v3874 = vand.u32 %v3873, 4294901760
    %3875 = vmatpush.msra.mxu0 %v3874
    %v3876 = vand.u32 %v3571, 4294901760
    %3877 = vmatmul.f32.gmra.mxu0 %v3876
    %v3878 = vpop.f32.mrf.mxu0
    %v3879 = vadd.f32 %v3810, %v3878
    %3880 = vdwg.mxu0
    %v3881 = vand.u32 %v3545, 4294901760
    %3882 = vmatpush.msra.mxu0 %v3881
    %v3883 = vand.u32 %v3543, 4294901760
    %3884 = vmatpush.msra.mxu0 %v3883
    %v3885 = vand.u32 %v3541, 4294901760
    %3886 = vmatpush.msra.mxu0 %v3885
    %v3887 = vand.u32 %v3539, 4294901760
    %3888 = vmatpush.msra.mxu0 %v3887
    %v3889 = vand.u32 %v3537, 4294901760
    %3890 = vmatpush.msra.mxu0 %v3889
    %v3891 = vand.u32 %v3535, 4294901760
    %3892 = vmatpush.msra.mxu0 %v3891
    %v3893 = vand.u32 %v3533, 4294901760
    %3894 = vmatpush.msra.mxu0 %v3893
    %v3895 = vand.u32 %v3531, 4294901760
    %3896 = vmatpush.msra.mxu0 %v3895
    %v3897 = vand.u32 %v3529, 4294901760
    %3898 = vmatpush.msra.mxu0 %v3897
    %v3899 = vand.u32 %v3527, 4294901760
    %3900 = vmatpush.msra.mxu0 %v3899
    %v3901 = vand.u32 %v3525, 4294901760
    %3902 = vmatpush.msra.mxu0 %v3901
    %v3903 = vand.u32 %v3523, 4294901760
    %3904 = vmatpush.msra.mxu0 %v3903
    %v3905 = vand.u32 %v3521, 4294901760
    %3906 = vmatpush.msra.mxu0 %v3905
    %v3907 = vand.u32 %v3519, 4294901760
    %3908 = vmatpush.msra.mxu0 %v3907
    %v3909 = vand.u32 %v3517, 4294901760
    %3910 = vmatpush.msra.mxu0 %v3909
    %v3911 = vand.u32 %v3515, 4294901760
    %3912 = vmatpush.msra.mxu0 %v3911
    %v3913 = vand.u32 %v3571, 4294901760
    %3914 = vmatmul.f32.gmra.mxu0 %v3913
    %v3915 = vpop.f32.mrf.mxu0
    %v3916 = vadd.f32 %v3879, %v3915
    %3917 = vdwg.mxu0
    %3918 = vmatpush.msra.mxu0 0.0
    %3919 = vmatpush.msra.mxu0 0.0
    %3920 = vmatpush.msra.mxu0 0.0
    %3921 = vmatpush.msra.mxu0 0.0
    %3922 = vmatpush.msra.mxu0 0.0
    %3923 = vmatpush.msra.mxu0 0.0
    %3924 = vmatpush.msra.mxu0 0.0
    %3925 = vmatpush.msra.mxu0 0.0
    %v3926 = vand.u32 %v3561, 4294901760
    %3927 = vmatpush.msra.mxu0 %v3926
    %v3928 = vand.u32 %v3559, 4294901760
    %3929 = vmatpush.msra.mxu0 %v3928
    %v3930 = vand.u32 %v3557, 4294901760
    %3931 = vmatpush.msra.mxu0 %v3930
    %v3932 = vand.u32 %v3555, 4294901760
    %3933 = vmatpush.msra.mxu0 %v3932
    %v3934 = vand.u32 %v3553, 4294901760
    %3935 = vmatpush.msra.mxu0 %v3934
    %v3936 = vand.u32 %v3551, 4294901760
    %3937 = vmatpush.msra.mxu0 %v3936
    %v3938 = vand.u32 %v3549, 4294901760
    %3939 = vmatpush.msra.mxu0 %v3938
    %v3940 = vand.u32 %v3547, 4294901760
    %3941 = vmatpush.msra.mxu0 %v3940
    %v3942 = vand.u32 %v3575, 4294901760
    %v3943 = vsub.f32 %v3575, %v3942
    %v3944 = vand.u32 %v3943, 4294901760
    %v3945 = vsub.f32 %v3943, %v3944
    %v3946 = vand.u32 %v3945, 4294901760
    %3947 = vmatmul.f32.gmra.mxu0 %v3946
    %v3948 = vpop.f32.mrf.mxu0
    %v3949 = vadd.f32 %v3916, %v3948
    %3950 = vdwg.mxu0
    %3951 = vmatpush.msra.mxu0 0.0
    %3952 = vmatpush.msra.mxu0 0.0
    %3953 = vmatpush.msra.mxu0 0.0
    %3954 = vmatpush.msra.mxu0 0.0
    %3955 = vmatpush.msra.mxu0 0.0
    %3956 = vmatpush.msra.mxu0 0.0
    %3957 = vmatpush.msra.mxu0 0.0
    %3958 = vmatpush.msra.mxu0 0.0
    %v3959 = vand.u32 %v3561, 4294901760
    %v3960 = vsub.f32 %v3561, %v3959
    %v3961 = vand.u32 %v3960, 4294901760
    %v3962 = vsub.f32 %v3960, %v3961
    %v3963 = vand.u32 %v3962, 4294901760
    %3964 = vmatpush.msra.mxu0 %v3963
    %v3965 = vand.u32 %v3559, 4294901760
    %v3966 = vsub.f32 %v3559, %v3965
    %v3967 = vand.u32 %v3966, 4294901760
    %v3968 = vsub.f32 %v3966, %v3967
    %v3969 = vand.u32 %v3968, 4294901760
    %3970 = vmatpush.msra.mxu0 %v3969
    %v3971 = vand.u32 %v3557, 4294901760
    %v3972 = vsub.f32 %v3557, %v3971
    %v3973 = vand.u32 %v3972, 4294901760
    %v3974 = vsub.f32 %v3972, %v3973
    %v3975 = vand.u32 %v3974, 4294901760
    %3976 = vmatpush.msra.mxu0 %v3975
    %v3977 = vand.u32 %v3555, 4294901760
    %v3978 = vsub.f32 %v3555, %v3977
    %v3979 = vand.u32 %v3978, 4294901760
    %v3980 = vsub.f32 %v3978, %v3979
    %v3981 = vand.u32 %v3980, 4294901760
    %3982 = vmatpush.msra.mxu0 %v3981
    %v3983 = vand.u32 %v3553, 4294901760
    %v3984 = vsub.f32 %v3553, %v3983
    %v3985 = vand.u32 %v3984, 4294901760
    %v3986 = vsub.f32 %v3984, %v3985
    %v3987 = vand.u32 %v3986, 4294901760
    %3988 = vmatpush.msra.mxu0 %v3987
    %v3989 = vand.u32 %v3551, 4294901760
    %v3990 = vsub.f32 %v3551, %v3989
    %v3991 = vand.u32 %v3990, 4294901760
    %v3992 = vsub.f32 %v3990, %v3991
    %v3993 = vand.u32 %v3992, 4294901760
    %3994 = vmatpush.msra.mxu0 %v3993
    %v3995 = vand.u32 %v3549, 4294901760
    %v3996 = vsub.f32 %v3549, %v3995
    %v3997 = vand.u32 %v3996, 4294901760
    %v3998 = vsub.f32 %v3996, %v3997
    %v3999 = vand.u32 %v3998, 4294901760
    %4000 = vmatpush.msra.mxu0 %v3999
    %v4001 = vand.u32 %v3547, 4294901760
    %v4002 = vsub.f32 %v3547, %v4001
    %v4003 = vand.u32 %v4002, 4294901760
    %v4004 = vsub.f32 %v4002, %v4003
    %v4005 = vand.u32 %v4004, 4294901760
    %4006 = vmatpush.msra.mxu0 %v4005
    %v4007 = vand.u32 %v3575, 4294901760
    %4008 = vmatmul.f32.gmra.mxu0 %v4007
    %v4009 = vpop.f32.mrf.mxu0
    %v4010 = vadd.f32 %v3949, %v4009
    %4011 = vdwg.mxu0
    %4012 = vmatpush.msra.mxu0 0.0
    %4013 = vmatpush.msra.mxu0 0.0
    %4014 = vmatpush.msra.mxu0 0.0
    %4015 = vmatpush.msra.mxu0 0.0
    %4016 = vmatpush.msra.mxu0 0.0
    %4017 = vmatpush.msra.mxu0 0.0
    %4018 = vmatpush.msra.mxu0 0.0
    %4019 = vmatpush.msra.mxu0 0.0
    %v4020 = vand.u32 %v3561, 4294901760
    %v4021 = vsub.f32 %v3561, %v4020
    %4022 = vmatpush.msra.mxu0 %v4021
    %v4023 = vand.u32 %v3559, 4294901760
    %v4024 = vsub.f32 %v3559, %v4023
    %4025 = vmatpush.msra.mxu0 %v4024
    %v4026 = vand.u32 %v3557, 4294901760
    %v4027 = vsub.f32 %v3557, %v4026
    %4028 = vmatpush.msra.mxu0 %v4027
    %v4029 = vand.u32 %v3555, 4294901760
    %v4030 = vsub.f32 %v3555, %v4029
    %4031 = vmatpush.msra.mxu0 %v4030
    %v4032 = vand.u32 %v3553, 4294901760
    %v4033 = vsub.f32 %v3553, %v4032
    %4034 = vmatpush.msra.mxu0 %v4033
    %v4035 = vand.u32 %v3551, 4294901760
    %v4036 = vsub.f32 %v3551, %v4035
    %4037 = vmatpush.msra.mxu0 %v4036
    %v4038 = vand.u32 %v3549, 4294901760
    %v4039 = vsub.f32 %v3549, %v4038
    %4040 = vmatpush.msra.mxu0 %v4039
    %v4041 = vand.u32 %v3547, 4294901760
    %v4042 = vsub.f32 %v3547, %v4041
    %4043 = vmatpush.msra.mxu0 %v4042
    %v4044 = vand.u32 %v3575, 4294901760
    %v4045 = vsub.f32 %v3575, %v4044
    %4046 = vmatmul.f32.gmra.mxu0 %v4045
    %v4047 = vpop.f32.mrf.mxu0
    %v4048 = vadd.f32 %v4010, %v4047
    %4049 = vdwg.mxu0
    %4050 = vmatpush.msra.mxu0 0.0
    %4051 = vmatpush.msra.mxu0 0.0
    %4052 = vmatpush.msra.mxu0 0.0
    %4053 = vmatpush.msra.mxu0 0.0
    %4054 = vmatpush.msra.mxu0 0.0
    %4055 = vmatpush.msra.mxu0 0.0
    %4056 = vmatpush.msra.mxu0 0.0
    %4057 = vmatpush.msra.mxu0 0.0
    %v4058 = vand.u32 %v3561, 4294901760
    %4059 = vmatpush.msra.mxu0 %v4058
    %v4060 = vand.u32 %v3559, 4294901760
    %4061 = vmatpush.msra.mxu0 %v4060
    %v4062 = vand.u32 %v3557, 4294901760
    %4063 = vmatpush.msra.mxu0 %v4062
    %v4064 = vand.u32 %v3555, 4294901760
    %4065 = vmatpush.msra.mxu0 %v4064
    %v4066 = vand.u32 %v3553, 4294901760
    %4067 = vmatpush.msra.mxu0 %v4066
    %v4068 = vand.u32 %v3551, 4294901760
    %4069 = vmatpush.msra.mxu0 %v4068
    %v4070 = vand.u32 %v3549, 4294901760
    %4071 = vmatpush.msra.mxu0 %v4070
    %v4072 = vand.u32 %v3547, 4294901760
    %4073 = vmatpush.msra.mxu0 %v4072
    %v4074 = vand.u32 %v3575, 4294901760
    %v4075 = vsub.f32 %v3575, %v4074
    %v4076 = vand.u32 %v4075, 4294901760
    %4077 = vmatmul.f32.gmra.mxu0 %v4076
    %v4078 = vpop.f32.mrf.mxu0
    %v4079 = vadd.f32 %v4048, %v4078
    %4080 = vdwg.mxu0
    %4081 = vmatpush.msra.mxu0 0.0
    %4082 = vmatpush.msra.mxu0 0.0
    %4083 = vmatpush.msra.mxu0 0.0
    %4084 = vmatpush.msra.mxu0 0.0
    %4085 = vmatpush.msra.mxu0 0.0
    %4086 = vmatpush.msra.mxu0 0.0
    %4087 = vmatpush.msra.mxu0 0.0
    %4088 = vmatpush.msra.mxu0 0.0
    %v4089 = vand.u32 %v3561, 4294901760
    %v4090 = vsub.f32 %v3561, %v4089
    %v4091 = vand.u32 %v4090, 4294901760
    %4092 = vmatpush.msra.mxu0 %v4091
    %v4093 = vand.u32 %v3559, 4294901760
    %v4094 = vsub.f32 %v3559, %v4093
    %v4095 = vand.u32 %v4094, 4294901760
    %4096 = vmatpush.msra.mxu0 %v4095
    %v4097 = vand.u32 %v3557, 4294901760
    %v4098 = vsub.f32 %v3557, %v4097
    %v4099 = vand.u32 %v4098, 4294901760
    %4100 = vmatpush.msra.mxu0 %v4099
    %v4101 = vand.u32 %v3555, 4294901760
    %v4102 = vsub.f32 %v3555, %v4101
    %v4103 = vand.u32 %v4102, 4294901760
    %4104 = vmatpush.msra.mxu0 %v4103
    %v4105 = vand.u32 %v3553, 4294901760
    %v4106 = vsub.f32 %v3553, %v4105
    %v4107 = vand.u32 %v4106, 4294901760
    %4108 = vmatpush.msra.mxu0 %v4107
    %v4109 = vand.u32 %v3551, 4294901760
    %v4110 = vsub.f32 %v3551, %v4109
    %v4111 = vand.u32 %v4110, 4294901760
    %4112 = vmatpush.msra.mxu0 %v4111
    %v4113 = vand.u32 %v3549, 4294901760
    %v4114 = vsub.f32 %v3549, %v4113
    %v4115 = vand.u32 %v4114, 4294901760
    %4116 = vmatpush.msra.mxu0 %v4115
    %v4117 = vand.u32 %v3547, 4294901760
    %v4118 = vsub.f32 %v3547, %v4117
    %v4119 = vand.u32 %v4118, 4294901760
    %4120 = vmatpush.msra.mxu0 %v4119
    %v4121 = vand.u32 %v3575, 4294901760
    %4122 = vmatmul.f32.gmra.mxu0 %v4121
    %v4123 = vpop.f32.mrf.mxu0
    %v4124 = vadd.f32 %v4079, %v4123
    %4125 = vdwg.mxu0
    %4126 = vmatpush.msra.mxu0 0.0
    %4127 = vmatpush.msra.mxu0 0.0
    %4128 = vmatpush.msra.mxu0 0.0
    %4129 = vmatpush.msra.mxu0 0.0
    %4130 = vmatpush.msra.mxu0 0.0
    %4131 = vmatpush.msra.mxu0 0.0
    %4132 = vmatpush.msra.mxu0 0.0
    %4133 = vmatpush.msra.mxu0 0.0
    %v4134 = vand.u32 %v3561, 4294901760
    %4135 = vmatpush.msra.mxu0 %v4134
    %v4136 = vand.u32 %v3559, 4294901760
    %4137 = vmatpush.msra.mxu0 %v4136
    %v4138 = vand.u32 %v3557, 4294901760
    %4139 = vmatpush.msra.mxu0 %v4138
    %v4140 = vand.u32 %v3555, 4294901760
    %4141 = vmatpush.msra.mxu0 %v4140
    %v4142 = vand.u32 %v3553, 4294901760
    %4143 = vmatpush.msra.mxu0 %v4142
    %v4144 = vand.u32 %v3551, 4294901760
    %4145 = vmatpush.msra.mxu0 %v4144
    %v4146 = vand.u32 %v3549, 4294901760
    %4147 = vmatpush.msra.mxu0 %v4146
    %v4148 = vand.u32 %v3547, 4294901760
    %4149 = vmatpush.msra.mxu0 %v4148
    %v4150 = vand.u32 %v3575, 4294901760
    %4151 = vmatmul.f32.gmra.mxu0 %v4150
    %v4152 = vpop.f32.mrf.mxu0
    %v4153 = vadd.f32 %v4124, %v4152
    %4154 = vdwg.mxu0
    %v4155 = vand.u32 %v3546, 4294901760
    %4156 = vmatpush.msra.mxu0 %v4155
    %v4157 = vand.u32 %v3544, 4294901760
    %4158 = vmatpush.msra.mxu0 %v4157
    %v4159 = vand.u32 %v3542, 4294901760
    %4160 = vmatpush.msra.mxu0 %v4159
    %v4161 = vand.u32 %v3540, 4294901760
    %4162 = vmatpush.msra.mxu0 %v4161
    %v4163 = vand.u32 %v3538, 4294901760
    %4164 = vmatpush.msra.mxu0 %v4163
    %v4165 = vand.u32 %v3536, 4294901760
    %4166 = vmatpush.msra.mxu0 %v4165
    %v4167 = vand.u32 %v3534, 4294901760
    %4168 = vmatpush.msra.mxu0 %v4167
    %v4169 = vand.u32 %v3532, 4294901760
    %4170 = vmatpush.msra.mxu0 %v4169
    %v4171 = vand.u32 %v3530, 4294901760
    %4172 = vmatpush.msra.mxu0 %v4171
    %v4173 = vand.u32 %v3528, 4294901760
    %4174 = vmatpush.msra.mxu0 %v4173
    %v4175 = vand.u32 %v3526, 4294901760
    %4176 = vmatpush.msra.mxu0 %v4175
    %v4177 = vand.u32 %v3524, 4294901760
    %4178 = vmatpush.msra.mxu0 %v4177
    %v4179 = vand.u32 %v3522, 4294901760
    %4180 = vmatpush.msra.mxu0 %v4179
    %v4181 = vand.u32 %v3520, 4294901760
    %4182 = vmatpush.msra.mxu0 %v4181
    %v4183 = vand.u32 %v3518, 4294901760
    %4184 = vmatpush.msra.mxu0 %v4183
    %v4185 = vand.u32 %v3516, 4294901760
    %4186 = vmatpush.msra.mxu0 %v4185
    %v4187 = vand.u32 %v3571, 4294901760
    %v4188 = vsub.f32 %v3571, %v4187
    %v4189 = vand.u32 %v4188, 4294901760
    %v4190 = vsub.f32 %v4188, %v4189
    %v4191 = vand.u32 %v4190, 4294901760
    %4192 = vmatmul.f32.gmra.mxu0 %v4191
    %v4193 = vpop.f32.mrf.mxu0
    %v4194 = vadd.f32 %v3566, %v4193
    %4195 = vdwg.mxu0
    %v4196 = vand.u32 %v3546, 4294901760
    %v4197 = vsub.f32 %v3546, %v4196
    %v4198 = vand.u32 %v4197, 4294901760
    %v4199 = vsub.f32 %v4197, %v4198
    %v4200 = vand.u32 %v4199, 4294901760
    %4201 = vmatpush.msra.mxu0 %v4200
    %v4202 = vand.u32 %v3544, 4294901760
    %v4203 = vsub.f32 %v3544, %v4202
    %v4204 = vand.u32 %v4203, 4294901760
    %v4205 = vsub.f32 %v4203, %v4204
    %v4206 = vand.u32 %v4205, 4294901760
    %4207 = vmatpush.msra.mxu0 %v4206
    %v4208 = vand.u32 %v3542, 4294901760
    %v4209 = vsub.f32 %v3542, %v4208
    %v4210 = vand.u32 %v4209, 4294901760
    %v4211 = vsub.f32 %v4209, %v4210
    %v4212 = vand.u32 %v4211, 4294901760
    %4213 = vmatpush.msra.mxu0 %v4212
    %v4214 = vand.u32 %v3540, 4294901760
    %v4215 = vsub.f32 %v3540, %v4214
    %v4216 = vand.u32 %v4215, 4294901760
    %v4217 = vsub.f32 %v4215, %v4216
    %v4218 = vand.u32 %v4217, 4294901760
    %4219 = vmatpush.msra.mxu0 %v4218
    %v4220 = vand.u32 %v3538, 4294901760
    %v4221 = vsub.f32 %v3538, %v4220
    %v4222 = vand.u32 %v4221, 4294901760
    %v4223 = vsub.f32 %v4221, %v4222
    %v4224 = vand.u32 %v4223, 4294901760
    %4225 = vmatpush.msra.mxu0 %v4224
    %v4226 = vand.u32 %v3536, 4294901760
    %v4227 = vsub.f32 %v3536, %v4226
    %v4228 = vand.u32 %v4227, 4294901760
    %v4229 = vsub.f32 %v4227, %v4228
    %v4230 = vand.u32 %v4229, 4294901760
    %4231 = vmatpush.msra.mxu0 %v4230
    %v4232 = vand.u32 %v3534, 4294901760
    %v4233 = vsub.f32 %v3534, %v4232
    %v4234 = vand.u32 %v4233, 4294901760
    %v4235 = vsub.f32 %v4233, %v4234
    %v4236 = vand.u32 %v4235, 4294901760
    %4237 = vmatpush.msra.mxu0 %v4236
    %v4238 = vand.u32 %v3532, 4294901760
    %v4239 = vsub.f32 %v3532, %v4238
    %v4240 = vand.u32 %v4239, 4294901760
    %v4241 = vsub.f32 %v4239, %v4240
    %v4242 = vand.u32 %v4241, 4294901760
    %4243 = vmatpush.msra.mxu0 %v4242
    %v4244 = vand.u32 %v3530, 4294901760
    %v4245 = vsub.f32 %v3530, %v4244
    %v4246 = vand.u32 %v4245, 4294901760
    %v4247 = vsub.f32 %v4245, %v4246
    %v4248 = vand.u32 %v4247, 4294901760
    %4249 = vmatpush.msra.mxu0 %v4248
    %v4250 = vand.u32 %v3528, 4294901760
    %v4251 = vsub.f32 %v3528, %v4250
    %v4252 = vand.u32 %v4251, 4294901760
    %v4253 = vsub.f32 %v4251, %v4252
    %v4254 = vand.u32 %v4253, 4294901760
    %4255 = vmatpush.msra.mxu0 %v4254
    %v4256 = vand.u32 %v3526, 4294901760
    %v4257 = vsub.f32 %v3526, %v4256
    %v4258 = vand.u32 %v4257, 4294901760
    %v4259 = vsub.f32 %v4257, %v4258
    %v4260 = vand.u32 %v4259, 4294901760
    %4261 = vmatpush.msra.mxu0 %v4260
    %v4262 = vand.u32 %v3524, 4294901760
    %v4263 = vsub.f32 %v3524, %v4262
    %v4264 = vand.u32 %v4263, 4294901760
    %v4265 = vsub.f32 %v4263, %v4264
    %v4266 = vand.u32 %v4265, 4294901760
    %4267 = vmatpush.msra.mxu0 %v4266
    %v4268 = vand.u32 %v3522, 4294901760
    %v4269 = vsub.f32 %v3522, %v4268
    %v4270 = vand.u32 %v4269, 4294901760
    %v4271 = vsub.f32 %v4269, %v4270
    %v4272 = vand.u32 %v4271, 4294901760
    %4273 = vmatpush.msra.mxu0 %v4272
    %v4274 = vand.u32 %v3520, 4294901760
    %v4275 = vsub.f32 %v3520, %v4274
    %v4276 = vand.u32 %v4275, 4294901760
    %v4277 = vsub.f32 %v4275, %v4276
    %v4278 = vand.u32 %v4277, 4294901760
    %4279 = vmatpush.msra.mxu0 %v4278
    %v4280 = vand.u32 %v3518, 4294901760
    %v4281 = vsub.f32 %v3518, %v4280
    %v4282 = vand.u32 %v4281, 4294901760
    %v4283 = vsub.f32 %v4281, %v4282
    %v4284 = vand.u32 %v4283, 4294901760
    %4285 = vmatpush.msra.mxu0 %v4284
    %v4286 = vand.u32 %v3516, 4294901760
    %v4287 = vsub.f32 %v3516, %v4286
    %v4288 = vand.u32 %v4287, 4294901760
    %v4289 = vsub.f32 %v4287, %v4288
    %v4290 = vand.u32 %v4289, 4294901760
    %4291 = vmatpush.msra.mxu0 %v4290
    %v4292 = vand.u32 %v3571, 4294901760
    %4293 = vmatmul.f32.gmra.mxu0 %v4292
    %v4294 = vpop.f32.mrf.mxu0
    %v4295 = vadd.f32 %v4194, %v4294
    %4296 = vdwg.mxu0
    %v4297 = vand.u32 %v3546, 4294901760
    %v4298 = vsub.f32 %v3546, %v4297
    %4299 = vmatpush.msra.mxu0 %v4298
    %v4300 = vand.u32 %v3544, 4294901760
    %v4301 = vsub.f32 %v3544, %v4300
    %4302 = vmatpush.msra.mxu0 %v4301
    %v4303 = vand.u32 %v3542, 4294901760
    %v4304 = vsub.f32 %v3542, %v4303
    %4305 = vmatpush.msra.mxu0 %v4304
    %v4306 = vand.u32 %v3540, 4294901760
    %v4307 = vsub.f32 %v3540, %v4306
    %4308 = vmatpush.msra.mxu0 %v4307
    %v4309 = vand.u32 %v3538, 4294901760
    %v4310 = vsub.f32 %v3538, %v4309
    %4311 = vmatpush.msra.mxu0 %v4310
    %v4312 = vand.u32 %v3536, 4294901760
    %v4313 = vsub.f32 %v3536, %v4312
    %4314 = vmatpush.msra.mxu0 %v4313
    %v4315 = vand.u32 %v3534, 4294901760
    %v4316 = vsub.f32 %v3534, %v4315
    %4317 = vmatpush.msra.mxu0 %v4316
    %v4318 = vand.u32 %v3532, 4294901760
    %v4319 = vsub.f32 %v3532, %v4318
    %4320 = vmatpush.msra.mxu0 %v4319
    %v4321 = vand.u32 %v3530, 4294901760
    %v4322 = vsub.f32 %v3530, %v4321
    %4323 = vmatpush.msra.mxu0 %v4322
    %v4324 = vand.u32 %v3528, 4294901760
    %v4325 = vsub.f32 %v3528, %v4324
    %4326 = vmatpush.msra.mxu0 %v4325
    %v4327 = vand.u32 %v3526, 4294901760
    %v4328 = vsub.f32 %v3526, %v4327
    %4329 = vmatpush.msra.mxu0 %v4328
    %v4330 = vand.u32 %v3524, 4294901760
    %v4331 = vsub.f32 %v3524, %v4330
    %4332 = vmatpush.msra.mxu0 %v4331
    %v4333 = vand.u32 %v3522, 4294901760
    %v4334 = vsub.f32 %v3522, %v4333
    %4335 = vmatpush.msra.mxu0 %v4334
    %v4336 = vand.u32 %v3520, 4294901760
    %v4337 = vsub.f32 %v3520, %v4336
    %4338 = vmatpush.msra.mxu0 %v4337
    %v4339 = vand.u32 %v3518, 4294901760
    %v4340 = vsub.f32 %v3518, %v4339
    %4341 = vmatpush.msra.mxu0 %v4340
    %v4342 = vand.u32 %v3516, 4294901760
    %v4343 = vsub.f32 %v3516, %v4342
    %4344 = vmatpush.msra.mxu0 %v4343
    %v4345 = vand.u32 %v3571, 4294901760
    %v4346 = vsub.f32 %v3571, %v4345
    %4347 = vmatmul.f32.gmra.mxu0 %v4346
    %v4348 = vpop.f32.mrf.mxu0
    %v4349 = vadd.f32 %v4295, %v4348
    %4350 = vdwg.mxu0
    %v4351 = vand.u32 %v3546, 4294901760
    %4352 = vmatpush.msra.mxu0 %v4351
    %v4353 = vand.u32 %v3544, 4294901760
    %4354 = vmatpush.msra.mxu0 %v4353
    %v4355 = vand.u32 %v3542, 4294901760
    %4356 = vmatpush.msra.mxu0 %v4355
    %v4357 = vand.u32 %v3540, 4294901760
    %4358 = vmatpush.msra.mxu0 %v4357
    %v4359 = vand.u32 %v3538, 4294901760
    %4360 = vmatpush.msra.mxu0 %v4359
    %v4361 = vand.u32 %v3536, 4294901760
    %4362 = vmatpush.msra.mxu0 %v4361
    %v4363 = vand.u32 %v3534, 4294901760
    %4364 = vmatpush.msra.mxu0 %v4363
    %v4365 = vand.u32 %v3532, 4294901760
    %4366 = vmatpush.msra.mxu0 %v4365
    %v4367 = vand.u32 %v3530, 4294901760
    %4368 = vmatpush.msra.mxu0 %v4367
    %v4369 = vand.u32 %v3528, 4294901760
    %4370 = vmatpush.msra.mxu0 %v4369
    %v4371 = vand.u32 %v3526, 4294901760
    %4372 = vmatpush.msra.mxu0 %v4371
    %v4373 = vand.u32 %v3524, 4294901760
    %4374 = vmatpush.msra.mxu0 %v4373
    %v4375 = vand.u32 %v3522, 4294901760
    %4376 = vmatpush.msra.mxu0 %v4375
    %v4377 = vand.u32 %v3520, 4294901760
    %4378 = vmatpush.msra.mxu0 %v4377
    %v4379 = vand.u32 %v3518, 4294901760
    %4380 = vmatpush.msra.mxu0 %v4379
    %v4381 = vand.u32 %v3516, 4294901760
    %4382 = vmatpush.msra.mxu0 %v4381
    %v4383 = vand.u32 %v3571, 4294901760
    %v4384 = vsub.f32 %v3571, %v4383
    %v4385 = vand.u32 %v4384, 4294901760
    %4386 = vmatmul.f32.gmra.mxu0 %v4385
    %v4387 = vpop.f32.mrf.mxu0
    %v4388 = vadd.f32 %v4349, %v4387
    %4389 = vdwg.mxu0
    %v4390 = vand.u32 %v3546, 4294901760
    %v4391 = vsub.f32 %v3546, %v4390
    %v4392 = vand.u32 %v4391, 4294901760
    %4393 = vmatpush.msra.mxu0 %v4392
    %v4394 = vand.u32 %v3544, 4294901760
    %v4395 = vsub.f32 %v3544, %v4394
    %v4396 = vand.u32 %v4395, 4294901760
    %4397 = vmatpush.msra.mxu0 %v4396
    %v4398 = vand.u32 %v3542, 4294901760
    %v4399 = vsub.f32 %v3542, %v4398
    %v4400 = vand.u32 %v4399, 4294901760
    %4401 = vmatpush.msra.mxu0 %v4400
    %v4402 = vand.u32 %v3540, 4294901760
    %v4403 = vsub.f32 %v3540, %v4402
    %v4404 = vand.u32 %v4403, 4294901760
    %4405 = vmatpush.msra.mxu0 %v4404
    %v4406 = vand.u32 %v3538, 4294901760
    %v4407 = vsub.f32 %v3538, %v4406
    %v4408 = vand.u32 %v4407, 4294901760
    %4409 = vmatpush.msra.mxu0 %v4408
    %v4410 = vand.u32 %v3536, 4294901760
    %v4411 = vsub.f32 %v3536, %v4410
    %v4412 = vand.u32 %v4411, 4294901760
    %4413 = vmatpush.msra.mxu0 %v4412
    %v4414 = vand.u32 %v3534, 4294901760
    %v4415 = vsub.f32 %v3534, %v4414
    %v4416 = vand.u32 %v4415, 4294901760
    %4417 = vmatpush.msra.mxu0 %v4416
    %v4418 = vand.u32 %v3532, 4294901760
    %v4419 = vsub.f32 %v3532, %v4418
    %v4420 = vand.u32 %v4419, 4294901760
    %4421 = vmatpush.msra.mxu0 %v4420
    %v4422 = vand.u32 %v3530, 4294901760
    %v4423 = vsub.f32 %v3530, %v4422
    %v4424 = vand.u32 %v4423, 4294901760
    %4425 = vmatpush.msra.mxu0 %v4424
    %v4426 = vand.u32 %v3528, 4294901760
    %v4427 = vsub.f32 %v3528, %v4426
    %v4428 = vand.u32 %v4427, 4294901760
    %4429 = vmatpush.msra.mxu0 %v4428
    %v4430 = vand.u32 %v3526, 4294901760
    %v4431 = vsub.f32 %v3526, %v4430
    %v4432 = vand.u32 %v4431, 4294901760
    %4433 = vmatpush.msra.mxu0 %v4432
    %v4434 = vand.u32 %v3524, 4294901760
    %v4435 = vsub.f32 %v3524, %v4434
    %v4436 = vand.u32 %v4435, 4294901760
    %4437 = vmatpush.msra.mxu0 %v4436
    %v4438 = vand.u32 %v3522, 4294901760
    %v4439 = vsub.f32 %v3522, %v4438
    %v4440 = vand.u32 %v4439, 4294901760
    %4441 = vmatpush.msra.mxu0 %v4440
    %v4442 = vand.u32 %v3520, 4294901760
    %v4443 = vsub.f32 %v3520, %v4442
    %v4444 = vand.u32 %v4443, 4294901760
    %4445 = vmatpush.msra.mxu0 %v4444
    %v4446 = vand.u32 %v3518, 4294901760
    %v4447 = vsub.f32 %v3518, %v4446
    %v4448 = vand.u32 %v4447, 4294901760
    %4449 = vmatpush.msra.mxu0 %v4448
    %v4450 = vand.u32 %v3516, 4294901760
    %v4451 = vsub.f32 %v3516, %v4450
    %v4452 = vand.u32 %v4451, 4294901760
    %4453 = vmatpush.msra.mxu0 %v4452
    %v4454 = vand.u32 %v3571, 4294901760
    %4455 = vmatmul.f32.gmra.mxu0 %v4454
    %v4456 = vpop.f32.mrf.mxu0
    %v4457 = vadd.f32 %v4388, %v4456
    %4458 = vdwg.mxu0
    %v4459 = vand.u32 %v3546, 4294901760
    %4460 = vmatpush.msra.mxu0 %v4459
    %v4461 = vand.u32 %v3544, 4294901760
    %4462 = vmatpush.msra.mxu0 %v4461
    %v4463 = vand.u32 %v3542, 4294901760
    %4464 = vmatpush.msra.mxu0 %v4463
    %v4465 = vand.u32 %v3540, 4294901760
    %4466 = vmatpush.msra.mxu0 %v4465
    %v4467 = vand.u32 %v3538, 4294901760
    %4468 = vmatpush.msra.mxu0 %v4467
    %v4469 = vand.u32 %v3536, 4294901760
    %4470 = vmatpush.msra.mxu0 %v4469
    %v4471 = vand.u32 %v3534, 4294901760
    %4472 = vmatpush.msra.mxu0 %v4471
    %v4473 = vand.u32 %v3532, 4294901760
    %4474 = vmatpush.msra.mxu0 %v4473
    %v4475 = vand.u32 %v3530, 4294901760
    %4476 = vmatpush.msra.mxu0 %v4475
    %v4477 = vand.u32 %v3528, 4294901760
    %4478 = vmatpush.msra.mxu0 %v4477
    %v4479 = vand.u32 %v3526, 4294901760
    %4480 = vmatpush.msra.mxu0 %v4479
    %v4481 = vand.u32 %v3524, 4294901760
    %4482 = vmatpush.msra.mxu0 %v4481
    %v4483 = vand.u32 %v3522, 4294901760
    %4484 = vmatpush.msra.mxu0 %v4483
    %v4485 = vand.u32 %v3520, 4294901760
    %4486 = vmatpush.msra.mxu0 %v4485
    %v4487 = vand.u32 %v3518, 4294901760
    %4488 = vmatpush.msra.mxu0 %v4487
    %v4489 = vand.u32 %v3516, 4294901760
    %4490 = vmatpush.msra.mxu0 %v4489
    %v4491 = vand.u32 %v3571, 4294901760
    %4492 = vmatmul.f32.gmra.mxu0 %v4491
    %v4493 = vpop.f32.mrf.mxu0
    %v4494 = vadd.f32 %v4457, %v4493
    %4495 = vdwg.mxu0
    %4496 = vmatpush.msra.mxu0 0.0
    %4497 = vmatpush.msra.mxu0 0.0
    %4498 = vmatpush.msra.mxu0 0.0
    %4499 = vmatpush.msra.mxu0 0.0
    %4500 = vmatpush.msra.mxu0 0.0
    %4501 = vmatpush.msra.mxu0 0.0
    %4502 = vmatpush.msra.mxu0 0.0
    %4503 = vmatpush.msra.mxu0 0.0
    %v4504 = vand.u32 %v3562, 4294901760
    %4505 = vmatpush.msra.mxu0 %v4504
    %v4506 = vand.u32 %v3560, 4294901760
    %4507 = vmatpush.msra.mxu0 %v4506
    %v4508 = vand.u32 %v3558, 4294901760
    %4509 = vmatpush.msra.mxu0 %v4508
    %v4510 = vand.u32 %v3556, 4294901760
    %4511 = vmatpush.msra.mxu0 %v4510
    %v4512 = vand.u32 %v3554, 4294901760
    %4513 = vmatpush.msra.mxu0 %v4512
    %v4514 = vand.u32 %v3552, 4294901760
    %4515 = vmatpush.msra.mxu0 %v4514
    %v4516 = vand.u32 %v3550, 4294901760
    %4517 = vmatpush.msra.mxu0 %v4516
    %v4518 = vand.u32 %v3548, 4294901760
    %4519 = vmatpush.msra.mxu0 %v4518
    %v4520 = vand.u32 %v3575, 4294901760
    %v4521 = vsub.f32 %v3575, %v4520
    %v4522 = vand.u32 %v4521, 4294901760
    %v4523 = vsub.f32 %v4521, %v4522
    %v4524 = vand.u32 %v4523, 4294901760
    %4525 = vmatmul.f32.gmra.mxu0 %v4524
    %v4526 = vpop.f32.mrf.mxu0
    %v4527 = vadd.f32 %v4494, %v4526
    %4528 = vdwg.mxu0
    %4529 = vmatpush.msra.mxu0 0.0
    %4530 = vmatpush.msra.mxu0 0.0
    %4531 = vmatpush.msra.mxu0 0.0
    %4532 = vmatpush.msra.mxu0 0.0
    %4533 = vmatpush.msra.mxu0 0.0
    %4534 = vmatpush.msra.mxu0 0.0
    %4535 = vmatpush.msra.mxu0 0.0
    %4536 = vmatpush.msra.mxu0 0.0
    %v4537 = vand.u32 %v3562, 4294901760
    %v4538 = vsub.f32 %v3562, %v4537
    %v4539 = vand.u32 %v4538, 4294901760
    %v4540 = vsub.f32 %v4538, %v4539
    %v4541 = vand.u32 %v4540, 4294901760
    %4542 = vmatpush.msra.mxu0 %v4541
    %v4543 = vand.u32 %v3560, 4294901760
    %v4544 = vsub.f32 %v3560, %v4543
    %v4545 = vand.u32 %v4544, 4294901760
    %v4546 = vsub.f32 %v4544, %v4545
    %v4547 = vand.u32 %v4546, 4294901760
    %4548 = vmatpush.msra.mxu0 %v4547
    %v4549 = vand.u32 %v3558, 4294901760
    %v4550 = vsub.f32 %v3558, %v4549
    %v4551 = vand.u32 %v4550, 4294901760
    %v4552 = vsub.f32 %v4550, %v4551
    %v4553 = vand.u32 %v4552, 4294901760
    %4554 = vmatpush.msra.mxu0 %v4553
    %v4555 = vand.u32 %v3556, 4294901760
    %v4556 = vsub.f32 %v3556, %v4555
    %v4557 = vand.u32 %v4556, 4294901760
    %v4558 = vsub.f32 %v4556, %v4557
    %v4559 = vand.u32 %v4558, 4294901760
    %4560 = vmatpush.msra.mxu0 %v4559
    %v4561 = vand.u32 %v3554, 4294901760
    %v4562 = vsub.f32 %v3554, %v4561
    %v4563 = vand.u32 %v4562, 4294901760
    %v4564 = vsub.f32 %v4562, %v4563
    %v4565 = vand.u32 %v4564, 4294901760
    %4566 = vmatpush.msra.mxu0 %v4565
    %v4567 = vand.u32 %v3552, 4294901760
    %v4568 = vsub.f32 %v3552, %v4567
    %v4569 = vand.u32 %v4568, 4294901760
    %v4570 = vsub.f32 %v4568, %v4569
    %v4571 = vand.u32 %v4570, 4294901760
    %4572 = vmatpush.msra.mxu0 %v4571
    %v4573 = vand.u32 %v3550, 4294901760
    %v4574 = vsub.f32 %v3550, %v4573
    %v4575 = vand.u32 %v4574, 4294901760
    %v4576 = vsub.f32 %v4574, %v4575
    %v4577 = vand.u32 %v4576, 4294901760
    %4578 = vmatpush.msra.mxu0 %v4577
    %v4579 = vand.u32 %v3548, 4294901760
    %v4580 = vsub.f32 %v3548, %v4579
    %v4581 = vand.u32 %v4580, 4294901760
    %v4582 = vsub.f32 %v4580, %v4581
    %v4583 = vand.u32 %v4582, 4294901760
    %4584 = vmatpush.msra.mxu0 %v4583
    %v4585 = vand.u32 %v3575, 4294901760
    %4586 = vmatmul.f32.gmra.mxu0 %v4585
    %v4587 = vpop.f32.mrf.mxu0
    %v4588 = vadd.f32 %v4527, %v4587
    %4589 = vdwg.mxu0
    %4590 = vmatpush.msra.mxu0 0.0
    %4591 = vmatpush.msra.mxu0 0.0
    %4592 = vmatpush.msra.mxu0 0.0
    %4593 = vmatpush.msra.mxu0 0.0
    %4594 = vmatpush.msra.mxu0 0.0
    %4595 = vmatpush.msra.mxu0 0.0
    %4596 = vmatpush.msra.mxu0 0.0
    %4597 = vmatpush.msra.mxu0 0.0
    %v4598 = vand.u32 %v3562, 4294901760
    %v4599 = vsub.f32 %v3562, %v4598
    %4600 = vmatpush.msra.mxu0 %v4599
    %v4601 = vand.u32 %v3560, 4294901760
    %v4602 = vsub.f32 %v3560, %v4601
    %4603 = vmatpush.msra.mxu0 %v4602
    %v4604 = vand.u32 %v3558, 4294901760
    %v4605 = vsub.f32 %v3558, %v4604
    %4606 = vmatpush.msra.mxu0 %v4605
    %v4607 = vand.u32 %v3556, 4294901760
    %v4608 = vsub.f32 %v3556, %v4607
    %4609 = vmatpush.msra.mxu0 %v4608
    %v4610 = vand.u32 %v3554, 4294901760
    %v4611 = vsub.f32 %v3554, %v4610
    %4612 = vmatpush.msra.mxu0 %v4611
    %v4613 = vand.u32 %v3552, 4294901760
    %v4614 = vsub.f32 %v3552, %v4613
    %4615 = vmatpush.msra.mxu0 %v4614
    %v4616 = vand.u32 %v3550, 4294901760
    %v4617 = vsub.f32 %v3550, %v4616
    %4618 = vmatpush.msra.mxu0 %v4617
    %v4619 = vand.u32 %v3548, 4294901760
    %v4620 = vsub.f32 %v3548, %v4619
    %4621 = vmatpush.msra.mxu0 %v4620
    %v4622 = vand.u32 %v3575, 4294901760
    %v4623 = vsub.f32 %v3575, %v4622
    %4624 = vmatmul.f32.gmra.mxu0 %v4623
    %v4625 = vpop.f32.mrf.mxu0
    %v4626 = vadd.f32 %v4588, %v4625
    %4627 = vdwg.mxu0
    %4628 = vmatpush.msra.mxu0 0.0
    %4629 = vmatpush.msra.mxu0 0.0
    %4630 = vmatpush.msra.mxu0 0.0
    %4631 = vmatpush.msra.mxu0 0.0
    %4632 = vmatpush.msra.mxu0 0.0
    %4633 = vmatpush.msra.mxu0 0.0
    %4634 = vmatpush.msra.mxu0 0.0
    %4635 = vmatpush.msra.mxu0 0.0
    %v4636 = vand.u32 %v3562, 4294901760
    %4637 = vmatpush.msra.mxu0 %v4636
    %v4638 = vand.u32 %v3560, 4294901760
    %4639 = vmatpush.msra.mxu0 %v4638
    %v4640 = vand.u32 %v3558, 4294901760
    %4641 = vmatpush.msra.mxu0 %v4640
    %v4642 = vand.u32 %v3556, 4294901760
    %4643 = vmatpush.msra.mxu0 %v4642
    %v4644 = vand.u32 %v3554, 4294901760
    %4645 = vmatpush.msra.mxu0 %v4644
    %v4646 = vand.u32 %v3552, 4294901760
    %4647 = vmatpush.msra.mxu0 %v4646
    %v4648 = vand.u32 %v3550, 4294901760
    %4649 = vmatpush.msra.mxu0 %v4648
    %v4650 = vand.u32 %v3548, 4294901760
    %4651 = vmatpush.msra.mxu0 %v4650
    %v4652 = vand.u32 %v3575, 4294901760
    %v4653 = vsub.f32 %v3575, %v4652
    %v4654 = vand.u32 %v4653, 4294901760
    %4655 = vmatmul.f32.gmra.mxu0 %v4654
    %v4656 = vpop.f32.mrf.mxu0
    %v4657 = vadd.f32 %v4626, %v4656
    %4658 = vdwg.mxu0
    %4659 = vmatpush.msra.mxu0 0.0
    %4660 = vmatpush.msra.mxu0 0.0
    %4661 = vmatpush.msra.mxu0 0.0
    %4662 = vmatpush.msra.mxu0 0.0
    %4663 = vmatpush.msra.mxu0 0.0
    %4664 = vmatpush.msra.mxu0 0.0
    %4665 = vmatpush.msra.mxu0 0.0
    %4666 = vmatpush.msra.mxu0 0.0
    %v4667 = vand.u32 %v3562, 4294901760
    %v4668 = vsub.f32 %v3562, %v4667
    %v4669 = vand.u32 %v4668, 4294901760
    %4670 = vmatpush.msra.mxu0 %v4669
    %v4671 = vand.u32 %v3560, 4294901760
    %v4672 = vsub.f32 %v3560, %v4671
    %v4673 = vand.u32 %v4672, 4294901760
    %4674 = vmatpush.msra.mxu0 %v4673
    %v4675 = vand.u32 %v3558, 4294901760
    %v4676 = vsub.f32 %v3558, %v4675
    %v4677 = vand.u32 %v4676, 4294901760
    %4678 = vmatpush.msra.mxu0 %v4677
    %v4679 = vand.u32 %v3556, 4294901760
    %v4680 = vsub.f32 %v3556, %v4679
    %v4681 = vand.u32 %v4680, 4294901760
    %4682 = vmatpush.msra.mxu0 %v4681
    %v4683 = vand.u32 %v3554, 4294901760
    %v4684 = vsub.f32 %v3554, %v4683
    %v4685 = vand.u32 %v4684, 4294901760
    %4686 = vmatpush.msra.mxu0 %v4685
    %v4687 = vand.u32 %v3552, 4294901760
    %v4688 = vsub.f32 %v3552, %v4687
    %v4689 = vand.u32 %v4688, 4294901760
    %4690 = vmatpush.msra.mxu0 %v4689
    %v4691 = vand.u32 %v3550, 4294901760
    %v4692 = vsub.f32 %v3550, %v4691
    %v4693 = vand.u32 %v4692, 4294901760
    %4694 = vmatpush.msra.mxu0 %v4693
    %v4695 = vand.u32 %v3548, 4294901760
    %v4696 = vsub.f32 %v3548, %v4695
    %v4697 = vand.u32 %v4696, 4294901760
    %4698 = vmatpush.msra.mxu0 %v4697
    %v4699 = vand.u32 %v3575, 4294901760
    %4700 = vmatmul.f32.gmra.mxu0 %v4699
    %v4701 = vpop.f32.mrf.mxu0
    %v4702 = vadd.f32 %v4657, %v4701
    %4703 = vdwg.mxu0
    %4704 = vmatpush.msra.mxu0 0.0
    %4705 = vmatpush.msra.mxu0 0.0
    %4706 = vmatpush.msra.mxu0 0.0
    %4707 = vmatpush.msra.mxu0 0.0
    %4708 = vmatpush.msra.mxu0 0.0
    %4709 = vmatpush.msra.mxu0 0.0
    %4710 = vmatpush.msra.mxu0 0.0
    %4711 = vmatpush.msra.mxu0 0.0
    %v4712 = vand.u32 %v3562, 4294901760
    %4713 = vmatpush.msra.mxu0 %v4712
    %v4714 = vand.u32 %v3560, 4294901760
    %4715 = vmatpush.msra.mxu0 %v4714
    %v4716 = vand.u32 %v3558, 4294901760
    %4717 = vmatpush.msra.mxu0 %v4716
    %v4718 = vand.u32 %v3556, 4294901760
    %4719 = vmatpush.msra.mxu0 %v4718
    %v4720 = vand.u32 %v3554, 4294901760
    %4721 = vmatpush.msra.mxu0 %v4720
    %v4722 = vand.u32 %v3552, 4294901760
    %4723 = vmatpush.msra.mxu0 %v4722
    %v4724 = vand.u32 %v3550, 4294901760
    %4725 = vmatpush.msra.mxu0 %v4724
    %v4726 = vand.u32 %v3548, 4294901760
    %4727 = vmatpush.msra.mxu0 %v4726
    %v4728 = vand.u32 %v3575, 4294901760
    %4729 = vmatmul.f32.gmra.mxu0 %v4728
    %v4730 = vpop.f32.mrf.mxu0
    %v4731 = vadd.f32 %v4702, %v4730
    %4732 = vdwg.mxu0
    %v4735 = vrot.slane %v4731, 6
    %vm4736 = vcmask 1041408
    %v4737 = vsel %vm4736, %v4153, %v4735
    %4739 = vst [vmem:[#allocation4] sm:$0xf] %v4737
    // Predicated region
    $region26: #{model_forward.1} parent=1 // pred_check
      _
    $region27: #{model_forward.1} parent=1 // pred_check_branch
      %4741 = sbr.rel (0) target = $region29
    $region28: #{model_forward.1} parent=1 // pred_region
      %4743 = vsyncadd [#allocation5], 0
      %s4745 = sshll.u32 [#allocation4], 4
      %s4746 = int_to_ptr.vmem [resolvable:$true] %s4745
      %s4747 = sshll.u32 %s6, 4
      %s4748 = int_to_ptr.hbm [resolvable:$true] %s4747
      %4750 = dma.vmem_to_hbm [thread:$0]  %s4746, 64, %s4748, [#allocation5]
    $region29: #{model_forward.1} parent=1 // pred_fallthru
      _
    // Predicated region
    $region30: #{model_forward.1} parent=1 // pred_check
      _
    $region31: #{model_forward.1} parent=1 // pred_check_branch
      %4752 = sbr.rel (0) target = $region33
    $region32: #{model_forward.1} parent=1 // pred_region
      %4754 = dma.done [#allocation5], 64
    $region33: #{model_forward.1} parent=1 // pred_fallthru
      _
    %4755 = vsyncpa [#allocation5], 1

</llo_original>
